<compile_context>
chip_gen: v5e
topology: v5e:2x2
jax: 0.10.0
libtpu: 0.0.40
codegen_flags: <defaults>
</compile_context>

<pallas_src>
import functools

import jax
import jax.numpy as jnp
from jax.experimental import pallas as pl
from jax.experimental.pallas import tpu as pltpu


# ----------------------------- generation-aware budgets -----------------------------

def _tpu_vmem_capacity_bytes():
    try:
        info = pltpu.get_tpu_info()
        return int(getattr(info, "vmem_capacity_bytes", 64 * 1024 * 1024))
    except Exception:
        return 64 * 1024 * 1024  # conservative (v7x per-core VMEM)


_VMEM_CAP = _tpu_vmem_capacity_bytes()
_VMEM_LIMIT = int(min(_VMEM_CAP // 2, 96 * 1024 * 1024))      # 64 MiB on v5e/v6e, 32 MiB on v7x
_DEFAULT_TM = 512 if _VMEM_CAP >= 96 * 1024 * 1024 else 256   # bigger row tiles where VMEM allows


def _round_up(x, m):
    return ((x + m - 1) // m) * m


# ----------------------------- tiled linear (matmul + bias) kernel -----------------------------

def _matmul_bias_kernel(x_ref, w_ref, b_ref, o_ref):
    # bf16 operands straight from VMEM (cast once in the wrapper), f32 accumulation + bias.
    acc = jnp.dot(x_ref[...], w_ref[...], preferred_element_type=jnp.float32)
    o_ref[...] = acc + b_ref[...]


def _linear(x_bf16, w_bf16, b_f32, *, tm=_DEFAULT_TM):
    M, K = x_bf16.shape
    N = w_bf16.shape[1]
    tm = min(tm, M)
    grid = (pl.cdiv(M, tm),)
    return pl.pallas_call(
        _matmul_bias_kernel,
        out_shape=jax.ShapeDtypeStruct((M, N), jnp.float32),
        grid_spec=pltpu.PrefetchScalarGridSpec(
            num_scalar_prefetch=0,
            grid=grid,
            in_specs=[
                pl.BlockSpec((tm, K), lambda i: (i, 0)),
                pl.BlockSpec((K, N), lambda i: (0, 0)),
                pl.BlockSpec((1, N), lambda i: (0, 0)),
            ],
            out_specs=pl.BlockSpec((tm, N), lambda i: (i, 0)),
        ),
        compiler_params=pltpu.CompilerParams(
            dimension_semantics=("parallel",),
            vmem_limit_bytes=_VMEM_LIMIT,
        ),
    )(x_bf16, w_bf16, b_f32.reshape(1, N))


# ----------------------------- fused AFT-conv aggregation + output projection kernel -----------------------------

def _aft_agg_kernel(qkv_ref, ew_ref, wo_ref, bo_ref, o_ref, pad_ref, *, s, hidden):
    # qkv_ref : (1, H, W, 3*hidden) VMEM f32   (channels-last: hidden on lanes, W on sublanes)
    # ew_ref  : (s*s, 2*hidden)     VMEM f32   (= exp(w) - 1 per channel, tiled [den | num])
    # wo_ref  : (hidden, C)         VMEM bf16  (output projection weight)
    # bo_ref  : (1, C)              VMEM f32
    # o_ref   : (1, H, W, C)        VMEM f32
    # pad_ref : (H+2p, Wp, 2*hidden) VMEM f32  scratch ('same'-padded [exp(K) | exp(K)*V])
    p = s // 2
    H = qkv_ref.shape[1]
    W = qkv_ref.shape[2]
    C = o_ref.shape[3]
    Hp = pad_ref.shape[0]
    Wp = pad_ref.shape[1]
    h2 = 2 * hidden

    qkv = qkv_ref[0]                              # (H, W, 3*hidden)
    q = qkv[:, :, 0:hidden]
    k = qkv[:, :, hidden:2 * hidden]
    v = qkv[:, :, 2 * hidden:3 * hidden]

    # Numerically-stabilized exp: per-channel max cancels exactly in num/den.
    kmax = jnp.max(k, axis=(0, 1), keepdims=True)            # (1, 1, hidden)
    ek = jnp.exp(k - kmax)
    combo = jnp.concatenate([ek, ek * v], axis=-1)            # (H, W, 2*hidden) = [den | num]

    # Zero only the halo ring each step (interior is fully overwritten below).  This avoids
    # full-scratch memsets and does not rely on scratch persistence (megacore-safe).
    pad_ref[0:p, :, :] = jnp.zeros((p, Wp, h2), jnp.float32)
    pad_ref[p + H:Hp, :, :] = jnp.zeros((Hp - p - H, Wp, h2), jnp.float32)
    pad_ref[p:p + H, 0:p, :] = jnp.zeros((H, p, h2), jnp.float32)
    pad_ref[p:p + H, p + W:W + 2 * p, :] = jnp.zeros((H, p, h2), jnp.float32)

    pad_ref[p:p + H, p:p + W, :] = combo

    # Global (full-context) attention terms for both halves at once.
    acc = jnp.broadcast_to(jnp.sum(combo, axis=(0, 1), keepdims=True), (H, W, h2))

    # Depthwise 'same' conv with kernel (exp(w) - 1): dy is a major-dim offset, dx a sublane
    # offset; tap weights loaded once and broadcast over (H, W).
    ew = ew_ref[...]                                          # (s*s, 2*hidden), hoisted load
    for dy in range(s):
        for dx in range(s):
            wgt = ew[dy * s + dx, :].reshape(1, 1, h2)
            acc = acc + wgt * pad_ref[dy:dy + H, dx:dx + W, :]

    den = acc[:, :, 0:hidden]
    num = acc[:, :, hidden:h2]
    y = jax.nn.sigmoid(q) * (num * pl.reciprocal(den, approx=True))   # (H, W, hidden) f32

    # Fused output projection: bf16 MXU, f32 accumulation; y never leaves VMEM.
    y2 = y.reshape(H * W, hidden).astype(jnp.bfloat16)
    out = jnp.dot(y2, wo_ref[...], preferred_element_type=jnp.float32) + bo_ref[...]
    o_ref[0] = out.reshape(H, W, C)


def _aft_aggregate(qkv4, ew_taps, wo_bf16, bo_f32, *, kernel_size):
    # TODO(synk): for v7x megacore / large images, add an H-tile grid axis with a p-row halo
    # (two-pass global sum) instead of whole-image blocks; grid=(B,) is enough at these shapes.
    B, H, W, hidden3 = qkv4.shape
    hidden = hidden3 // 3
    C = wo_bf16.shape[1]
    s = kernel_size
    p = s // 2
    Hp = H + 2 * p
    Wp = _round_up(W + 2 * p, 8)          # sublane-aligned padded scratch width
    kern = functools.partial(_aft_agg_kernel, s=s, hidden=hidden)
    return pl.pallas_call(
        kern,
        out_shape=jax.ShapeDtypeStruct((B, H, W, C), jnp.float32),
        grid_spec=pltpu.PrefetchScalarGridSpec(
            num_scalar_prefetch=0,
            grid=(B,),
            in_specs=[
                pl.BlockSpec((1, H, W, hidden3), lambda b: (b, 0, 0, 0)),
                pl.BlockSpec((s * s, 2 * hidden), lambda b: (0, 0)),
                pl.BlockSpec((hidden, C), lambda b: (0, 0)),
                pl.BlockSpec((1, C), lambda b: (0, 0)),
            ],
            out_specs=pl.BlockSpec((1, H, W, C), lambda b: (b, 0, 0, 0)),
            scratch_shapes=[
                pltpu.VMEM((Hp, Wp, 2 * hidden), jnp.float32),
            ],
        ),
        compiler_params=pltpu.CompilerParams(
            dimension_semantics=("parallel",),
            vmem_limit_bytes=_VMEM_LIMIT,
        ),
    )(qkv4, ew_taps, wo_bf16, bo_f32)


# ----------------------------- parameters & forward -----------------------------

def init_params(key, dim, hidden_dim, nheads, kernel_size):
    keys = jax.random.split(key, 9)

    def lin(kw, kb, fan_in, fan_out):
        bound = 1.0 / (fan_in ** 0.5)
        w = jax.random.uniform(kw, (fan_in, fan_out), jnp.float32, -bound, bound)
        b = jax.random.uniform(kb, (fan_out,), jnp.float32, -bound, bound)
        return w, b

    wq, bq = lin(keys[0], keys[1], dim, hidden_dim)
    wk, bk = lin(keys[2], keys[3], dim, hidden_dim)
    wv, bv = lin(keys[4], keys[5], dim, hidden_dim)
    wo, bo = lin(keys[6], keys[7], hidden_dim, dim)
    # TODO(synk): paper's reparameterization w = gamma * w_hat/||w_hat|| omitted;
    # a plain learned per-head s x s kernel is used instead.
    conv_w = 0.1 * jax.random.normal(
        keys[8], (nheads, kernel_size, kernel_size), jnp.float32)
    return dict(
        wqkv=jnp.concatenate([wq, wk, wv], axis=1),   # (dim, 3*hidden) fused QKV weight
        bqkv=jnp.concatenate([bq, bk, bv], axis=0),   # (3*hidden,)
        wo=wo, bo=bo, conv_w=conv_w,
    )


def aft_conv_forward(x, params, *, nheads, kernel_size):
    B, C, H, W = x.shape
    hidden = params["wo"].shape[0]
    hd = hidden // nheads
    s = kernel_size

    # NCHW -> channels-last once at the module boundary.
    # TODO(synk): keep activations NHWC end-to-end in the surrounding model to drop these transposes.
    xf = jnp.transpose(x, (0, 2, 3, 1)).reshape(B * H * W, C).astype(jnp.bfloat16)

    # Fused Q/K/V projection: x read once, bf16 operands cast once outside the grid loop.
    qkv = _linear(xf, params["wqkv"].astype(jnp.bfloat16), params["bqkv"])
    qkv4 = qkv.reshape(B, H, W, 3 * hidden)           # free reshape (row-major match)

    # Tap-weight preprocessing: (nh, s, s) -> (s*s, hidden) per-channel rows, tiled twice
    # for the [exp(K) | exp(K)*V] channel-concatenated conv accumulator.
    ew_heads = jnp.exp(params["conv_w"]) - 1.0                     # (nh, s, s)
    ew_chan = jnp.repeat(
        jnp.transpose(ew_heads, (1, 2, 0)).reshape(s * s, nheads), hd, axis=1)
    ew_taps = jnp.concatenate([ew_chan, ew_chan], axis=1)          # (s*s, 2*hidden)

    # Aggregation + fused output projection: (B, H, W, C) straight out of the kernel.
    out4 = _aft_aggregate(qkv4, ew_taps,
                          params["wo"].astype(jnp.bfloat16),
                          params["bo"].reshape(1, C),
                          kernel_size=s)
    return jnp.transpose(out4, (0, 3, 1, 2))                        # back to NCHW


if __name__ == "__main__":
    key = jax.random.PRNGKey(0)
    kx, kparams = jax.random.split(key)

    B, C, H, W = 2, 4, 16, 16
    hidden, nheads, ksize = 32, 4, 3

    x = jax.random.normal(kx, (B, C, H, W), jnp.float32)
    params = init_params(kparams, C, hidden, nheads, ksize)

    fwd = jax.jit(functools.partial(aft_conv_forward, nheads=nheads,
                                    kernel_size=ksize))
    y = fwd(x, params)
    jax.block_until_ready(y)
    assert y.shape == (B, C, H, W) and y.dtype == jnp.float32
    assert bool(jnp.all(jnp.isfinite(y)))
    print("KERNEL_OK")
</pallas_src>

<mosaic_0001>
module attributes {stable_mosaic.version = 11 : i64} {
  func.func @_matmul_bias_kernel(%arg0: i32, %arg1: memref<256x4xbf16, #tpu.memory_space<vmem>>, %arg2: memref<4x96xbf16, #tpu.memory_space<vmem>>, %arg3: memref<1x96xf32, #tpu.memory_space<vmem>>, %arg4: memref<256x96xf32, #tpu.memory_space<vmem>>) attributes {dimension_semantics = [#tpu.dimension_semantics<parallel>], iteration_bounds = array<i64: 2>, scalar_prefetch = 0 : i64, scratch_operands = 0 : i64, tpu.core_type = #tpu.core_type<tc>, window_params = [{transform_indices = @transform_0, window_bounds = array<i64: 256, 4>}, {pipeline_mode = #tpu.pipeline_mode<synchronous>, transform_indices = @transform_1, window_bounds = array<i64: 4, 96>}, {pipeline_mode = #tpu.pipeline_mode<synchronous>, transform_indices = @transform_2, window_bounds = array<i64: 1, 96>}, {transform_indices = @transform_3, window_bounds = array<i64: 256, 96>}]} {
    %c0 = arith.constant 0 : index
    %c0_0 = arith.constant 0 : index
    %0 = vector.load %arg1[%c0, %c0_0] : memref<256x4xbf16, #tpu.memory_space<vmem>>, vector<256x4xbf16>
    %c0_1 = arith.constant 0 : index
    %c0_2 = arith.constant 0 : index
    %1 = vector.load %arg2[%c0_1, %c0_2] : memref<4x96xbf16, #tpu.memory_space<vmem>>, vector<4x96xbf16>
    %cst = arith.constant dense<0.000000e+00> : vector<256x96xf32>
    %2 = tpu.matmul %0, %1, %cst {dimension_numbers = #tpu.dot_dimension_numbers<[1], [0], [0], [1], [0, 0, 1, 1], [], []>} : vector<256x4xbf16>, vector<4x96xbf16>, vector<256x96xf32> -> vector<256x96xf32>
    %c0_3 = arith.constant 0 : index
    %c0_4 = arith.constant 0 : index
    %3 = vector.load %arg3[%c0_3, %c0_4] : memref<1x96xf32, #tpu.memory_space<vmem>>, vector<1x96xf32>
    %4 = vector.broadcast %3 : vector<1x96xf32> to vector<256x96xf32>
    %5 = arith.addf %2, %4 : vector<256x96xf32>
    %c0_5 = arith.constant 0 : index
    %c0_6 = arith.constant 0 : index
    %6 = vector.load %arg4[%c0_5, %c0_6] : memref<256x96xf32, #tpu.memory_space<vmem>>, vector<256x96xf32>
    tpu.vector_store %arg4[%c0_5, %c0_6], %5 {strides = array<i32>} : memref<256x96xf32, #tpu.memory_space<vmem>>, vector<256x96xf32>,
    return
  }
  func.func @transform_0(%arg0: i32) -> (i32, i32) {
    %c0_i32 = arith.constant 0 : i32
    %c0_i32_0 = arith.constant 0 : i32
    return %arg0, %c0_i32 : i32, i32
  }
  func.func @transform_1(%arg0: i32) -> (i32, i32) {
    %c0_i32 = arith.constant 0 : i32
    %c0_i32_0 = arith.constant 0 : i32
    %c0_i32_1 = arith.constant 0 : i32
    return %c0_i32, %c0_i32_0 : i32, i32
  }
  func.func @transform_2(%arg0: i32) -> (i32, i32) {
    %c0_i32 = arith.constant 0 : i32
    %c0_i32_0 = arith.constant 0 : i32
    %c0_i32_1 = arith.constant 0 : i32
    return %c0_i32, %c0_i32_0 : i32, i32
  }
  func.func @transform_3(%arg0: i32) -> (i32, i32) {
    %c0_i32 = arith.constant 0 : i32
    %c0_i32_0 = arith.constant 0 : i32
    return %arg0, %c0_i32 : i32, i32
  }
}

module attributes {stable_mosaic.version = 11 : i64} {
  func.func @_aft_agg_kernel(%arg0: i32, %arg1: memref<1x16x16x96xf32, #tpu.memory_space<vmem>>, %arg2: memref<9x64xf32, #tpu.memory_space<vmem>>, %arg3: memref<32x4xbf16, #tpu.memory_space<vmem>>, %arg4: memref<1x4xf32, #tpu.memory_space<vmem>>, %arg5: memref<1x16x16x4xf32, #tpu.memory_space<vmem>>, %arg6: memref<18x24x64xf32, #tpu.memory_space<vmem>>) attributes {dimension_semantics = [#tpu.dimension_semantics<parallel>], iteration_bounds = array<i64: 2>, scalar_prefetch = 0 : i64, scratch_operands = 1 : i64, tpu.core_type = #tpu.core_type<tc>, window_params = [{transform_indices = @transform_0, window_bounds = array<i64: 1, 16, 16, 96>}, {pipeline_mode = #tpu.pipeline_mode<synchronous>, transform_indices = @transform_1, window_bounds = array<i64: 9, 64>}, {pipeline_mode = #tpu.pipeline_mode<synchronous>, transform_indices = @transform_2, window_bounds = array<i64: 32, 4>}, {pipeline_mode = #tpu.pipeline_mode<synchronous>, transform_indices = @transform_3, window_bounds = array<i64: 1, 4>}, {transform_indices = @transform_4, window_bounds = array<i64: 1, 16, 16, 4>}]} {
    %c0 = arith.constant 0 : index
    %c0_0 = arith.constant 0 : index
    %c0_1 = arith.constant 0 : index
    %c0_2 = arith.constant 0 : index
    %0 = vector.load %arg1[%c0, %c0_0, %c0_1, %c0_2] : memref<1x16x16x96xf32, #tpu.memory_space<vmem>>, vector<1x16x16x96xf32>
    %1 = vector.shape_cast %0 : vector<1x16x16x96xf32> to vector<16x16x96xf32>
    %2 = vector.extract_strided_slice %1 {offsets = [0, 0, 0], sizes = [16, 16, 32], strides = [1, 1, 1]} : vector<16x16x96xf32> to vector<16x16x32xf32>
    %3 = vector.extract_strided_slice %1 {offsets = [0, 0, 32], sizes = [16, 16, 32], strides = [1, 1, 1]} : vector<16x16x96xf32> to vector<16x16x32xf32>
    %4 = vector.extract_strided_slice %1 {offsets = [0, 0, 64], sizes = [16, 16, 32], strides = [1, 1, 1]} : vector<16x16x96xf32> to vector<16x16x32xf32>
    %cst = arith.constant dense<0xFF800000> : vector<32xf32>
    %5 = vector.multi_reduction <maximumf>, %3, %cst [0, 1] : vector<16x16x32xf32> to vector<32xf32>
    %6 = vector.shape_cast %5 : vector<32xf32> to vector<1x1x32xf32>
    %7 = vector.broadcast %6 : vector<1x1x32xf32> to vector<16x16x32xf32>
    %8 = arith.subf %3, %7 : vector<16x16x32xf32>
    %9 = math.exp %8 : vector<16x16x32xf32>
    %10 = arith.mulf %9, %4 : vector<16x16x32xf32>
    %11 = tpu.concatenate %9, %10 in 2 : vector<16x16x32xf32>, vector<16x16x32xf32> -> vector<16x16x64xf32>
    %cst_3 = arith.constant 0.000000e+00 : f32
    %12 = vector.broadcast %cst_3 : f32 to vector<1x24x64xf32>
    %c0_4 = arith.constant 0 : index
    %c0_5 = arith.constant 0 : index
    %c0_6 = arith.constant 0 : index
    %13 = vector.load %arg6[%c0_4, %c0_5, %c0_6] : memref<18x24x64xf32, #tpu.memory_space<vmem>>, vector<1x24x64xf32>
    tpu.vector_store %arg6[%c0_4, %c0_5, %c0_6], %12 {strides = array<i32>} : memref<18x24x64xf32, #tpu.memory_space<vmem>>, vector<1x24x64xf32>,
    %cst_7 = arith.constant 0.000000e+00 : f32
    %14 = vector.broadcast %cst_7 : f32 to vector<1x24x64xf32>
    %c17 = arith.constant 17 : index
    %c0_8 = arith.constant 0 : index
    %c0_9 = arith.constant 0 : index
    %15 = vector.load %arg6[%c17, %c0_8, %c0_9] : memref<18x24x64xf32, #tpu.memory_space<vmem>>, vector<1x24x64xf32>
    tpu.vector_store %arg6[%c17, %c0_8, %c0_9], %14 {strides = array<i32>} : memref<18x24x64xf32, #tpu.memory_space<vmem>>, vector<1x24x64xf32>,
    %cst_10 = arith.constant 0.000000e+00 : f32
    %16 = vector.broadcast %cst_10 : f32 to vector<16x1x64xf32>
    %c1 = arith.constant 1 : index
    %c0_11 = arith.constant 0 : index
    %c0_12 = arith.constant 0 : index
    %17 = vector.load %arg6[%c1, %c0_11, %c0_12] : memref<18x24x64xf32, #tpu.memory_space<vmem>>, vector<16x1x64xf32>
    tpu.vector_store %arg6[%c1, %c0_11, %c0_12], %16 {strides = array<i32>} : memref<18x24x64xf32, #tpu.memory_space<vmem>>, vector<16x1x64xf32>,
    %cst_13 = arith.constant 0.000000e+00 : f32
    %18 = vector.broadcast %cst_13 : f32 to vector<16x1x64xf32>
    %c1_14 = arith.constant 1 : index
    %c17_15 = arith.constant 17 : index
    %c0_16 = arith.constant 0 : index
    %19 = vector.load %arg6[%c1_14, %c17_15, %c0_16] : memref<18x24x64xf32, #tpu.memory_space<vmem>>, vector<16x1x64xf32>
    tpu.vector_store %arg6[%c1_14, %c17_15, %c0_16], %18 {strides = array<i32>} : memref<18x24x64xf32, #tpu.memory_space<vmem>>, vector<16x1x64xf32>,
    %c1_17 = arith.constant 1 : index
    %c1_18 = arith.constant 1 : index
    %c0_19 = arith.constant 0 : index
    %20 = vector.load %arg6[%c1_17, %c1_18, %c0_19] : memref<18x24x64xf32, #tpu.memory_space<vmem>>, vector<16x16x64xf32>
    tpu.vector_store %arg6[%c1_17, %c1_18, %c0_19], %11 {strides = array<i32>} : memref<18x24x64xf32, #tpu.memory_space<vmem>>, vector<16x16x64xf32>,
    %cst_20 = arith.constant dense<0.000000e+00> : vector<64xf32>
    %21 = vector.multi_reduction <add>, %11, %cst_20 [0, 1] : vector<16x16x64xf32> to vector<64xf32>
    %22 = vector.shape_cast %21 : vector<64xf32> to vector<1x1x64xf32>
    %23 = vector.shape_cast %22 : vector<1x1x64xf32> to vector<1x1x64xf32>
    %24 = vector.broadcast %23 : vector<1x1x64xf32> to vector<16x16x64xf32>
    %c0_21 = arith.constant 0 : index
    %c0_22 = arith.constant 0 : index
    %25 = vector.load %arg2[%c0_21, %c0_22] : memref<9x64xf32, #tpu.memory_space<vmem>>, vector<9x64xf32>
    %26 = vector.extract_strided_slice %25 {offsets = [0, 0], sizes = [1, 64], strides = [1, 1]} : vector<9x64xf32> to vector<1x64xf32>
    %27 = vector.shape_cast %26 : vector<1x64xf32> to vector<64xf32>
    %28 = vector.shape_cast %27 : vector<64xf32> to vector<1x1x64xf32>
    %c0_23 = arith.constant 0 : index
    %c0_24 = arith.constant 0 : index
    %c0_25 = arith.constant 0 : index
    %29 = vector.load %arg6[%c0_23, %c0_24, %c0_25] : memref<18x24x64xf32, #tpu.memory_space<vmem>>, vector<16x16x64xf32>
    %30 = vector.broadcast %28 : vector<1x1x64xf32> to vector<16x16x64xf32>
    %31 = arith.mulf %30, %29 : vector<16x16x64xf32>
    %32 = arith.addf %24, %31 : vector<16x16x64xf32>
    %33 = vector.extract_strided_slice %25 {offsets = [1, 0], sizes = [1, 64], strides = [1, 1]} : vector<9x64xf32> to vector<1x64xf32>
    %34 = vector.shape_cast %33 : vector<1x64xf32> to vector<64xf32>
    %35 = vector.shape_cast %34 : vector<64xf32> to vector<1x1x64xf32>
    %c0_26 = arith.constant 0 : index
    %c1_27 = arith.constant 1 : index
    %c0_28 = arith.constant 0 : index
    %36 = vector.load %arg6[%c0_26, %c1_27, %c0_28] : memref<18x24x64xf32, #tpu.memory_space<vmem>>, vector<16x16x64xf32>
    %37 = vector.broadcast %35 : vector<1x1x64xf32> to vector<16x16x64xf32>
    %38 = arith.mulf %37, %36 : vector<16x16x64xf32>
    %39 = arith.addf %32, %38 : vector<16x16x64xf32>
    %40 = vector.extract_strided_slice %25 {offsets = [2, 0], sizes = [1, 64], strides = [1, 1]} : vector<9x64xf32> to vector<1x64xf32>
    %41 = vector.shape_cast %40 : vector<1x64xf32> to vector<64xf32>
    %42 = vector.shape_cast %41 : vector<64xf32> to vector<1x1x64xf32>
    %c0_29 = arith.constant 0 : index
    %c2 = arith.constant 2 : index
    %c0_30 = arith.constant 0 : index
    %43 = vector.load %arg6[%c0_29, %c2, %c0_30] : memref<18x24x64xf32, #tpu.memory_space<vmem>>, vector<16x16x64xf32>
    %44 = vector.broadcast %42 : vector<1x1x64xf32> to vector<16x16x64xf32>
    %45 = arith.mulf %44, %43 : vector<16x16x64xf32>
    %46 = arith.addf %39, %45 : vector<16x16x64xf32>
    %47 = vector.extract_strided_slice %25 {offsets = [3, 0], sizes = [1, 64], strides = [1, 1]} : vector<9x64xf32> to vector<1x64xf32>
    %48 = vector.shape_cast %47 : vector<1x64xf32> to vector<64xf32>
    %49 = vector.shape_cast %48 : vector<64xf32> to vector<1x1x64xf32>
    %c1_31 = arith.constant 1 : index
    %c0_32 = arith.constant 0 : index
    %c0_33 = arith.constant 0 : index
    %50 = vector.load %arg6[%c1_31, %c0_32, %c0_33] : memref<18x24x64xf32, #tpu.memory_space<vmem>>, vector<16x16x64xf32>
    %51 = vector.broadcast %49 : vector<1x1x64xf32> to vector<16x16x64xf32>
    %52 = arith.mulf %51, %50 : vector<16x16x64xf32>
    %53 = arith.addf %46, %52 : vector<16x16x64xf32>
    %54 = vector.extract_strided_slice %25 {offsets = [4, 0], sizes = [1, 64], strides = [1, 1]} : vector<9x64xf32> to vector<1x64xf32>
    %55 = vector.shape_cast %54 : vector<1x64xf32> to vector<64xf32>
    %56 = vector.shape_cast %55 : vector<64xf32> to vector<1x1x64xf32>
    %c1_34 = arith.constant 1 : index
    %c1_35 = arith.constant 1 : index
    %c0_36 = arith.constant 0 : index
    %57 = vector.load %arg6[%c1_34, %c1_35, %c0_36] : memref<18x24x64xf32, #tpu.memory_space<vmem>>, vector<16x16x64xf32>
    %58 = vector.broadcast %56 : vector<1x1x64xf32> to vector<16x16x64xf32>
    %59 = arith.mulf %58, %57 : vector<16x16x64xf32>
    %60 = arith.addf %53, %59 : vector<16x16x64xf32>
    %61 = vector.extract_strided_slice %25 {offsets = [5, 0], sizes = [1, 64], strides = [1, 1]} : vector<9x64xf32> to vector<1x64xf32>
    %62 = vector.shape_cast %61 : vector<1x64xf32> to vector<64xf32>
    %63 = vector.shape_cast %62 : vector<64xf32> to vector<1x1x64xf32>
    %c1_37 = arith.constant 1 : index
    %c2_38 = arith.constant 2 : index
    %c0_39 = arith.constant 0 : index
    %64 = vector.load %arg6[%c1_37, %c2_38, %c0_39] : memref<18x24x64xf32, #tpu.memory_space<vmem>>, vector<16x16x64xf32>
    %65 = vector.broadcast %63 : vector<1x1x64xf32> to vector<16x16x64xf32>
    %66 = arith.mulf %65, %64 : vector<16x16x64xf32>
    %67 = arith.addf %60, %66 : vector<16x16x64xf32>
    %68 = vector.extract_strided_slice %25 {offsets = [6, 0], sizes = [1, 64], strides = [1, 1]} : vector<9x64xf32> to vector<1x64xf32>
    %69 = vector.shape_cast %68 : vector<1x64xf32> to vector<64xf32>
    %70 = vector.shape_cast %69 : vector<64xf32> to vector<1x1x64xf32>
    %c2_40 = arith.constant 2 : index
    %c0_41 = arith.constant 0 : index
    %c0_42 = arith.constant 0 : index
    %71 = vector.load %arg6[%c2_40, %c0_41, %c0_42] : memref<18x24x64xf32, #tpu.memory_space<vmem>>, vector<16x16x64xf32>
    %72 = vector.broadcast %70 : vector<1x1x64xf32> to vector<16x16x64xf32>
    %73 = arith.mulf %72, %71 : vector<16x16x64xf32>
    %74 = arith.addf %67, %73 : vector<16x16x64xf32>
    %75 = vector.extract_strided_slice %25 {offsets = [7, 0], sizes = [1, 64], strides = [1, 1]} : vector<9x64xf32> to vector<1x64xf32>
    %76 = vector.shape_cast %75 : vector<1x64xf32> to vector<64xf32>
    %77 = vector.shape_cast %76 : vector<64xf32> to vector<1x1x64xf32>
    %c2_43 = arith.constant 2 : index
    %c1_44 = arith.constant 1 : index
    %c0_45 = arith.constant 0 : index
    %78 = vector.load %arg6[%c2_43, %c1_44, %c0_45] : memref<18x24x64xf32, #tpu.memory_space<vmem>>, vector<16x16x64xf32>
    %79 = vector.broadcast %77 : vector<1x1x64xf32> to vector<16x16x64xf32>
    %80 = arith.mulf %79, %78 : vector<16x16x64xf32>
    %81 = arith.addf %74, %80 : vector<16x16x64xf32>
    %82 = vector.extract_strided_slice %25 {offsets = [8, 0], sizes = [1, 64], strides = [1, 1]} : vector<9x64xf32> to vector<1x64xf32>
    %83 = vector.shape_cast %82 : vector<1x64xf32> to vector<64xf32>
    %84 = vector.shape_cast %83 : vector<64xf32> to vector<1x1x64xf32>
    %c2_46 = arith.constant 2 : index
    %c2_47 = arith.constant 2 : index
    %c0_48 = arith.constant 0 : index
    %85 = vector.load %arg6[%c2_46, %c2_47, %c0_48] : memref<18x24x64xf32, #tpu.memory_space<vmem>>, vector<16x16x64xf32>
    %86 = vector.broadcast %84 : vector<1x1x64xf32> to vector<16x16x64xf32>
    %87 = arith.mulf %86, %85 : vector<16x16x64xf32>
    %88 = arith.addf %81, %87 : vector<16x16x64xf32>
    %89 = vector.extract_strided_slice %88 {offsets = [0, 0, 0], sizes = [16, 16, 32], strides = [1, 1, 1]} : vector<16x16x64xf32> to vector<16x16x32xf32>
    %90 = vector.extract_strided_slice %88 {offsets = [0, 0, 32], sizes = [16, 16, 32], strides = [1, 1, 1]} : vector<16x16x64xf32> to vector<16x16x32xf32>
    %91 = arith.negf %2 : vector<16x16x32xf32>
    %92 = math.exp %91 : vector<16x16x32xf32>
    %cst_49 = arith.constant 1.000000e+00 : f32
    %93 = vector.broadcast %cst_49 : f32 to vector<16x16x32xf32>
    %94 = arith.addf %93, %92 : vector<16x16x32xf32>
    %95 = arith.divf %93, %94 : vector<16x16x32xf32>
    %96 = tpu.reciprocal %89 {approx = true} : vector<16x16x32xf32> -> vector<16x16x32xf32>
    %97 = arith.mulf %90, %96 : vector<16x16x32xf32>
    %98 = arith.mulf %95, %97 : vector<16x16x32xf32>
    %99 = vector.shape_cast %98 : vector<16x16x32xf32> to vector<256x32xf32>
    %100 = arith.truncf %99 : vector<256x32xf32> to vector<256x32xbf16>
    %c0_50 = arith.constant 0 : index
    %c0_51 = arith.constant 0 : index
    %101 = vector.load %arg3[%c0_50, %c0_51] : memref<32x4xbf16, #tpu.memory_space<vmem>>, vector<32x4xbf16>
    %cst_52 = arith.constant dense<0.000000e+00> : vector<256x4xf32>
    %102 = tpu.matmul %100, %101, %cst_52 {dimension_numbers = #tpu.dot_dimension_numbers<[1], [0], [0], [1], [0, 0, 1, 1], [], []>} : vector<256x32xbf16>, vector<32x4xbf16>, vector<256x4xf32> -> vector<256x4xf32>
    %c0_53 = arith.constant 0 : index
    %c0_54 = arith.constant 0 : index
    %103 = vector.load %arg4[%c0_53, %c0_54] : memref<1x4xf32, #tpu.memory_space<vmem>>, vector<1x4xf32>
    %104 = vector.broadcast %103 : vector<1x4xf32> to vector<256x4xf32>
    %105 = arith.addf %102, %104 : vector<256x4xf32>
    %106 = vector.shape_cast %105 : vector<256x4xf32> to vector<16x16x4xf32>
    %c0_55 = arith.constant 0 : index
    %c0_56 = arith.constant 0 : index
    %c0_57 = arith.constant 0 : index
    %c0_58 = arith.constant 0 : index
    %107 = vector.load %arg5[%c0_55, %c0_56, %c0_57, %c0_58] : memref<1x16x16x4xf32, #tpu.memory_space<vmem>>, vector<1x16x16x4xf32>
    %108 = vector.shape_cast %107 : vector<1x16x16x4xf32> to vector<16x16x4xf32>
    %109 = vector.shape_cast %106 : vector<16x16x4xf32> to vector<1x16x16x4xf32>
    tpu.vector_store %arg5[%c0_55, %c0_56, %c0_57, %c0_58], %109 {strides = array<i32>} : memref<1x16x16x4xf32, #tpu.memory_space<vmem>>, vector<1x16x16x4xf32>,
    return
  }
  func.func @transform_0(%arg0: i32) -> (i32, i32, i32, i32) {
    %c0_i32 = arith.constant 0 : i32
    %c0_i32_0 = arith.constant 0 : i32
    %c0_i32_1 = arith.constant 0 : i32
    %c0_i32_2 = arith.constant 0 : i32
    return %arg0, %c0_i32, %c0_i32_0, %c0_i32_1 : i32, i32, i32, i32
  }
  func.func @transform_1(%arg0: i32) -> (i32, i32) {
    %c0_i32 = arith.constant 0 : i32
    %c0_i32_0 = arith.constant 0 : i32
    %c0_i32_1 = arith.constant 0 : i32
    return %c0_i32, %c0_i32_0 : i32, i32
  }
  func.func @transform_2(%arg0: i32) -> (i32, i32) {
    %c0_i32 = arith.constant 0 : i32
    %c0_i32_0 = arith.constant 0 : i32
    %c0_i32_1 = arith.constant 0 : i32
    return %c0_i32, %c0_i32_0 : i32, i32
  }
  func.func @transform_3(%arg0: i32) -> (i32, i32) {
    %c0_i32 = arith.constant 0 : i32
    %c0_i32_0 = arith.constant 0 : i32
    %c0_i32_1 = arith.constant 0 : i32
    return %c0_i32, %c0_i32_0 : i32, i32
  }
  func.func @transform_4(%arg0: i32) -> (i32, i32, i32, i32) {
    %c0_i32 = arith.constant 0 : i32
    %c0_i32_0 = arith.constant 0 : i32
    %c0_i32_1 = arith.constant 0 : i32
    %c0_i32_2 = arith.constant 0 : i32
    return %arg0, %c0_i32, %c0_i32_0, %c0_i32_1 : i32, i32, i32, i32
  }
}

</mosaic_0001>

<llo_original>
// kernel: aft_conv_forward.2
$region0: #{aft_conv_forward.2}
  #allocation0 [shape = 'u32[]', space=smem, size = 0x4, offset = 0x4, fixed_abs, tag = 'smem constant byte address 0x4 - core index']
  #allocation1 [shape = 'u32[72,128]{1,0:T(1,128)}', space=vmem, size = 0x9000, scoped, tag = 'internal scratch']
  %s0 = inlined_call_operand.vmem [shape: bf16[512,4], index: 0, kind: input, shape index: {}]
  %s1 = inlined_call_operand.vmem [shape: bf16[4,96], index: 1, kind: input, shape index: {}]
  %s2 = inlined_call_operand.vmem [shape: f32[1,96], index: 2, kind: input, shape index: {}]
  %s3 = inlined_call_operand.vmem [shape: f32[512,96], index: 3, kind: output, shape index: {}]
  %s4 = sld [smem:[#allocation0]]
  $region45: #{aft_conv_forward.2} parent=0
    _
  %s6 = ssub.s32 1, %s4
  %s7 = scalar_select 0, %s6, %s4
  loop: start=0, step=1, limit=4
  $region2: #{aft_conv_forward.2} parent=0 // loop_pre_header
    _
  $region3: #{aft_conv_forward.2} parent=0 // loop_header
    %s9 = sphi 0, %s13
    %p10 = scmp.ge.s32.totalorder %s9, 4
    %s19 = sphi 0, %s21
    %s22 = sphi 0, %s19
    %s23 = sphi 0, %s22
    %s39 = sphi 0, %s23
    %s43 = sphi 0, %s43
    %s45 = sphi 0, %s43
    %s46 = sphi 0, %s45
    %s60 = sphi 0, %s46
    %s64 = sphi 0, %s64
    %s66 = sphi 0, %s64
    %s67 = sphi 0, %s66
    %s81 = sphi 0, %s67
    %s87 = sphi 0, %s89
    %s90 = sphi 0, %s87
    %s91 = sphi 0, %s90
    %s107 = sphi 0, %s91
  $region4: #{aft_conv_forward.2} parent=0 // loop_header_branch
    %12 = sbr.rel (%p10) target = $region8
  $region5: #{aft_conv_forward.2} parent=0 // loop_body
    %s14 = ssub.s32 %s9, 1
    %s15 = ssub.s32 %s9, 2
    %s16 = sadd.s32 %s9, 1
    %s17 = ssub.s32 %s9, %s16
    %p18 = scmp.eq.s32.totalorder %s17, 0
    %s20 = sadd.s32 %s19, 1
    %s21 = scalar_select %p18, %s19, %s20
    %p24 = pneg %p18
    %p25 = scmp.eq.s32.totalorder %s9, 1
    %p26 = por %p24, %p25
    %p27 = scmp.ne.s32.totalorder %s19, %s22
    %p28 = scmp.eq.s32.totalorder %s9, 0
    %p29 = por %p27, %p28
    %p30 = scmp.ne.s32.totalorder %s19, %s22
    %p31 = scmp.eq.s32.totalorder %s14, 1
    %p32 = por %p30, %p31
    %p33 = scmp.ne.s32.totalorder %s22, %s23
    %p34 = scmp.eq.s32.totalorder %s14, 0
    %p35 = por %p33, %p34
    %p36 = scmp.ne.s32.totalorder %s22, %s23
    %p37 = scmp.eq.s32.totalorder %s15, 1
    %p38 = por %p36, %p37
    %p40 = scmp.ne.s32.totalorder %s23, %s39
    %p41 = scmp.eq.s32.totalorder %s15, 0
    %p42 = por %p40, %p41
    %s44 = sadd.s32 %s43, 1
    %p47 = scmp.eq.s32.totalorder %s9, 1
    %p48 = scmp.ne.s32.totalorder %s43, %s45
    %p49 = scmp.eq.s32.totalorder %s9, 0
    %p50 = por %p48, %p49
    %p51 = scmp.ne.s32.totalorder %s43, %s45
    %p52 = scmp.eq.s32.totalorder %s14, 1
    %p53 = por %p51, %p52
    %p54 = scmp.ne.s32.totalorder %s45, %s46
    %p55 = scmp.eq.s32.totalorder %s14, 0
    %p56 = por %p54, %p55
    %p57 = scmp.ne.s32.totalorder %s45, %s46
    %p58 = scmp.eq.s32.totalorder %s15, 1
    %p59 = por %p57, %p58
    %p61 = scmp.ne.s32.totalorder %s46, %s60
    %p62 = scmp.eq.s32.totalorder %s15, 0
    %p63 = por %p61, %p62
    %s65 = sadd.s32 %s64, 1
    %p68 = scmp.eq.s32.totalorder %s9, 1
    %p69 = scmp.ne.s32.totalorder %s64, %s66
    %p70 = scmp.eq.s32.totalorder %s9, 0
    %p71 = por %p69, %p70
    %p72 = scmp.ne.s32.totalorder %s64, %s66
    %p73 = scmp.eq.s32.totalorder %s14, 1
    %p74 = por %p72, %p73
    %p75 = scmp.ne.s32.totalorder %s66, %s67
    %p76 = scmp.eq.s32.totalorder %s14, 0
    %p77 = por %p75, %p76
    %p78 = scmp.ne.s32.totalorder %s66, %s67
    %p79 = scmp.eq.s32.totalorder %s15, 1
    %p80 = por %p78, %p79
    %p82 = scmp.ne.s32.totalorder %s67, %s81
    %p83 = scmp.eq.s32.totalorder %s15, 0
    %p84 = por %p82, %p83
    %s85 = ssub.s32 %s9, %s16
    %p86 = scmp.eq.s32.totalorder %s85, 0
    %s88 = sadd.s32 %s87, 1
    %s89 = scalar_select %p86, %s87, %s88
    %p92 = pneg %p86
    %p93 = scmp.eq.s32.totalorder %s9, 1
    %p94 = por %p92, %p93
    %p95 = scmp.ne.s32.totalorder %s87, %s90
    %p96 = scmp.eq.s32.totalorder %s9, 0
    %p97 = por %p95, %p96
    %p98 = scmp.ne.s32.totalorder %s87, %s90
    %p99 = scmp.eq.s32.totalorder %s14, 1
    %p100 = por %p98, %p99
    %p101 = scmp.ne.s32.totalorder %s90, %s91
    %p102 = scmp.eq.s32.totalorder %s14, 0
    %p103 = por %p101, %p102
    %p104 = scmp.ne.s32.totalorder %s90, %s91
    %p105 = scmp.eq.s32.totalorder %s15, 1
    %p106 = por %p104, %p105
    %p108 = scmp.ne.s32.totalorder %s91, %s107
    %p109 = scmp.eq.s32.totalorder %s15, 0
    %p110 = por %p108, %p109
    %p111 = scmp.le.s32.totalorder 1, %s9
    %p112 = scmp.lt.s32.totalorder %s9, 3
    %p113 = pnand %p111, %p112
    %p114 = pneg %p113
    // Predicated region
    $region9: #{aft_conv_forward.2} parent=5 // pred_check
      _
    $region10: #{aft_conv_forward.2} parent=5 // pred_check_branch
      %116 = sbr.rel (%p113) target = $region12
    $region11: #{aft_conv_forward.2} parent=5 // pred_region
      %s117 = ssub.s32 %s9, 1
      // Predicated region
      $region13: #{aft_conv_forward.2} parent=11 // pred_check
        %p118 = pneg %p56
      $region14: #{aft_conv_forward.2} parent=11 // pred_check_branch
        %120 = sbr.rel (%p118) target = $region16
      $region15: #{aft_conv_forward.2} parent=11 // pred_region
        _
      $region16: #{aft_conv_forward.2} parent=11 // pred_fallthru
        _
      // Predicated region
      $region17: #{aft_conv_forward.2} parent=11 // pred_check
        %p121 = pneg %p77
      $region18: #{aft_conv_forward.2} parent=11 // pred_check_branch
        %123 = sbr.rel (%p121) target = $region20
      $region19: #{aft_conv_forward.2} parent=11 // pred_region
        _
      $region20: #{aft_conv_forward.2} parent=11 // pred_fallthru
        _
    $region12: #{aft_conv_forward.2} parent=5 // pred_fallthru
      _
    %p124 = scmp.lt.s32.totalorder %s9, 2
    // Predicated region
    $region21: #{aft_conv_forward.2} parent=5 // pred_check
      %p125 = pneg %p124
    $region22: #{aft_conv_forward.2} parent=5 // pred_check_branch
      %127 = sbr.rel (%p125) target = $region24
    $region23: #{aft_conv_forward.2} parent=5 // pred_region
      // Predicated region
      $region25: #{aft_conv_forward.2} parent=23 // pred_check
        %p128 = pneg %p29
      $region26: #{aft_conv_forward.2} parent=23 // pred_check_branch
        %130 = sbr.rel (%p128) target = $region28
      $region27: #{aft_conv_forward.2} parent=23 // pred_region
        %s131 = smul.u32 32, %s9
        %p132 = scmp.lt.s32.totalorder %s131, 63
        %s133 = scalar_select %p132, %s131, 63
        %s134 = smul.addr %s133, 4
        %s135 = scalar_lea.vmem %s0, %s134
        %s136 = smul.u32 32, %s9
      $region28: #{aft_conv_forward.2} parent=23 // pred_fallthru
        _
    $region24: #{aft_conv_forward.2} parent=5 // pred_fallthru
      _
    %p137 = scmp.le.s32.totalorder 1, %s9
    %p138 = scmp.lt.s32.totalorder %s9, 3
    %p139 = pnand %p137, %p138
    %p140 = pneg %p139
    // Predicated region
    $region29: #{aft_conv_forward.2} parent=5 // pred_check
      _
    $region30: #{aft_conv_forward.2} parent=5 // pred_check_branch
      %142 = sbr.rel (%p139) target = $region32
    $region31: #{aft_conv_forward.2} parent=5 // pred_region
      %s143 = ssub.s32 %s9, 1
      %s144 = smul.u32 32, %s14
      %p145 = scmp.lt.s32.totalorder %s144, 63
      %s146 = scalar_select %p145, %s144, 63
      %s147 = smul.addr %s146, 4
      %s148 = scalar_lea.vmem %s0, %s147
      %p149 = pneg %p35
      %p150 = pneg %p32
      %p151 = pneg %p56
      %p152 = pneg %p53
      %p153 = pneg %p77
      %p154 = pneg %p74
      %p155 = pneg %p103
      %p156 = pneg %p100
      %s157 = smul.u32 32, %s14
      %p158 = scmp.lt.s32.totalorder %s157, 63
      %s159 = scalar_select %p158, %s157, 63
      %s160 = smul.addr %s159, 8
      %s161 = scalar_lea.vmem %s3, %s160
      %s162 = smul.u32 32, %s14
      %p163 = scmp.lt.s32.totalorder %s162, 63
      %s164 = scalar_select %p163, %s162, 63
      %s165 = smul.addr %s164, 4
      %s166 = scalar_lea.vmem %s0, %s165
      %s167 = smul.u32 32, %s14
      %s168 = smul.u32 32, %s14
      %p169 = scmp.lt.s32.totalorder %s168, 63
      %s170 = scalar_select %p169, %s168, 63
      %s171 = smul.addr %s170, 8
      %s172 = scalar_lea.vmem %s3, %s171
      %s173 = smul.u32 32, %s14
      %v175 = vld [vmem:[%s166] sm:$0xf]
      %v176 = vld [vmem:[%s166 + $0x4] sm:$0xf]
      %v177 = vld [vmem:[%s166 + $0x8] sm:$0xf]
      %v178 = vld [vmem:[%s166 + $0xc] sm:$0xf]
      %v179 = vld [vmem:[%s166 + $0x10] sm:$0xf]
      %v180 = vld [vmem:[%s166 + $0x14] sm:$0xf]
      %v181 = vld [vmem:[%s166 + $0x18] sm:$0xf]
      %v182 = vld [vmem:[%s166 + $0x1c] sm:$0xf]
      %v183 = vld [vmem:[%s166 + $0x20] sm:$0xf]
      %v184 = vld [vmem:[%s166 + $0x24] sm:$0xf]
      %v185 = vld [vmem:[%s166 + $0x28] sm:$0xf]
      %v186 = vld [vmem:[%s166 + $0x2c] sm:$0xf]
      %v187 = vld [vmem:[%s166 + $0x30] sm:$0xf]
      %v188 = vld [vmem:[%s166 + $0x34] sm:$0xf]
      %v189 = vld [vmem:[%s166 + $0x38] sm:$0xf]
      %v190 = vld [vmem:[%s166 + $0x3c] sm:$0xf]
      %v191 = vld [vmem:[%s166 + $0x40] sm:$0xf]
      %v192 = vld [vmem:[%s166 + $0x44] sm:$0xf]
      %v193 = vld [vmem:[%s166 + $0x48] sm:$0xf]
      %v194 = vld [vmem:[%s166 + $0x4c] sm:$0xf]
      %v195 = vld [vmem:[%s166 + $0x50] sm:$0xf]
      %v196 = vld [vmem:[%s166 + $0x54] sm:$0xf]
      %v197 = vld [vmem:[%s166 + $0x58] sm:$0xf]
      %v198 = vld [vmem:[%s166 + $0x5c] sm:$0xf]
      %v199 = vld [vmem:[%s166 + $0x60] sm:$0xf]
      %v200 = vld [vmem:[%s166 + $0x64] sm:$0xf]
      %v201 = vld [vmem:[%s166 + $0x68] sm:$0xf]
      %v202 = vld [vmem:[%s166 + $0x6c] sm:$0xf]
      %v203 = vld [vmem:[%s166 + $0x70] sm:$0xf]
      %v204 = vld [vmem:[%s166 + $0x74] sm:$0xf]
      %v205 = vld [vmem:[%s166 + $0x78] sm:$0xf]
      %v206 = vld [vmem:[%s166 + $0x7c] sm:$0xf]
      %v207 = vld [vmem:[%s1] sm:$0x3]
      %v208 = vld [vmem:[%s2] sm:$0x1]
      %v210 = vperm.slane %v208, 0
      %v244 = vunpack.c.l.b16 %v175
      %v245 = vunpack.c.l.b16 %v176
      %v246 = vunpack.c.l.b16 %v177
      %v247 = vunpack.c.l.b16 %v178
      %v248 = vunpack.c.l.b16 %v179
      %v249 = vunpack.c.l.b16 %v180
      %v250 = vunpack.c.l.b16 %v181
      %v251 = vunpack.c.l.b16 %v182
      %v252 = vunpack.c.l.b16 %v183
      %v253 = vunpack.c.l.b16 %v184
      %v254 = vunpack.c.l.b16 %v185
      %v255 = vunpack.c.l.b16 %v186
      %v256 = vunpack.c.l.b16 %v187
      %v257 = vunpack.c.l.b16 %v188
      %v258 = vunpack.c.l.b16 %v189
      %v259 = vunpack.c.l.b16 %v190
      %v260 = vunpack.c.l.b16 %v191
      %v261 = vunpack.c.l.b16 %v192
      %v262 = vunpack.c.l.b16 %v193
      %v263 = vunpack.c.l.b16 %v194
      %v264 = vunpack.c.l.b16 %v195
      %v265 = vunpack.c.l.b16 %v196
      %v266 = vunpack.c.l.b16 %v197
      %v267 = vunpack.c.l.b16 %v198
      %v268 = vunpack.c.l.b16 %v199
      %v269 = vunpack.c.l.b16 %v200
      %v270 = vunpack.c.l.b16 %v201
      %v271 = vunpack.c.l.b16 %v202
      %v272 = vunpack.c.l.b16 %v203
      %v273 = vunpack.c.l.b16 %v204
      %v274 = vunpack.c.l.b16 %v205
      %v275 = vunpack.c.l.b16 %v206
      %v276 = vpack.c.b16 %v245, %v244
      %v277 = vpack.c.b16 %v247, %v246
      %v278 = vpack.c.b16 %v249, %v248
      %v279 = vpack.c.b16 %v251, %v250
      %v280 = vpack.c.b16 %v253, %v252
      %v281 = vpack.c.b16 %v255, %v254
      %v282 = vpack.c.b16 %v257, %v256
      %v283 = vpack.c.b16 %v259, %v258
      %v284 = vpack.c.b16 %v261, %v260
      %v285 = vpack.c.b16 %v263, %v262
      %v286 = vpack.c.b16 %v265, %v264
      %v287 = vpack.c.b16 %v267, %v266
      %v288 = vpack.c.b16 %v269, %v268
      %v289 = vpack.c.b16 %v271, %v270
      %v290 = vpack.c.b16 %v273, %v272
      %v291 = vpack.c.b16 %v275, %v274
      %vm292 = vcmask 31744
      %v294 = vsel %vm292, %v276, 0
      %v297 = vsel %vm292, %v277, 0
      %v300 = vsel %vm292, %v278, 0
      %v303 = vsel %vm292, %v279, 0
      %v306 = vsel %vm292, %v280, 0
      %v309 = vsel %vm292, %v281, 0
      %v312 = vsel %vm292, %v282, 0
      %v315 = vsel %vm292, %v283, 0
      %v318 = vsel %vm292, %v284, 0
      %v321 = vsel %vm292, %v285, 0
      %v324 = vsel %vm292, %v286, 0
      %v327 = vsel %vm292, %v287, 0
      %v330 = vsel %vm292, %v288, 0
      %v333 = vsel %vm292, %v289, 0
      %v336 = vsel %vm292, %v290, 0
      %v339 = vsel %vm292, %v291, 0
      %vm341 = vcmask 1041408
      %v343 = vsel %vm341, %v207, 0
      %345 = vmatpush.bf16.msra.mxu0 0
      %346 = vmatpush.bf16.msra.mxu0 0
      %347 = vmatpush.bf16.msra.mxu0 0
      %348 = vmatpush.bf16.msra.mxu0 0
      %349 = vmatpush.bf16.msra.mxu0 0
      %350 = vmatpush.bf16.msra.mxu0 0
      %351 = vmatpush.bf16.msra.mxu0 0
      %352 = vmatpush.bf16.msra.mxu0 %v343
      %353 = vmatmul.bf16.gmra.mxu0 %v294
      %v354 = vpop.f32.mrf.mxu0
      %v355 = vadd.f32 %v210, %v354
      %v356 = vpop.f32.mrf.mxu0
      %v357 = vadd.f32 %v210, %v356
      %358 = vmatmul.bf16.gmra.mxu0 %v297
      %v359 = vpop.f32.mrf.mxu0
      %v360 = vadd.f32 %v210, %v359
      %v361 = vpop.f32.mrf.mxu0
      %v362 = vadd.f32 %v210, %v361
      %363 = vmatmul.bf16.gmra.mxu0 %v300
      %v364 = vpop.f32.mrf.mxu0
      %v365 = vadd.f32 %v210, %v364
      %v366 = vpop.f32.mrf.mxu0
      %v367 = vadd.f32 %v210, %v366
      %368 = vmatmul.bf16.gmra.mxu0 %v303
      %v369 = vpop.f32.mrf.mxu0
      %v370 = vadd.f32 %v210, %v369
      %v371 = vpop.f32.mrf.mxu0
      %v372 = vadd.f32 %v210, %v371
      %373 = vmatmul.bf16.gmra.mxu0 %v306
      %v374 = vpop.f32.mrf.mxu0
      %v375 = vadd.f32 %v210, %v374
      %v376 = vpop.f32.mrf.mxu0
      %v377 = vadd.f32 %v210, %v376
      %378 = vmatmul.bf16.gmra.mxu0 %v309
      %v379 = vpop.f32.mrf.mxu0
      %v380 = vadd.f32 %v210, %v379
      %v381 = vpop.f32.mrf.mxu0
      %v382 = vadd.f32 %v210, %v381
      %383 = vmatmul.bf16.gmra.mxu0 %v312
      %v384 = vpop.f32.mrf.mxu0
      %v385 = vadd.f32 %v210, %v384
      %v386 = vpop.f32.mrf.mxu0
      %v387 = vadd.f32 %v210, %v386
      %388 = vmatmul.bf16.gmra.mxu0 %v315
      %v389 = vpop.f32.mrf.mxu0
      %v390 = vadd.f32 %v210, %v389
      %v391 = vpop.f32.mrf.mxu0
      %v392 = vadd.f32 %v210, %v391
      %393 = vmatmul.bf16.gmra.mxu0 %v318
      %v394 = vpop.f32.mrf.mxu0
      %v395 = vadd.f32 %v210, %v394
      %v396 = vpop.f32.mrf.mxu0
      %v397 = vadd.f32 %v210, %v396
      %398 = vmatmul.bf16.gmra.mxu0 %v321
      %v399 = vpop.f32.mrf.mxu0
      %v400 = vadd.f32 %v210, %v399
      %v401 = vpop.f32.mrf.mxu0
      %v402 = vadd.f32 %v210, %v401
      %403 = vmatmul.bf16.gmra.mxu0 %v324
      %v404 = vpop.f32.mrf.mxu0
      %v405 = vadd.f32 %v210, %v404
      %v406 = vpop.f32.mrf.mxu0
      %v407 = vadd.f32 %v210, %v406
      %408 = vmatmul.bf16.gmra.mxu0 %v327
      %v409 = vpop.f32.mrf.mxu0
      %v410 = vadd.f32 %v210, %v409
      %v411 = vpop.f32.mrf.mxu0
      %v412 = vadd.f32 %v210, %v411
      %413 = vmatmul.bf16.gmra.mxu0 %v330
      %v414 = vpop.f32.mrf.mxu0
      %v415 = vadd.f32 %v210, %v414
      %v416 = vpop.f32.mrf.mxu0
      %v417 = vadd.f32 %v210, %v416
      %418 = vmatmul.bf16.gmra.mxu0 %v333
      %v419 = vpop.f32.mrf.mxu0
      %v420 = vadd.f32 %v210, %v419
      %v421 = vpop.f32.mrf.mxu0
      %v422 = vadd.f32 %v210, %v421
      %423 = vmatmul.bf16.gmra.mxu0 %v336
      %v424 = vpop.f32.mrf.mxu0
      %v425 = vadd.f32 %v210, %v424
      %v426 = vpop.f32.mrf.mxu0
      %v427 = vadd.f32 %v210, %v426
      %428 = vmatmul.bf16.gmra.mxu0 %v339
      %v429 = vpop.f32.mrf.mxu0
      %v430 = vadd.f32 %v210, %v429
      %v431 = vpop.f32.mrf.mxu0
      %v432 = vadd.f32 %v210, %v431
      %433 = vdwg.mxu0
      %vm434 = vcmask 785408
      %435 = vst.msk [vmem:[%s172] sm:$0xff] %vm434, %v355
      %436 = vst.msk [vmem:[%s172 + $0x8] sm:$0xff] %vm434, %v357
      %437 = vst.msk [vmem:[%s172 + $0x10] sm:$0xff] %vm434, %v360
      %438 = vst.msk [vmem:[%s172 + $0x18] sm:$0xff] %vm434, %v362
      %439 = vst.msk [vmem:[%s172 + $0x20] sm:$0xff] %vm434, %v365
      %440 = vst.msk [vmem:[%s172 + $0x28] sm:$0xff] %vm434, %v367
      %441 = vst.msk [vmem:[%s172 + $0x30] sm:$0xff] %vm434, %v370
      %442 = vst.msk [vmem:[%s172 + $0x38] sm:$0xff] %vm434, %v372
      %443 = vst.msk [vmem:[%s172 + $0x40] sm:$0xff] %vm434, %v375
      %444 = vst.msk [vmem:[%s172 + $0x48] sm:$0xff] %vm434, %v377
      %445 = vst.msk [vmem:[%s172 + $0x50] sm:$0xff] %vm434, %v380
      %446 = vst.msk [vmem:[%s172 + $0x58] sm:$0xff] %vm434, %v382
      %447 = vst.msk [vmem:[%s172 + $0x60] sm:$0xff] %vm434, %v385
      %448 = vst.msk [vmem:[%s172 + $0x68] sm:$0xff] %vm434, %v387
      %449 = vst.msk [vmem:[%s172 + $0x70] sm:$0xff] %vm434, %v390
      %450 = vst.msk [vmem:[%s172 + $0x78] sm:$0xff] %vm434, %v392
      %451 = vst.msk [vmem:[%s172 + $0x80] sm:$0xff] %vm434, %v395
      %452 = vst.msk [vmem:[%s172 + $0x88] sm:$0xff] %vm434, %v397
      %453 = vst.msk [vmem:[%s172 + $0x90] sm:$0xff] %vm434, %v400
      %454 = vst.msk [vmem:[%s172 + $0x98] sm:$0xff] %vm434, %v402
      %455 = vst.msk [vmem:[%s172 + $0xa0] sm:$0xff] %vm434, %v405
      %456 = vst.msk [vmem:[%s172 + $0xa8] sm:$0xff] %vm434, %v407
      %457 = vst.msk [vmem:[%s172 + $0xb0] sm:$0xff] %vm434, %v410
      %458 = vst.msk [vmem:[%s172 + $0xb8] sm:$0xff] %vm434, %v412
      %459 = vst.msk [vmem:[%s172 + $0xc0] sm:$0xff] %vm434, %v415
      %460 = vst.msk [vmem:[%s172 + $0xc8] sm:$0xff] %vm434, %v417
      %461 = vst.msk [vmem:[%s172 + $0xd0] sm:$0xff] %vm434, %v420
      %462 = vst.msk [vmem:[%s172 + $0xd8] sm:$0xff] %vm434, %v422
      %463 = vst.msk [vmem:[%s172 + $0xe0] sm:$0xff] %vm434, %v425
      %464 = vst.msk [vmem:[%s172 + $0xe8] sm:$0xff] %vm434, %v427
      %465 = vst.msk [vmem:[%s172 + $0xf0] sm:$0xff] %vm434, %v430
      %466 = vst.msk [vmem:[%s172 + $0xf8] sm:$0xff] %vm434, %v432
      %s467 = smul.u32 32, %s14
      %p468 = scmp.lt.s32.totalorder %s467, 63
      %s469 = scalar_select %p468, %s467, 63
      %s470 = smul.addr %s469, 8
      %s471 = scalar_lea.vmem %s3, %s470
      // Predicated region
      $region33: #{aft_conv_forward.2} parent=31 // pred_check
        %p472 = pneg %p100
      $region34: #{aft_conv_forward.2} parent=31 // pred_check_branch
        %474 = sbr.rel (%p472) target = $region36
      $region35: #{aft_conv_forward.2} parent=31 // pred_region
        %s475 = smul.u32 32, %s14
      $region36: #{aft_conv_forward.2} parent=31 // pred_fallthru
        _
    $region32: #{aft_conv_forward.2} parent=5 // pred_fallthru
      _
    %p476 = scmp.le.s32.totalorder 2, %s9
    // Predicated region
    $region37: #{aft_conv_forward.2} parent=5 // pred_check
      %p477 = pneg %p476
    $region38: #{aft_conv_forward.2} parent=5 // pred_check_branch
      %479 = sbr.rel (%p477) target = $region40
    $region39: #{aft_conv_forward.2} parent=5 // pred_region
      %s480 = ssub.s32 %s9, 2
      // Predicated region
      $region41: #{aft_conv_forward.2} parent=39 // pred_check
        %p481 = pneg %p106
      $region42: #{aft_conv_forward.2} parent=39 // pred_check_branch
        %483 = sbr.rel (%p481) target = $region44
      $region43: #{aft_conv_forward.2} parent=39 // pred_region
        %s484 = smul.u32 32, %s15
        %p485 = scmp.lt.s32.totalorder %s484, 63
        %s486 = scalar_select %p485, %s484, 63
        %s487 = smul.addr %s486, 8
        %s488 = scalar_lea.vmem %s3, %s487
      $region44: #{aft_conv_forward.2} parent=39 // pred_fallthru
        _
    $region40: #{aft_conv_forward.2} parent=5 // pred_fallthru
      _
  $region6: #{aft_conv_forward.2} parent=0 // loop_footer
    %s13 = sadd.s32 1, %s9
  $region7: #{aft_conv_forward.2} parent=0 // loop_footer_branch
    %8 = sbr.rel target = $region3
  $region8: #{aft_conv_forward.2} parent=0 // loop_exit
    _

// kernel: aft_conv_forward.3
$region0: #{aft_conv_forward.3}
  #allocation0 [shape = 'u32[]', space=smem, size = 0x4, offset = 0x4, fixed_abs, tag = 'smem constant byte address 0x4 - core index']
  #allocation1 [shape = 'u32[72,128]{1,0:T(1,128)}', space=vmem, size = 0x9000, scoped, tag = 'internal scratch']
  #allocation2 [shape = 'f32[18,24,64]{2,1,0:T(8,128)}', space=vmem, size = 0x36000, scoped, tag = 'scratch operand']
  %s0 = inlined_call_operand.vmem [shape: f32[2,16,16,96], index: 0, kind: input, shape index: {}]
  %s1 = inlined_call_operand.vmem [shape: f32[9,64], index: 1, kind: input, shape index: {}]
  %s2 = inlined_call_operand.vmem [shape: bf16[32,4], index: 2, kind: input, shape index: {}]
  %s3 = inlined_call_operand.vmem [shape: f32[1,4], index: 3, kind: input, shape index: {}]
  %s4 = inlined_call_operand.vmem [shape: f32[2,16,16,4], index: 4, kind: output, shape index: {}]
  %s5 = sld [smem:[#allocation0]]
  $region49: #{aft_conv_forward.3} parent=0
    _
  %s7 = ssub.s32 1, %s5
  %s8 = scalar_select 0, %s7, %s5
  loop: start=0, step=1, limit=4
  $region2: #{aft_conv_forward.3} parent=0 // loop_pre_header
    _
  $region3: #{aft_conv_forward.3} parent=0 // loop_header
    %s10 = sphi 0, %s14
    %p11 = scmp.ge.s32.totalorder %s10, 4
    %s20 = sphi 0, %s22
    %s23 = sphi 0, %s20
    %s24 = sphi 0, %s23
    %s40 = sphi 0, %s24
    %s44 = sphi 0, %s44
    %s46 = sphi 0, %s44
    %s47 = sphi 0, %s46
    %s61 = sphi 0, %s47
    %s65 = sphi 0, %s65
    %s67 = sphi 0, %s65
    %s68 = sphi 0, %s67
    %s82 = sphi 0, %s68
    %s86 = sphi 0, %s86
    %s88 = sphi 0, %s86
    %s89 = sphi 0, %s88
    %s103 = sphi 0, %s89
    %s109 = sphi 0, %s111
    %s112 = sphi 0, %s109
    %s113 = sphi 0, %s112
    %s129 = sphi 0, %s113
  $region4: #{aft_conv_forward.3} parent=0 // loop_header_branch
    %13 = sbr.rel (%p11) target = $region8
  $region5: #{aft_conv_forward.3} parent=0 // loop_body
    %s15 = ssub.s32 %s10, 1
    %s16 = ssub.s32 %s10, 2
    %s17 = sadd.s32 %s10, 1
    %s18 = ssub.s32 %s10, %s17
    %p19 = scmp.eq.s32.totalorder %s18, 0
    %s21 = sadd.s32 %s20, 1
    %s22 = scalar_select %p19, %s20, %s21
    %p25 = pneg %p19
    %p26 = scmp.eq.s32.totalorder %s10, 1
    %p27 = por %p25, %p26
    %p28 = scmp.ne.s32.totalorder %s20, %s23
    %p29 = scmp.eq.s32.totalorder %s10, 0
    %p30 = por %p28, %p29
    %p31 = scmp.ne.s32.totalorder %s20, %s23
    %p32 = scmp.eq.s32.totalorder %s15, 1
    %p33 = por %p31, %p32
    %p34 = scmp.ne.s32.totalorder %s23, %s24
    %p35 = scmp.eq.s32.totalorder %s15, 0
    %p36 = por %p34, %p35
    %p37 = scmp.ne.s32.totalorder %s23, %s24
    %p38 = scmp.eq.s32.totalorder %s16, 1
    %p39 = por %p37, %p38
    %p41 = scmp.ne.s32.totalorder %s24, %s40
    %p42 = scmp.eq.s32.totalorder %s16, 0
    %p43 = por %p41, %p42
    %s45 = sadd.s32 %s44, 1
    %p48 = scmp.eq.s32.totalorder %s10, 1
    %p49 = scmp.ne.s32.totalorder %s44, %s46
    %p50 = scmp.eq.s32.totalorder %s10, 0
    %p51 = por %p49, %p50
    %p52 = scmp.ne.s32.totalorder %s44, %s46
    %p53 = scmp.eq.s32.totalorder %s15, 1
    %p54 = por %p52, %p53
    %p55 = scmp.ne.s32.totalorder %s46, %s47
    %p56 = scmp.eq.s32.totalorder %s15, 0
    %p57 = por %p55, %p56
    %p58 = scmp.ne.s32.totalorder %s46, %s47
    %p59 = scmp.eq.s32.totalorder %s16, 1
    %p60 = por %p58, %p59
    %p62 = scmp.ne.s32.totalorder %s47, %s61
    %p63 = scmp.eq.s32.totalorder %s16, 0
    %p64 = por %p62, %p63
    %s66 = sadd.s32 %s65, 1
    %p69 = scmp.eq.s32.totalorder %s10, 1
    %p70 = scmp.ne.s32.totalorder %s65, %s67
    %p71 = scmp.eq.s32.totalorder %s10, 0
    %p72 = por %p70, %p71
    %p73 = scmp.ne.s32.totalorder %s65, %s67
    %p74 = scmp.eq.s32.totalorder %s15, 1
    %p75 = por %p73, %p74
    %p76 = scmp.ne.s32.totalorder %s67, %s68
    %p77 = scmp.eq.s32.totalorder %s15, 0
    %p78 = por %p76, %p77
    %p79 = scmp.ne.s32.totalorder %s67, %s68
    %p80 = scmp.eq.s32.totalorder %s16, 1
    %p81 = por %p79, %p80
    %p83 = scmp.ne.s32.totalorder %s68, %s82
    %p84 = scmp.eq.s32.totalorder %s16, 0
    %p85 = por %p83, %p84
    %s87 = sadd.s32 %s86, 1
    %p90 = scmp.eq.s32.totalorder %s10, 1
    %p91 = scmp.ne.s32.totalorder %s86, %s88
    %p92 = scmp.eq.s32.totalorder %s10, 0
    %p93 = por %p91, %p92
    %p94 = scmp.ne.s32.totalorder %s86, %s88
    %p95 = scmp.eq.s32.totalorder %s15, 1
    %p96 = por %p94, %p95
    %p97 = scmp.ne.s32.totalorder %s88, %s89
    %p98 = scmp.eq.s32.totalorder %s15, 0
    %p99 = por %p97, %p98
    %p100 = scmp.ne.s32.totalorder %s88, %s89
    %p101 = scmp.eq.s32.totalorder %s16, 1
    %p102 = por %p100, %p101
    %p104 = scmp.ne.s32.totalorder %s89, %s103
    %p105 = scmp.eq.s32.totalorder %s16, 0
    %p106 = por %p104, %p105
    %s107 = ssub.s32 %s10, %s17
    %p108 = scmp.eq.s32.totalorder %s107, 0
    %s110 = sadd.s32 %s109, 1
    %s111 = scalar_select %p108, %s109, %s110
    %p114 = pneg %p108
    %p115 = scmp.eq.s32.totalorder %s10, 1
    %p116 = por %p114, %p115
    %p117 = scmp.ne.s32.totalorder %s109, %s112
    %p118 = scmp.eq.s32.totalorder %s10, 0
    %p119 = por %p117, %p118
    %p120 = scmp.ne.s32.totalorder %s109, %s112
    %p121 = scmp.eq.s32.totalorder %s15, 1
    %p122 = por %p120, %p121
    %p123 = scmp.ne.s32.totalorder %s112, %s113
    %p124 = scmp.eq.s32.totalorder %s15, 0
    %p125 = por %p123, %p124
    %p126 = scmp.ne.s32.totalorder %s112, %s113
    %p127 = scmp.eq.s32.totalorder %s16, 1
    %p128 = por %p126, %p127
    %p130 = scmp.ne.s32.totalorder %s113, %s129
    %p131 = scmp.eq.s32.totalorder %s16, 0
    %p132 = por %p130, %p131
    %p133 = scmp.le.s32.totalorder 1, %s10
    %p134 = scmp.lt.s32.totalorder %s10, 3
    %p135 = pnand %p133, %p134
    %p136 = pneg %p135
    // Predicated region
    $region9: #{aft_conv_forward.3} parent=5 // pred_check
      _
    $region10: #{aft_conv_forward.3} parent=5 // pred_check_branch
      %138 = sbr.rel (%p135) target = $region12
    $region11: #{aft_conv_forward.3} parent=5 // pred_region
      %s139 = ssub.s32 %s10, 1
      // Predicated region
      $region13: #{aft_conv_forward.3} parent=11 // pred_check
        %p140 = pneg %p57
      $region14: #{aft_conv_forward.3} parent=11 // pred_check_branch
        %142 = sbr.rel (%p140) target = $region16
      $region15: #{aft_conv_forward.3} parent=11 // pred_region
        _
      $region16: #{aft_conv_forward.3} parent=11 // pred_fallthru
        _
      // Predicated region
      $region17: #{aft_conv_forward.3} parent=11 // pred_check
        %p143 = pneg %p78
      $region18: #{aft_conv_forward.3} parent=11 // pred_check_branch
        %145 = sbr.rel (%p143) target = $region20
      $region19: #{aft_conv_forward.3} parent=11 // pred_region
        _
      $region20: #{aft_conv_forward.3} parent=11 // pred_fallthru
        _
      // Predicated region
      $region21: #{aft_conv_forward.3} parent=11 // pred_check
        %p146 = pneg %p99
      $region22: #{aft_conv_forward.3} parent=11 // pred_check_branch
        %148 = sbr.rel (%p146) target = $region24
      $region23: #{aft_conv_forward.3} parent=11 // pred_region
        _
      $region24: #{aft_conv_forward.3} parent=11 // pred_fallthru
        _
    $region12: #{aft_conv_forward.3} parent=5 // pred_fallthru
      _
    %p149 = scmp.lt.s32.totalorder %s10, 2
    // Predicated region
    $region25: #{aft_conv_forward.3} parent=5 // pred_check
      %p150 = pneg %p149
    $region26: #{aft_conv_forward.3} parent=5 // pred_check_branch
      %152 = sbr.rel (%p150) target = $region28
    $region27: #{aft_conv_forward.3} parent=5 // pred_region
      // Predicated region
      $region29: #{aft_conv_forward.3} parent=27 // pred_check
        %p153 = pneg %p30
      $region30: #{aft_conv_forward.3} parent=27 // pred_check_branch
        %155 = sbr.rel (%p153) target = $region32
      $region31: #{aft_conv_forward.3} parent=27 // pred_region
        %p156 = scmp.lt.s32.totalorder %s10, 1
        %s157 = scalar_select %p156, %s10, 1
        %s158 = smul.addr %s157, 32
        %s159 = smul.addr %s158, 8
        %s160 = scalar_lea.vmem %s0, %s159
      $region32: #{aft_conv_forward.3} parent=27 // pred_fallthru
        _
    $region28: #{aft_conv_forward.3} parent=5 // pred_fallthru
      _
    %p161 = scmp.le.s32.totalorder 1, %s10
    %p162 = scmp.lt.s32.totalorder %s10, 3
    %p163 = pnand %p161, %p162
    %p164 = pneg %p163
    // Predicated region
    $region33: #{aft_conv_forward.3} parent=5 // pred_check
      _
    $region34: #{aft_conv_forward.3} parent=5 // pred_check_branch
      %166 = sbr.rel (%p163) target = $region36
    $region35: #{aft_conv_forward.3} parent=5 // pred_region
      %s167 = ssub.s32 %s10, 1
      %p168 = scmp.lt.s32.totalorder %s15, 1
      %s169 = scalar_select %p168, %s15, 1
      %s170 = smul.addr %s169, 32
      %s171 = smul.addr %s170, 8
      %s172 = scalar_lea.vmem %s0, %s171
      %p173 = pneg %p36
      %p174 = pneg %p33
      %p175 = pneg %p57
      %p176 = pneg %p54
      %p177 = pneg %p78
      %p178 = pneg %p75
      %p179 = pneg %p99
      %p180 = pneg %p96
      %p181 = pneg %p125
      %p182 = pneg %p122
      %p183 = scmp.lt.s32.totalorder %s15, 1
      %s184 = scalar_select %p183, %s15, 1
      %s185 = smul.addr %s184, 32
      %s186 = smul.addr %s185, 8
      %s187 = scalar_lea.vmem %s4, %s186
      %p188 = scmp.lt.s32.totalorder %s15, 1
      %s189 = scalar_select %p188, %s15, 1
      %s190 = smul.addr %s189, 32
      %s191 = smul.addr %s190, 8
      %s192 = scalar_lea.vmem %s0, %s191
      %p193 = scmp.lt.s32.totalorder %s15, 1
      %s194 = scalar_select %p193, %s15, 1
      %s195 = smul.addr %s194, 32
      %s196 = smul.addr %s195, 8
      %s197 = scalar_lea.vmem %s4, %s196
      %v199 = vld [vmem:[%s192] sm:$0xff]
      %v200 = vld [vmem:[%s192 + $0x8] sm:$0xff]
      %v201 = vld [vmem:[%s192 + $0x10] sm:$0xff]
      %v202 = vld [vmem:[%s192 + $0x18] sm:$0xff]
      %v203 = vld [vmem:[%s192 + $0x20] sm:$0xff]
      %v204 = vld [vmem:[%s192 + $0x28] sm:$0xff]
      %v205 = vld [vmem:[%s192 + $0x30] sm:$0xff]
      %v206 = vld [vmem:[%s192 + $0x38] sm:$0xff]
      %v207 = vld [vmem:[%s192 + $0x40] sm:$0xff]
      %v208 = vld [vmem:[%s192 + $0x48] sm:$0xff]
      %v209 = vld [vmem:[%s192 + $0x50] sm:$0xff]
      %v210 = vld [vmem:[%s192 + $0x58] sm:$0xff]
      %v211 = vld [vmem:[%s192 + $0x60] sm:$0xff]
      %v212 = vld [vmem:[%s192 + $0x68] sm:$0xff]
      %v213 = vld [vmem:[%s192 + $0x70] sm:$0xff]
      %v214 = vld [vmem:[%s192 + $0x78] sm:$0xff]
      %v215 = vld [vmem:[%s192 + $0x80] sm:$0xff]
      %v216 = vld [vmem:[%s192 + $0x88] sm:$0xff]
      %v217 = vld [vmem:[%s192 + $0x90] sm:$0xff]
      %v218 = vld [vmem:[%s192 + $0x98] sm:$0xff]
      %v219 = vld [vmem:[%s192 + $0xa0] sm:$0xff]
      %v220 = vld [vmem:[%s192 + $0xa8] sm:$0xff]
      %v221 = vld [vmem:[%s192 + $0xb0] sm:$0xff]
      %v222 = vld [vmem:[%s192 + $0xb8] sm:$0xff]
      %v223 = vld [vmem:[%s192 + $0xc0] sm:$0xff]
      %v224 = vld [vmem:[%s192 + $0xc8] sm:$0xff]
      %v225 = vld [vmem:[%s192 + $0xd0] sm:$0xff]
      %v226 = vld [vmem:[%s192 + $0xd8] sm:$0xff]
      %v227 = vld [vmem:[%s192 + $0xe0] sm:$0xff]
      %v228 = vld [vmem:[%s192 + $0xe8] sm:$0xff]
      %v229 = vld [vmem:[%s192 + $0xf0] sm:$0xff]
      %v230 = vld [vmem:[%s192 + $0xf8] sm:$0xff]
      %vm231 = vcmask 523520
      %v232 = vsel %vm231, %v199, -inf
      %v233 = vsel %vm231, %v200, -inf
      %v234 = vsel %vm231, %v201, -inf
      %v235 = vsel %vm231, %v202, -inf
      %v236 = vsel %vm231, %v203, -inf
      %v237 = vmax.f32 %v232, %v236
      %v238 = vsel %vm231, %v204, -inf
      %v239 = vmax.f32 %v233, %v238
      %v240 = vsel %vm231, %v205, -inf
      %v241 = vmax.f32 %v234, %v240
      %v242 = vsel %vm231, %v206, -inf
      %v243 = vmax.f32 %v235, %v242
      %v244 = vsel %vm231, %v207, -inf
      %v245 = vmax.f32 %v237, %v244
      %v246 = vsel %vm231, %v208, -inf
      %v247 = vmax.f32 %v239, %v246
      %v248 = vsel %vm231, %v209, -inf
      %v249 = vmax.f32 %v241, %v248
      %v250 = vsel %vm231, %v210, -inf
      %v251 = vmax.f32 %v243, %v250
      %v252 = vsel %vm231, %v211, -inf
      %v253 = vmax.f32 %v245, %v252
      %v254 = vsel %vm231, %v212, -inf
      %v255 = vmax.f32 %v247, %v254
      %v256 = vsel %vm231, %v213, -inf
      %v257 = vmax.f32 %v249, %v256
      %v258 = vsel %vm231, %v214, -inf
      %v259 = vmax.f32 %v251, %v258
      %v260 = vsel %vm231, %v215, -inf
      %v261 = vmax.f32 %v253, %v260
      %v262 = vsel %vm231, %v216, -inf
      %v263 = vmax.f32 %v255, %v262
      %v264 = vsel %vm231, %v217, -inf
      %v265 = vmax.f32 %v257, %v264
      %v266 = vsel %vm231, %v218, -inf
      %v267 = vmax.f32 %v259, %v266
      %v268 = vsel %vm231, %v219, -inf
      %v269 = vmax.f32 %v261, %v268
      %v270 = vsel %vm231, %v220, -inf
      %v271 = vmax.f32 %v263, %v270
      %v272 = vsel %vm231, %v221, -inf
      %v273 = vmax.f32 %v265, %v272
      %v274 = vsel %vm231, %v222, -inf
      %v275 = vmax.f32 %v267, %v274
      %v276 = vsel %vm231, %v223, -inf
      %v277 = vmax.f32 %v269, %v276
      %v278 = vsel %vm231, %v224, -inf
      %v279 = vmax.f32 %v271, %v278
      %v280 = vsel %vm231, %v225, -inf
      %v281 = vmax.f32 %v273, %v280
      %v282 = vsel %vm231, %v226, -inf
      %v283 = vmax.f32 %v275, %v282
      %v284 = vsel %vm231, %v227, -inf
      %v285 = vmax.f32 %v277, %v284
      %v286 = vsel %vm231, %v228, -inf
      %v287 = vmax.f32 %v279, %v286
      %v288 = vsel %vm231, %v229, -inf
      %v289 = vmax.f32 %v281, %v288
      %v290 = vsel %vm231, %v230, -inf
      %v291 = vmax.f32 %v283, %v290
      %v292 = vmax.f32 %v285, %v287
      %v293 = vmax.f32 %v289, %v291
      %v294 = vmax.f32 %v292, %v293
      %v295 = vrot.slane %v294, 4
      %v296 = vmax.f32 %v294, %v295
      %v297 = vrot.slane %v296, 2
      %v298 = vmax.f32 %v296, %v297
      %v299 = vrot.slane %v298, 1
      %v300 = vmax.f32 %v298, %v299
      %v301 = vsub.f32 %v199, %v300
      %v302 = vsub.f32 %v200, %v300
      %v303 = vsub.f32 %v201, %v300
      %v304 = vsub.f32 %v202, %v300
      %v305 = vsub.f32 %v203, %v300
      %v306 = vsub.f32 %v204, %v300
      %v307 = vsub.f32 %v205, %v300
      %v308 = vsub.f32 %v206, %v300
      %v309 = vsub.f32 %v207, %v300
      %v310 = vsub.f32 %v208, %v300
      %v311 = vsub.f32 %v209, %v300
      %v312 = vsub.f32 %v210, %v300
      %v313 = vsub.f32 %v211, %v300
      %v314 = vsub.f32 %v212, %v300
      %v315 = vsub.f32 %v213, %v300
      %v316 = vsub.f32 %v214, %v300
      %v317 = vsub.f32 %v215, %v300
      %v318 = vsub.f32 %v216, %v300
      %v319 = vsub.f32 %v217, %v300
      %v320 = vsub.f32 %v218, %v300
      %v321 = vsub.f32 %v219, %v300
      %v322 = vsub.f32 %v220, %v300
      %v323 = vsub.f32 %v221, %v300
      %v324 = vsub.f32 %v222, %v300
      %v325 = vsub.f32 %v223, %v300
      %v326 = vsub.f32 %v224, %v300
      %v327 = vsub.f32 %v225, %v300
      %v328 = vsub.f32 %v226, %v300
      %v329 = vsub.f32 %v227, %v300
      %v330 = vsub.f32 %v228, %v300
      %v331 = vsub.f32 %v229, %v300
      %v332 = vsub.f32 %v230, %v300
      %v333 = vmul.f32 %v301, 1.442695
      %v334 = vpow.pop %v333
      %v335 = vmul.f32 %v302, 1.442695
      %v336 = vpow.pop %v335
      %v337 = vmul.f32 %v303, 1.442695
      %v338 = vpow.pop %v337
      %v339 = vmul.f32 %v304, 1.442695
      %v340 = vpow.pop %v339
      %v341 = vmul.f32 %v305, 1.442695
      %v342 = vpow.pop %v341
      %v343 = vmul.f32 %v306, 1.442695
      %v344 = vpow.pop %v343
      %v345 = vmul.f32 %v307, 1.442695
      %v346 = vpow.pop %v345
      %v347 = vmul.f32 %v308, 1.442695
      %v348 = vpow.pop %v347
      %v349 = vmul.f32 %v309, 1.442695
      %v350 = vpow.pop %v349
      %v351 = vmul.f32 %v310, 1.442695
      %v352 = vpow.pop %v351
      %v353 = vmul.f32 %v311, 1.442695
      %v354 = vpow.pop %v353
      %v355 = vmul.f32 %v312, 1.442695
      %v356 = vpow.pop %v355
      %v357 = vmul.f32 %v313, 1.442695
      %v358 = vpow.pop %v357
      %v359 = vmul.f32 %v314, 1.442695
      %v360 = vpow.pop %v359
      %v361 = vmul.f32 %v315, 1.442695
      %v362 = vpow.pop %v361
      %v363 = vmul.f32 %v316, 1.442695
      %v364 = vpow.pop %v363
      %v365 = vmul.f32 %v317, 1.442695
      %v366 = vpow.pop %v365
      %v367 = vmul.f32 %v318, 1.442695
      %v368 = vpow.pop %v367
      %v369 = vmul.f32 %v319, 1.442695
      %v370 = vpow.pop %v369
      %v371 = vmul.f32 %v320, 1.442695
      %v372 = vpow.pop %v371
      %v373 = vmul.f32 %v321, 1.442695
      %v374 = vpow.pop %v373
      %v375 = vmul.f32 %v322, 1.442695
      %v376 = vpow.pop %v375
      %v377 = vmul.f32 %v323, 1.442695
      %v378 = vpow.pop %v377
      %v379 = vmul.f32 %v324, 1.442695
      %v380 = vpow.pop %v379
      %v381 = vmul.f32 %v325, 1.442695
      %v382 = vpow.pop %v381
      %v383 = vmul.f32 %v326, 1.442695
      %v384 = vpow.pop %v383
      %v385 = vmul.f32 %v327, 1.442695
      %v386 = vpow.pop %v385
      %v387 = vmul.f32 %v328, 1.442695
      %v388 = vpow.pop %v387
      %v389 = vmul.f32 %v329, 1.442695
      %v390 = vpow.pop %v389
      %v391 = vmul.f32 %v330, 1.442695
      %v392 = vpow.pop %v391
      %v393 = vmul.f32 %v331, 1.442695
      %v394 = vpow.pop %v393
      %v395 = vmul.f32 %v332, 1.442695
      %v396 = vpow.pop %v395
      %429 = vrot.lane.b32.xlu0 %v199, 96
      %v430 = vpop.permute.xlu0 %429
      %431 = vrot.lane.b32.xlu0 %v200, 96
      %v432 = vpop.permute.xlu0 %431
      %433 = vrot.lane.b32.xlu0 %v201, 96
      %v434 = vpop.permute.xlu0 %433
      %435 = vrot.lane.b32.xlu0 %v202, 96
      %v436 = vpop.permute.xlu0 %435
      %437 = vrot.lane.b32.xlu0 %v203, 96
      %v438 = vpop.permute.xlu0 %437
      %439 = vrot.lane.b32.xlu0 %v204, 96
      %v440 = vpop.permute.xlu0 %439
      %441 = vrot.lane.b32.xlu0 %v205, 96
      %v442 = vpop.permute.xlu0 %441
      %443 = vrot.lane.b32.xlu0 %v206, 96
      %v444 = vpop.permute.xlu0 %443
      %445 = vrot.lane.b32.xlu0 %v207, 96
      %v446 = vpop.permute.xlu0 %445
      %447 = vrot.lane.b32.xlu0 %v208, 96
      %v448 = vpop.permute.xlu0 %447
      %449 = vrot.lane.b32.xlu0 %v209, 96
      %v450 = vpop.permute.xlu0 %449
      %451 = vrot.lane.b32.xlu0 %v210, 96
      %v452 = vpop.permute.xlu0 %451
      %453 = vrot.lane.b32.xlu0 %v211, 96
      %v454 = vpop.permute.xlu0 %453
      %455 = vrot.lane.b32.xlu0 %v212, 96
      %v456 = vpop.permute.xlu0 %455
      %457 = vrot.lane.b32.xlu0 %v213, 96
      %v458 = vpop.permute.xlu0 %457
      %459 = vrot.lane.b32.xlu0 %v214, 96
      %v460 = vpop.permute.xlu0 %459
      %461 = vrot.lane.b32.xlu0 %v215, 96
      %v462 = vpop.permute.xlu0 %461
      %463 = vrot.lane.b32.xlu0 %v216, 96
      %v464 = vpop.permute.xlu0 %463
      %465 = vrot.lane.b32.xlu0 %v217, 96
      %v466 = vpop.permute.xlu0 %465
      %467 = vrot.lane.b32.xlu0 %v218, 96
      %v468 = vpop.permute.xlu0 %467
      %469 = vrot.lane.b32.xlu0 %v219, 96
      %v470 = vpop.permute.xlu0 %469
      %471 = vrot.lane.b32.xlu0 %v220, 96
      %v472 = vpop.permute.xlu0 %471
      %473 = vrot.lane.b32.xlu0 %v221, 96
      %v474 = vpop.permute.xlu0 %473
      %475 = vrot.lane.b32.xlu0 %v222, 96
      %v476 = vpop.permute.xlu0 %475
      %477 = vrot.lane.b32.xlu0 %v223, 96
      %v478 = vpop.permute.xlu0 %477
      %479 = vrot.lane.b32.xlu0 %v224, 96
      %v480 = vpop.permute.xlu0 %479
      %481 = vrot.lane.b32.xlu0 %v225, 96
      %v482 = vpop.permute.xlu0 %481
      %483 = vrot.lane.b32.xlu0 %v226, 96
      %v484 = vpop.permute.xlu0 %483
      %485 = vrot.lane.b32.xlu0 %v227, 96
      %v486 = vpop.permute.xlu0 %485
      %487 = vrot.lane.b32.xlu0 %v228, 96
      %v488 = vpop.permute.xlu0 %487
      %489 = vrot.lane.b32.xlu0 %v229, 96
      %v490 = vpop.permute.xlu0 %489
      %491 = vrot.lane.b32.xlu0 %v230, 96
      %v492 = vpop.permute.xlu0 %491
      %v525 = vmul.f32 %v334, %v430
      %v526 = vmul.f32 %v336, %v432
      %v527 = vmul.f32 %v338, %v434
      %v528 = vmul.f32 %v340, %v436
      %v529 = vmul.f32 %v342, %v438
      %v530 = vmul.f32 %v344, %v440
      %v531 = vmul.f32 %v346, %v442
      %v532 = vmul.f32 %v348, %v444
      %v533 = vmul.f32 %v350, %v446
      %v534 = vmul.f32 %v352, %v448
      %v535 = vmul.f32 %v354, %v450
      %v536 = vmul.f32 %v356, %v452
      %v537 = vmul.f32 %v358, %v454
      %v538 = vmul.f32 %v360, %v456
      %v539 = vmul.f32 %v362, %v458
      %v540 = vmul.f32 %v364, %v460
      %v541 = vmul.f32 %v366, %v462
      %v542 = vmul.f32 %v368, %v464
      %v543 = vmul.f32 %v370, %v466
      %v544 = vmul.f32 %v372, %v468
      %v545 = vmul.f32 %v374, %v470
      %v546 = vmul.f32 %v376, %v472
      %v547 = vmul.f32 %v378, %v474
      %v548 = vmul.f32 %v380, %v476
      %v549 = vmul.f32 %v382, %v478
      %v550 = vmul.f32 %v384, %v480
      %v551 = vmul.f32 %v386, %v482
      %v552 = vmul.f32 %v388, %v484
      %v553 = vmul.f32 %v390, %v486
      %v554 = vmul.f32 %v392, %v488
      %v555 = vmul.f32 %v394, %v490
      %v556 = vmul.f32 %v396, %v492
      %589 = vrot.lane.b32.xlu0 %v334, 96
      %v590 = vpop.permute.xlu0 %589
      %591 = vrot.lane.b32.xlu0 %v336, 96
      %v592 = vpop.permute.xlu0 %591
      %593 = vrot.lane.b32.xlu0 %v338, 96
      %v594 = vpop.permute.xlu0 %593
      %595 = vrot.lane.b32.xlu0 %v340, 96
      %v596 = vpop.permute.xlu0 %595
      %597 = vrot.lane.b32.xlu0 %v342, 96
      %v598 = vpop.permute.xlu0 %597
      %599 = vrot.lane.b32.xlu0 %v344, 96
      %v600 = vpop.permute.xlu0 %599
      %601 = vrot.lane.b32.xlu0 %v346, 96
      %v602 = vpop.permute.xlu0 %601
      %603 = vrot.lane.b32.xlu0 %v348, 96
      %v604 = vpop.permute.xlu0 %603
      %605 = vrot.lane.b32.xlu0 %v350, 96
      %v606 = vpop.permute.xlu0 %605
      %607 = vrot.lane.b32.xlu0 %v352, 96
      %v608 = vpop.permute.xlu0 %607
      %609 = vrot.lane.b32.xlu0 %v354, 96
      %v610 = vpop.permute.xlu0 %609
      %611 = vrot.lane.b32.xlu0 %v356, 96
      %v612 = vpop.permute.xlu0 %611
      %613 = vrot.lane.b32.xlu0 %v358, 96
      %v614 = vpop.permute.xlu0 %613
      %615 = vrot.lane.b32.xlu0 %v360, 96
      %v616 = vpop.permute.xlu0 %615
      %617 = vrot.lane.b32.xlu0 %v362, 96
      %v618 = vpop.permute.xlu0 %617
      %619 = vrot.lane.b32.xlu0 %v364, 96
      %v620 = vpop.permute.xlu0 %619
      %621 = vrot.lane.b32.xlu0 %v366, 96
      %v622 = vpop.permute.xlu0 %621
      %623 = vrot.lane.b32.xlu0 %v368, 96
      %v624 = vpop.permute.xlu0 %623
      %625 = vrot.lane.b32.xlu0 %v370, 96
      %v626 = vpop.permute.xlu0 %625
      %627 = vrot.lane.b32.xlu0 %v372, 96
      %v628 = vpop.permute.xlu0 %627
      %629 = vrot.lane.b32.xlu0 %v374, 96
      %v630 = vpop.permute.xlu0 %629
      %631 = vrot.lane.b32.xlu0 %v376, 96
      %v632 = vpop.permute.xlu0 %631
      %633 = vrot.lane.b32.xlu0 %v378, 96
      %v634 = vpop.permute.xlu0 %633
      %635 = vrot.lane.b32.xlu0 %v380, 96
      %v636 = vpop.permute.xlu0 %635
      %637 = vrot.lane.b32.xlu0 %v382, 96
      %v638 = vpop.permute.xlu0 %637
      %639 = vrot.lane.b32.xlu0 %v384, 96
      %v640 = vpop.permute.xlu0 %639
      %641 = vrot.lane.b32.xlu0 %v386, 96
      %v642 = vpop.permute.xlu0 %641
      %643 = vrot.lane.b32.xlu0 %v388, 96
      %v644 = vpop.permute.xlu0 %643
      %645 = vrot.lane.b32.xlu0 %v390, 96
      %v646 = vpop.permute.xlu0 %645
      %647 = vrot.lane.b32.xlu0 %v392, 96
      %v648 = vpop.permute.xlu0 %647
      %649 = vrot.lane.b32.xlu0 %v394, 96
      %v650 = vpop.permute.xlu0 %649
      %651 = vrot.lane.b32.xlu0 %v396, 96
      %v652 = vpop.permute.xlu0 %651
      %vm685 = vcmask 261120
      %v686 = vsel %vm685, %v590, %v525
      %v687 = vsel %vm685, %v592, %v526
      %v688 = vsel %vm685, %v594, %v527
      %v689 = vsel %vm685, %v596, %v528
      %v690 = vsel %vm685, %v598, %v529
      %v691 = vsel %vm685, %v600, %v530
      %v692 = vsel %vm685, %v602, %v531
      %v693 = vsel %vm685, %v604, %v532
      %v694 = vsel %vm685, %v606, %v533
      %v695 = vsel %vm685, %v608, %v534
      %v696 = vsel %vm685, %v610, %v535
      %v697 = vsel %vm685, %v612, %v536
      %v698 = vsel %vm685, %v614, %v537
      %v699 = vsel %vm685, %v616, %v538
      %v700 = vsel %vm685, %v618, %v539
      %v701 = vsel %vm685, %v620, %v540
      %v702 = vsel %vm685, %v622, %v541
      %v703 = vsel %vm685, %v624, %v542
      %v704 = vsel %vm685, %v626, %v543
      %v705 = vsel %vm685, %v628, %v544
      %v706 = vsel %vm685, %v630, %v545
      %v707 = vsel %vm685, %v632, %v546
      %v708 = vsel %vm685, %v634, %v547
      %v709 = vsel %vm685, %v636, %v548
      %v710 = vsel %vm685, %v638, %v549
      %v711 = vsel %vm685, %v640, %v550
      %v712 = vsel %vm685, %v642, %v551
      %v713 = vsel %vm685, %v644, %v552
      %v714 = vsel %vm685, %v646, %v553
      %v715 = vsel %vm685, %v648, %v554
      %v716 = vsel %vm685, %v650, %v555
      %v717 = vsel %vm685, %v652, %v556
      %vm718 = vcmask 523264
      %719 = vst.msk [vmem:[#allocation2] sm:$0xff] %vm718, 0.0
      %720 = vst.msk [vmem:[#allocation2 + $0x8] sm:$0xff] %vm718, 0.0
      %721 = vst.msk [vmem:[#allocation2 + $0x10] sm:$0xff] %vm718, 0.0
      %s722 = scalar_lea.vmem [#allocation2], 408
      %723 = vst.msk [vmem:[%s722] sm:$0xff] %vm718, 0.0
      %724 = vst.msk [vmem:[%s722 + $0x8] sm:$0xff] %vm718, 0.0
      %725 = vst.msk [vmem:[%s722 + $0x10] sm:$0xff] %vm718, 0.0
      %s726 = scalar_lea.vmem [#allocation2], 24
      %vm727 = vcmask 516096
      %728 = vst.msk [vmem:[%s726] sm:$0x1] %vm727, 0.0
      %729 = vst.msk [vmem:[%s726 + $0x18] sm:$0x1] %vm727, 0.0
      %730 = vst.msk [vmem:[%s726 + $0x30] sm:$0x1] %vm727, 0.0
      %731 = vst.msk [vmem:[%s726 + $0x48] sm:$0x1] %vm727, 0.0
      %732 = vst.msk [vmem:[%s726 + $0x60] sm:$0x1] %vm727, 0.0
      %733 = vst.msk [vmem:[%s726 + $0x78] sm:$0x1] %vm727, 0.0
      %734 = vst.msk [vmem:[%s726 + $0x90] sm:$0x1] %vm727, 0.0
      %735 = vst.msk [vmem:[%s726 + $0xa8] sm:$0x1] %vm727, 0.0
      %736 = vst.msk [vmem:[%s726 + $0xc0] sm:$0x1] %vm727, 0.0
      %737 = vst.msk [vmem:[%s726 + $0xd8] sm:$0x1] %vm727, 0.0
      %738 = vst.msk [vmem:[%s726 + $0xf0] sm:$0x1] %vm727, 0.0
      %739 = vst.msk [vmem:[%s726 + $0x108] sm:$0x1] %vm727, 0.0
      %740 = vst.msk [vmem:[%s726 + $0x120] sm:$0x1] %vm727, 0.0
      %741 = vst.msk [vmem:[%s726 + $0x138] sm:$0x1] %vm727, 0.0
      %742 = vst.msk [vmem:[%s726 + $0x150] sm:$0x1] %vm727, 0.0
      %743 = vst.msk [vmem:[%s726 + $0x168] sm:$0x1] %vm727, 0.0
      %744 = vst.msk [vmem:[%s726 + $0x11] sm:$0x1] %vm727, 0.0
      %745 = vst.msk [vmem:[%s726 + $0x29] sm:$0x1] %vm727, 0.0
      %746 = vst.msk [vmem:[%s726 + $0x41] sm:$0x1] %vm727, 0.0
      %747 = vst.msk [vmem:[%s726 + $0x59] sm:$0x1] %vm727, 0.0
      %748 = vst.msk [vmem:[%s726 + $0x71] sm:$0x1] %vm727, 0.0
      %749 = vst.msk [vmem:[%s726 + $0x89] sm:$0x1] %vm727, 0.0
      %750 = vst.msk [vmem:[%s726 + $0xa1] sm:$0x1] %vm727, 0.0
      %751 = vst.msk [vmem:[%s726 + $0xb9] sm:$0x1] %vm727, 0.0
      %752 = vst.msk [vmem:[%s726 + $0xd1] sm:$0x1] %vm727, 0.0
      %753 = vst.msk [vmem:[%s726 + $0xe9] sm:$0x1] %vm727, 0.0
      %754 = vst.msk [vmem:[%s726 + $0x101] sm:$0x1] %vm727, 0.0
      %755 = vst.msk [vmem:[%s726 + $0x119] sm:$0x1] %vm727, 0.0
      %756 = vst.msk [vmem:[%s726 + $0x131] sm:$0x1] %vm727, 0.0
      %757 = vst.msk [vmem:[%s726 + $0x149] sm:$0x1] %vm727, 0.0
      %758 = vst.msk [vmem:[%s726 + $0x161] sm:$0x1] %vm727, 0.0
      %759 = vst.msk [vmem:[%s726 + $0x179] sm:$0x1] %vm727, 0.0
      %760 = vst.msk [vmem:[%s726 + $0x1] sm:$0xff] %vm718, %v686
      %761 = vst.msk [vmem:[%s726 + $0x9] sm:$0xff] %vm718, %v687
      %762 = vst.msk [vmem:[%s726 + $0x19] sm:$0xff] %vm718, %v688
      %763 = vst.msk [vmem:[%s726 + $0x21] sm:$0xff] %vm718, %v689
      %764 = vst.msk [vmem:[%s726 + $0x31] sm:$0xff] %vm718, %v690
      %765 = vst.msk [vmem:[%s726 + $0x39] sm:$0xff] %vm718, %v691
      %766 = vst.msk [vmem:[%s726 + $0x49] sm:$0xff] %vm718, %v692
      %767 = vst.msk [vmem:[%s726 + $0x51] sm:$0xff] %vm718, %v693
      %768 = vst.msk [vmem:[%s726 + $0x61] sm:$0xff] %vm718, %v694
      %769 = vst.msk [vmem:[%s726 + $0x69] sm:$0xff] %vm718, %v695
      %770 = vst.msk [vmem:[%s726 + $0x79] sm:$0xff] %vm718, %v696
      %771 = vst.msk [vmem:[%s726 + $0x81] sm:$0xff] %vm718, %v697
      %772 = vst.msk [vmem:[%s726 + $0x91] sm:$0xff] %vm718, %v698
      %773 = vst.msk [vmem:[%s726 + $0x99] sm:$0xff] %vm718, %v699
      %774 = vst.msk [vmem:[%s726 + $0xa9] sm:$0xff] %vm718, %v700
      %775 = vst.msk [vmem:[%s726 + $0xb1] sm:$0xff] %vm718, %v701
      %776 = vst.msk [vmem:[%s726 + $0xc1] sm:$0xff] %vm718, %v702
      %777 = vst.msk [vmem:[%s726 + $0xc9] sm:$0xff] %vm718, %v703
      %778 = vst.msk [vmem:[%s726 + $0xd9] sm:$0xff] %vm718, %v704
      %779 = vst.msk [vmem:[%s726 + $0xe1] sm:$0xff] %vm718, %v705
      %780 = vst.msk [vmem:[%s726 + $0xf1] sm:$0xff] %vm718, %v706
      %781 = vst.msk [vmem:[%s726 + $0xf9] sm:$0xff] %vm718, %v707
      %782 = vst.msk [vmem:[%s726 + $0x109] sm:$0xff] %vm718, %v708
      %783 = vst.msk [vmem:[%s726 + $0x111] sm:$0xff] %vm718, %v709
      %784 = vst.msk [vmem:[%s726 + $0x121] sm:$0xff] %vm718, %v710
      %785 = vst.msk [vmem:[%s726 + $0x129] sm:$0xff] %vm718, %v711
      %786 = vst.msk [vmem:[%s726 + $0x139] sm:$0xff] %vm718, %v712
      %787 = vst.msk [vmem:[%s726 + $0x141] sm:$0xff] %vm718, %v713
      %788 = vst.msk [vmem:[%s726 + $0x151] sm:$0xff] %vm718, %v714
      %789 = vst.msk [vmem:[%s726 + $0x159] sm:$0xff] %vm718, %v715
      %790 = vst.msk [vmem:[%s726 + $0x169] sm:$0xff] %vm718, %v716
      %791 = vst.msk [vmem:[%s726 + $0x171] sm:$0xff] %vm718, %v717
      %v792 = vsel %vm718, %v686, 0.0
      %v793 = vsel %vm718, %v687, 0.0
      %v794 = vadd.f32 %v792, %v793
      %v795 = vsel %vm718, %v688, 0.0
      %v796 = vadd.f32 %v794, %v795
      %v797 = vsel %vm718, %v689, 0.0
      %v798 = vadd.f32 %v796, %v797
      %v799 = vsel %vm718, %v690, 0.0
      %v800 = vadd.f32 %v798, %v799
      %v801 = vsel %vm718, %v691, 0.0
      %v802 = vadd.f32 %v800, %v801
      %v803 = vsel %vm718, %v692, 0.0
      %v804 = vadd.f32 %v802, %v803
      %v805 = vsel %vm718, %v693, 0.0
      %v806 = vadd.f32 %v804, %v805
      %v807 = vsel %vm718, %v694, 0.0
      %v808 = vadd.f32 %v806, %v807
      %v809 = vsel %vm718, %v695, 0.0
      %v810 = vadd.f32 %v808, %v809
      %v811 = vsel %vm718, %v696, 0.0
      %v812 = vadd.f32 %v810, %v811
      %v813 = vsel %vm718, %v697, 0.0
      %v814 = vadd.f32 %v812, %v813
      %v815 = vsel %vm718, %v698, 0.0
      %v816 = vadd.f32 %v814, %v815
      %v817 = vsel %vm718, %v699, 0.0
      %v818 = vadd.f32 %v816, %v817
      %v819 = vsel %vm718, %v700, 0.0
      %v820 = vadd.f32 %v818, %v819
      %v821 = vsel %vm718, %v701, 0.0
      %v822 = vadd.f32 %v820, %v821
      %v823 = vsel %vm718, %v702, 0.0
      %v824 = vadd.f32 %v822, %v823
      %v825 = vsel %vm718, %v703, 0.0
      %v826 = vadd.f32 %v824, %v825
      %v827 = vsel %vm718, %v704, 0.0
      %v828 = vadd.f32 %v826, %v827
      %v829 = vsel %vm718, %v705, 0.0
      %v830 = vadd.f32 %v828, %v829
      %v831 = vsel %vm718, %v706, 0.0
      %v832 = vadd.f32 %v830, %v831
      %v833 = vsel %vm718, %v707, 0.0
      %v834 = vadd.f32 %v832, %v833
      %v835 = vsel %vm718, %v708, 0.0
      %v836 = vadd.f32 %v834, %v835
      %v837 = vsel %vm718, %v709, 0.0
      %v838 = vadd.f32 %v836, %v837
      %v839 = vsel %vm718, %v710, 0.0
      %v840 = vadd.f32 %v838, %v839
      %v841 = vsel %vm718, %v711, 0.0
      %v842 = vadd.f32 %v840, %v841
      %v843 = vsel %vm718, %v712, 0.0
      %v844 = vadd.f32 %v842, %v843
      %v845 = vsel %vm718, %v713, 0.0
      %v846 = vadd.f32 %v844, %v845
      %v847 = vsel %vm718, %v714, 0.0
      %v848 = vadd.f32 %v846, %v847
      %v849 = vsel %vm718, %v715, 0.0
      %v850 = vadd.f32 %v848, %v849
      %v851 = vsel %vm718, %v716, 0.0
      %v852 = vadd.f32 %v850, %v851
      %v853 = vsel %vm718, %v717, 0.0
      %v854 = vadd.f32 %v852, %v853
      %v855 = vrot.slane %v854, 4
      %v856 = vadd.f32 %v854, %v855
      %v857 = vrot.slane %v856, 2
      %v858 = vadd.f32 %v856, %v857
      %v859 = vrot.slane %v858, 1
      %v860 = vadd.f32 %v858, %v859
      %v861 = vld [vmem:[%s1] sm:$0xff]
      %v862 = vld [vmem:[%s1 + $0x8] sm:$0x1]
      %v863 = vld [vmem:[#allocation2] sm:$0xff]
      %v864 = vld [vmem:[#allocation2 + $0x8] sm:$0xff]
      %v865 = vld [vmem:[#allocation2 + $0x18] sm:$0xff]
      %v866 = vld [vmem:[#allocation2 + $0x20] sm:$0xff]
      %v867 = vld [vmem:[#allocation2 + $0x30] sm:$0xff]
      %v868 = vld [vmem:[#allocation2 + $0x38] sm:$0xff]
      %v869 = vld [vmem:[#allocation2 + $0x48] sm:$0xff]
      %v870 = vld [vmem:[#allocation2 + $0x50] sm:$0xff]
      %v871 = vld [vmem:[#allocation2 + $0x60] sm:$0xff]
      %v872 = vld [vmem:[#allocation2 + $0x68] sm:$0xff]
      %v873 = vld [vmem:[#allocation2 + $0x78] sm:$0xff]
      %v874 = vld [vmem:[#allocation2 + $0x80] sm:$0xff]
      %v875 = vld [vmem:[#allocation2 + $0x90] sm:$0xff]
      %v876 = vld [vmem:[#allocation2 + $0x98] sm:$0xff]
      %v877 = vld [vmem:[#allocation2 + $0xa8] sm:$0xff]
      %v878 = vld [vmem:[#allocation2 + $0xb0] sm:$0xff]
      %v879 = vld [vmem:[#allocation2 + $0xc0] sm:$0xff]
      %v880 = vld [vmem:[#allocation2 + $0xc8] sm:$0xff]
      %v881 = vld [vmem:[#allocation2 + $0xd8] sm:$0xff]
      %v882 = vld [vmem:[#allocation2 + $0xe0] sm:$0xff]
      %v883 = vld [vmem:[#allocation2 + $0xf0] sm:$0xff]
      %v884 = vld [vmem:[#allocation2 + $0xf8] sm:$0xff]
      %v885 = vld [vmem:[#allocation2 + $0x108] sm:$0xff]
      %v886 = vld [vmem:[#allocation2 + $0x110] sm:$0xff]
      %v887 = vld [vmem:[#allocation2 + $0x120] sm:$0xff]
      %v888 = vld [vmem:[#allocation2 + $0x128] sm:$0xff]
      %v889 = vld [vmem:[#allocation2 + $0x138] sm:$0xff]
      %v890 = vld [vmem:[#allocation2 + $0x140] sm:$0xff]
      %v891 = vld [vmem:[#allocation2 + $0x150] sm:$0xff]
      %v892 = vld [vmem:[#allocation2 + $0x158] sm:$0xff]
      %v893 = vld [vmem:[#allocation2 + $0x168] sm:$0xff]
      %v894 = vld [vmem:[#allocation2 + $0x170] sm:$0xff]
      %v895 = vperm.slane %v861, 0
      %v896 = vmul.f32 %v895, %v863
      %v897 = vmul.f32 %v895, %v864
      %v898 = vmul.f32 %v895, %v865
      %v899 = vmul.f32 %v895, %v866
      %v900 = vmul.f32 %v895, %v867
      %v901 = vmul.f32 %v895, %v868
      %v902 = vmul.f32 %v895, %v869
      %v903 = vmul.f32 %v895, %v870
      %v904 = vmul.f32 %v895, %v871
      %v905 = vmul.f32 %v895, %v872
      %v906 = vmul.f32 %v895, %v873
      %v907 = vmul.f32 %v895, %v874
      %v908 = vmul.f32 %v895, %v875
      %v909 = vmul.f32 %v895, %v876
      %v910 = vmul.f32 %v895, %v877
      %v911 = vmul.f32 %v895, %v878
      %v912 = vmul.f32 %v895, %v879
      %v913 = vmul.f32 %v895, %v880
      %v914 = vmul.f32 %v895, %v881
      %v915 = vmul.f32 %v895, %v882
      %v916 = vmul.f32 %v895, %v883
      %v917 = vmul.f32 %v895, %v884
      %v918 = vmul.f32 %v895, %v885
      %v919 = vmul.f32 %v895, %v886
      %v920 = vmul.f32 %v895, %v887
      %v921 = vmul.f32 %v895, %v888
      %v922 = vmul.f32 %v895, %v889
      %v923 = vmul.f32 %v895, %v890
      %v924 = vmul.f32 %v895, %v891
      %v925 = vmul.f32 %v895, %v892
      %v926 = vmul.f32 %v895, %v893
      %v927 = vmul.f32 %v895, %v894
      %v928 = vadd.f32 %v860, %v896
      %v929 = vadd.f32 %v860, %v897
      %v930 = vadd.f32 %v860, %v898
      %v931 = vadd.f32 %v860, %v899
      %v932 = vadd.f32 %v860, %v900
      %v933 = vadd.f32 %v860, %v901
      %v934 = vadd.f32 %v860, %v902
      %v935 = vadd.f32 %v860, %v903
      %v936 = vadd.f32 %v860, %v904
      %v937 = vadd.f32 %v860, %v905
      %v938 = vadd.f32 %v860, %v906
      %v939 = vadd.f32 %v860, %v907
      %v940 = vadd.f32 %v860, %v908
      %v941 = vadd.f32 %v860, %v909
      %v942 = vadd.f32 %v860, %v910
      %v943 = vadd.f32 %v860, %v911
      %v944 = vadd.f32 %v860, %v912
      %v945 = vadd.f32 %v860, %v913
      %v946 = vadd.f32 %v860, %v914
      %v947 = vadd.f32 %v860, %v915
      %v948 = vadd.f32 %v860, %v916
      %v949 = vadd.f32 %v860, %v917
      %v950 = vadd.f32 %v860, %v918
      %v951 = vadd.f32 %v860, %v919
      %v952 = vadd.f32 %v860, %v920
      %v953 = vadd.f32 %v860, %v921
      %v954 = vadd.f32 %v860, %v922
      %v955 = vadd.f32 %v860, %v923
      %v956 = vadd.f32 %v860, %v924
      %v957 = vadd.f32 %v860, %v925
      %v958 = vadd.f32 %v860, %v926
      %v959 = vadd.f32 %v860, %v927
      %v960 = vld [vmem:[#allocation2 + $0x1] sm:$0xff]
      %v961 = vld [vmem:[#allocation2 + $0x9] sm:$0xff]
      %v962 = vld [vmem:[#allocation2 + $0x19] sm:$0xff]
      %v963 = vld [vmem:[#allocation2 + $0x21] sm:$0xff]
      %v964 = vld [vmem:[#allocation2 + $0x31] sm:$0xff]
      %v965 = vld [vmem:[#allocation2 + $0x39] sm:$0xff]
      %v966 = vld [vmem:[#allocation2 + $0x49] sm:$0xff]
      %v967 = vld [vmem:[#allocation2 + $0x51] sm:$0xff]
      %v968 = vld [vmem:[#allocation2 + $0x61] sm:$0xff]
      %v969 = vld [vmem:[#allocation2 + $0x69] sm:$0xff]
      %v970 = vld [vmem:[#allocation2 + $0x79] sm:$0xff]
      %v971 = vld [vmem:[#allocation2 + $0x81] sm:$0xff]
      %v972 = vld [vmem:[#allocation2 + $0x91] sm:$0xff]
      %v973 = vld [vmem:[#allocation2 + $0x99] sm:$0xff]
      %v974 = vld [vmem:[#allocation2 + $0xa9] sm:$0xff]
      %v975 = vld [vmem:[#allocation2 + $0xb1] sm:$0xff]
      %v976 = vld [vmem:[#allocation2 + $0xc1] sm:$0xff]
      %v977 = vld [vmem:[#allocation2 + $0xc9] sm:$0xff]
      %v978 = vld [vmem:[#allocation2 + $0xd9] sm:$0xff]
      %v979 = vld [vmem:[#allocation2 + $0xe1] sm:$0xff]
      %v980 = vld [vmem:[#allocation2 + $0xf1] sm:$0xff]
      %v981 = vld [vmem:[#allocation2 + $0xf9] sm:$0xff]
      %v982 = vld [vmem:[#allocation2 + $0x109] sm:$0xff]
      %v983 = vld [vmem:[#allocation2 + $0x111] sm:$0xff]
      %v984 = vld [vmem:[#allocation2 + $0x121] sm:$0xff]
      %v985 = vld [vmem:[#allocation2 + $0x129] sm:$0xff]
      %v986 = vld [vmem:[#allocation2 + $0x139] sm:$0xff]
      %v987 = vld [vmem:[#allocation2 + $0x141] sm:$0xff]
      %v988 = vld [vmem:[#allocation2 + $0x151] sm:$0xff]
      %v989 = vld [vmem:[#allocation2 + $0x159] sm:$0xff]
      %v990 = vld [vmem:[#allocation2 + $0x169] sm:$0xff]
      %v991 = vld [vmem:[#allocation2 + $0x171] sm:$0xff]
      %v992 = vperm.slane %v861, 1
      %v993 = vmul.f32 %v992, %v960
      %v994 = vmul.f32 %v992, %v961
      %v995 = vmul.f32 %v992, %v962
      %v996 = vmul.f32 %v992, %v963
      %v997 = vmul.f32 %v992, %v964
      %v998 = vmul.f32 %v992, %v965
      %v999 = vmul.f32 %v992, %v966
      %v1000 = vmul.f32 %v992, %v967
      %v1001 = vmul.f32 %v992, %v968
      %v1002 = vmul.f32 %v992, %v969
      %v1003 = vmul.f32 %v992, %v970
      %v1004 = vmul.f32 %v992, %v971
      %v1005 = vmul.f32 %v992, %v972
      %v1006 = vmul.f32 %v992, %v973
      %v1007 = vmul.f32 %v992, %v974
      %v1008 = vmul.f32 %v992, %v975
      %v1009 = vmul.f32 %v992, %v976
      %v1010 = vmul.f32 %v992, %v977
      %v1011 = vmul.f32 %v992, %v978
      %v1012 = vmul.f32 %v992, %v979
      %v1013 = vmul.f32 %v992, %v980
      %v1014 = vmul.f32 %v992, %v981
      %v1015 = vmul.f32 %v992, %v982
      %v1016 = vmul.f32 %v992, %v983
      %v1017 = vmul.f32 %v992, %v984
      %v1018 = vmul.f32 %v992, %v985
      %v1019 = vmul.f32 %v992, %v986
      %v1020 = vmul.f32 %v992, %v987
      %v1021 = vmul.f32 %v992, %v988
      %v1022 = vmul.f32 %v992, %v989
      %v1023 = vmul.f32 %v992, %v990
      %v1024 = vmul.f32 %v992, %v991
      %v1025 = vadd.f32 %v928, %v993
      %v1026 = vadd.f32 %v929, %v994
      %v1027 = vadd.f32 %v930, %v995
      %v1028 = vadd.f32 %v931, %v996
      %v1029 = vadd.f32 %v932, %v997
      %v1030 = vadd.f32 %v933, %v998
      %v1031 = vadd.f32 %v934, %v999
      %v1032 = vadd.f32 %v935, %v1000
      %v1033 = vadd.f32 %v936, %v1001
      %v1034 = vadd.f32 %v937, %v1002
      %v1035 = vadd.f32 %v938, %v1003
      %v1036 = vadd.f32 %v939, %v1004
      %v1037 = vadd.f32 %v940, %v1005
      %v1038 = vadd.f32 %v941, %v1006
      %v1039 = vadd.f32 %v942, %v1007
      %v1040 = vadd.f32 %v943, %v1008
      %v1041 = vadd.f32 %v944, %v1009
      %v1042 = vadd.f32 %v945, %v1010
      %v1043 = vadd.f32 %v946, %v1011
      %v1044 = vadd.f32 %v947, %v1012
      %v1045 = vadd.f32 %v948, %v1013
      %v1046 = vadd.f32 %v949, %v1014
      %v1047 = vadd.f32 %v950, %v1015
      %v1048 = vadd.f32 %v951, %v1016
      %v1049 = vadd.f32 %v952, %v1017
      %v1050 = vadd.f32 %v953, %v1018
      %v1051 = vadd.f32 %v954, %v1019
      %v1052 = vadd.f32 %v955, %v1020
      %v1053 = vadd.f32 %v956, %v1021
      %v1054 = vadd.f32 %v957, %v1022
      %v1055 = vadd.f32 %v958, %v1023
      %v1056 = vadd.f32 %v959, %v1024
      %v1057 = vld [vmem:[#allocation2 + $0x2] sm:$0xff]
      %v1058 = vld [vmem:[#allocation2 + $0xa] sm:$0xff]
      %v1059 = vld [vmem:[#allocation2 + $0x1a] sm:$0xff]
      %v1060 = vld [vmem:[#allocation2 + $0x22] sm:$0xff]
      %v1061 = vld [vmem:[#allocation2 + $0x32] sm:$0xff]
      %v1062 = vld [vmem:[#allocation2 + $0x3a] sm:$0xff]
      %v1063 = vld [vmem:[#allocation2 + $0x4a] sm:$0xff]
      %v1064 = vld [vmem:[#allocation2 + $0x52] sm:$0xff]
      %v1065 = vld [vmem:[#allocation2 + $0x62] sm:$0xff]
      %v1066 = vld [vmem:[#allocation2 + $0x6a] sm:$0xff]
      %v1067 = vld [vmem:[#allocation2 + $0x7a] sm:$0xff]
      %v1068 = vld [vmem:[#allocation2 + $0x82] sm:$0xff]
      %v1069 = vld [vmem:[#allocation2 + $0x92] sm:$0xff]
      %v1070 = vld [vmem:[#allocation2 + $0x9a] sm:$0xff]
      %v1071 = vld [vmem:[#allocation2 + $0xaa] sm:$0xff]
      %v1072 = vld [vmem:[#allocation2 + $0xb2] sm:$0xff]
      %v1073 = vld [vmem:[#allocation2 + $0xc2] sm:$0xff]
      %v1074 = vld [vmem:[#allocation2 + $0xca] sm:$0xff]
      %v1075 = vld [vmem:[#allocation2 + $0xda] sm:$0xff]
      %v1076 = vld [vmem:[#allocation2 + $0xe2] sm:$0xff]
      %v1077 = vld [vmem:[#allocation2 + $0xf2] sm:$0xff]
      %v1078 = vld [vmem:[#allocation2 + $0xfa] sm:$0xff]
      %v1079 = vld [vmem:[#allocation2 + $0x10a] sm:$0xff]
      %v1080 = vld [vmem:[#allocation2 + $0x112] sm:$0xff]
      %v1081 = vld [vmem:[#allocation2 + $0x122] sm:$0xff]
      %v1082 = vld [vmem:[#allocation2 + $0x12a] sm:$0xff]
      %v1083 = vld [vmem:[#allocation2 + $0x13a] sm:$0xff]
      %v1084 = vld [vmem:[#allocation2 + $0x142] sm:$0xff]
      %v1085 = vld [vmem:[#allocation2 + $0x152] sm:$0xff]
      %v1086 = vld [vmem:[#allocation2 + $0x15a] sm:$0xff]
      %v1087 = vld [vmem:[#allocation2 + $0x16a] sm:$0xff]
      %v1088 = vld [vmem:[#allocation2 + $0x172] sm:$0xff]
      %v1089 = vperm.slane %v861, 2
      %v1090 = vmul.f32 %v1089, %v1057
      %v1091 = vmul.f32 %v1089, %v1058
      %v1092 = vmul.f32 %v1089, %v1059
      %v1093 = vmul.f32 %v1089, %v1060
      %v1094 = vmul.f32 %v1089, %v1061
      %v1095 = vmul.f32 %v1089, %v1062
      %v1096 = vmul.f32 %v1089, %v1063
      %v1097 = vmul.f32 %v1089, %v1064
      %v1098 = vmul.f32 %v1089, %v1065
      %v1099 = vmul.f32 %v1089, %v1066
      %v1100 = vmul.f32 %v1089, %v1067
      %v1101 = vmul.f32 %v1089, %v1068
      %v1102 = vmul.f32 %v1089, %v1069
      %v1103 = vmul.f32 %v1089, %v1070
      %v1104 = vmul.f32 %v1089, %v1071
      %v1105 = vmul.f32 %v1089, %v1072
      %v1106 = vmul.f32 %v1089, %v1073
      %v1107 = vmul.f32 %v1089, %v1074
      %v1108 = vmul.f32 %v1089, %v1075
      %v1109 = vmul.f32 %v1089, %v1076
      %v1110 = vmul.f32 %v1089, %v1077
      %v1111 = vmul.f32 %v1089, %v1078
      %v1112 = vmul.f32 %v1089, %v1079
      %v1113 = vmul.f32 %v1089, %v1080
      %v1114 = vmul.f32 %v1089, %v1081
      %v1115 = vmul.f32 %v1089, %v1082
      %v1116 = vmul.f32 %v1089, %v1083
      %v1117 = vmul.f32 %v1089, %v1084
      %v1118 = vmul.f32 %v1089, %v1085
      %v1119 = vmul.f32 %v1089, %v1086
      %v1120 = vmul.f32 %v1089, %v1087
      %v1121 = vmul.f32 %v1089, %v1088
      %v1122 = vadd.f32 %v1025, %v1090
      %v1123 = vadd.f32 %v1026, %v1091
      %v1124 = vadd.f32 %v1027, %v1092
      %v1125 = vadd.f32 %v1028, %v1093
      %v1126 = vadd.f32 %v1029, %v1094
      %v1127 = vadd.f32 %v1030, %v1095
      %v1128 = vadd.f32 %v1031, %v1096
      %v1129 = vadd.f32 %v1032, %v1097
      %v1130 = vadd.f32 %v1033, %v1098
      %v1131 = vadd.f32 %v1034, %v1099
      %v1132 = vadd.f32 %v1035, %v1100
      %v1133 = vadd.f32 %v1036, %v1101
      %v1134 = vadd.f32 %v1037, %v1102
      %v1135 = vadd.f32 %v1038, %v1103
      %v1136 = vadd.f32 %v1039, %v1104
      %v1137 = vadd.f32 %v1040, %v1105
      %v1138 = vadd.f32 %v1041, %v1106
      %v1139 = vadd.f32 %v1042, %v1107
      %v1140 = vadd.f32 %v1043, %v1108
      %v1141 = vadd.f32 %v1044, %v1109
      %v1142 = vadd.f32 %v1045, %v1110
      %v1143 = vadd.f32 %v1046, %v1111
      %v1144 = vadd.f32 %v1047, %v1112
      %v1145 = vadd.f32 %v1048, %v1113
      %v1146 = vadd.f32 %v1049, %v1114
      %v1147 = vadd.f32 %v1050, %v1115
      %v1148 = vadd.f32 %v1051, %v1116
      %v1149 = vadd.f32 %v1052, %v1117
      %v1150 = vadd.f32 %v1053, %v1118
      %v1151 = vadd.f32 %v1054, %v1119
      %v1152 = vadd.f32 %v1055, %v1120
      %v1153 = vadd.f32 %v1056, %v1121
      %v1154 = vld [vmem:[%s726] sm:$0xff]
      %v1155 = vld [vmem:[%s726 + $0x8] sm:$0xff]
      %v1156 = vld [vmem:[%s726 + $0x18] sm:$0xff]
      %v1157 = vld [vmem:[%s726 + $0x20] sm:$0xff]
      %v1158 = vld [vmem:[%s726 + $0x30] sm:$0xff]
      %v1159 = vld [vmem:[%s726 + $0x38] sm:$0xff]
      %v1160 = vld [vmem:[%s726 + $0x48] sm:$0xff]
      %v1161 = vld [vmem:[%s726 + $0x50] sm:$0xff]
      %v1162 = vld [vmem:[%s726 + $0x60] sm:$0xff]
      %v1163 = vld [vmem:[%s726 + $0x68] sm:$0xff]
      %v1164 = vld [vmem:[%s726 + $0x78] sm:$0xff]
      %v1165 = vld [vmem:[%s726 + $0x80] sm:$0xff]
      %v1166 = vld [vmem:[%s726 + $0x90] sm:$0xff]
      %v1167 = vld [vmem:[%s726 + $0x98] sm:$0xff]
      %v1168 = vld [vmem:[%s726 + $0xa8] sm:$0xff]
      %v1169 = vld [vmem:[%s726 + $0xb0] sm:$0xff]
      %v1170 = vld [vmem:[%s726 + $0xc0] sm:$0xff]
      %v1171 = vld [vmem:[%s726 + $0xc8] sm:$0xff]
      %v1172 = vld [vmem:[%s726 + $0xd8] sm:$0xff]
      %v1173 = vld [vmem:[%s726 + $0xe0] sm:$0xff]
      %v1174 = vld [vmem:[%s726 + $0xf0] sm:$0xff]
      %v1175 = vld [vmem:[%s726 + $0xf8] sm:$0xff]
      %v1176 = vld [vmem:[%s726 + $0x108] sm:$0xff]
      %v1177 = vld [vmem:[%s726 + $0x110] sm:$0xff]
      %v1178 = vld [vmem:[%s726 + $0x120] sm:$0xff]
      %v1179 = vld [vmem:[%s726 + $0x128] sm:$0xff]
      %v1180 = vld [vmem:[%s726 + $0x138] sm:$0xff]
      %v1181 = vld [vmem:[%s726 + $0x140] sm:$0xff]
      %v1182 = vld [vmem:[%s726 + $0x150] sm:$0xff]
      %v1183 = vld [vmem:[%s726 + $0x158] sm:$0xff]
      %v1184 = vld [vmem:[%s726 + $0x168] sm:$0xff]
      %v1185 = vld [vmem:[%s726 + $0x170] sm:$0xff]
      %v1186 = vperm.slane %v861, 3
      %v1187 = vmul.f32 %v1186, %v1154
      %v1188 = vmul.f32 %v1186, %v1155
      %v1189 = vmul.f32 %v1186, %v1156
      %v1190 = vmul.f32 %v1186, %v1157
      %v1191 = vmul.f32 %v1186, %v1158
      %v1192 = vmul.f32 %v1186, %v1159
      %v1193 = vmul.f32 %v1186, %v1160
      %v1194 = vmul.f32 %v1186, %v1161
      %v1195 = vmul.f32 %v1186, %v1162
      %v1196 = vmul.f32 %v1186, %v1163
      %v1197 = vmul.f32 %v1186, %v1164
      %v1198 = vmul.f32 %v1186, %v1165
      %v1199 = vmul.f32 %v1186, %v1166
      %v1200 = vmul.f32 %v1186, %v1167
      %v1201 = vmul.f32 %v1186, %v1168
      %v1202 = vmul.f32 %v1186, %v1169
      %v1203 = vmul.f32 %v1186, %v1170
      %v1204 = vmul.f32 %v1186, %v1171
      %v1205 = vmul.f32 %v1186, %v1172
      %v1206 = vmul.f32 %v1186, %v1173
      %v1207 = vmul.f32 %v1186, %v1174
      %v1208 = vmul.f32 %v1186, %v1175
      %v1209 = vmul.f32 %v1186, %v1176
      %v1210 = vmul.f32 %v1186, %v1177
      %v1211 = vmul.f32 %v1186, %v1178
      %v1212 = vmul.f32 %v1186, %v1179
      %v1213 = vmul.f32 %v1186, %v1180
      %v1214 = vmul.f32 %v1186, %v1181
      %v1215 = vmul.f32 %v1186, %v1182
      %v1216 = vmul.f32 %v1186, %v1183
      %v1217 = vmul.f32 %v1186, %v1184
      %v1218 = vmul.f32 %v1186, %v1185
      %v1219 = vadd.f32 %v1122, %v1187
      %v1220 = vadd.f32 %v1123, %v1188
      %v1221 = vadd.f32 %v1124, %v1189
      %v1222 = vadd.f32 %v1125, %v1190
      %v1223 = vadd.f32 %v1126, %v1191
      %v1224 = vadd.f32 %v1127, %v1192
      %v1225 = vadd.f32 %v1128, %v1193
      %v1226 = vadd.f32 %v1129, %v1194
      %v1227 = vadd.f32 %v1130, %v1195
      %v1228 = vadd.f32 %v1131, %v1196
      %v1229 = vadd.f32 %v1132, %v1197
      %v1230 = vadd.f32 %v1133, %v1198
      %v1231 = vadd.f32 %v1134, %v1199
      %v1232 = vadd.f32 %v1135, %v1200
      %v1233 = vadd.f32 %v1136, %v1201
      %v1234 = vadd.f32 %v1137, %v1202
      %v1235 = vadd.f32 %v1138, %v1203
      %v1236 = vadd.f32 %v1139, %v1204
      %v1237 = vadd.f32 %v1140, %v1205
      %v1238 = vadd.f32 %v1141, %v1206
      %v1239 = vadd.f32 %v1142, %v1207
      %v1240 = vadd.f32 %v1143, %v1208
      %v1241 = vadd.f32 %v1144, %v1209
      %v1242 = vadd.f32 %v1145, %v1210
      %v1243 = vadd.f32 %v1146, %v1211
      %v1244 = vadd.f32 %v1147, %v1212
      %v1245 = vadd.f32 %v1148, %v1213
      %v1246 = vadd.f32 %v1149, %v1214
      %v1247 = vadd.f32 %v1150, %v1215
      %v1248 = vadd.f32 %v1151, %v1216
      %v1249 = vadd.f32 %v1152, %v1217
      %v1250 = vadd.f32 %v1153, %v1218
      %v1251 = vld [vmem:[%s726 + $0x1] sm:$0xff]
      %v1252 = vld [vmem:[%s726 + $0x9] sm:$0xff]
      %v1253 = vld [vmem:[%s726 + $0x19] sm:$0xff]
      %v1254 = vld [vmem:[%s726 + $0x21] sm:$0xff]
      %v1255 = vld [vmem:[%s726 + $0x31] sm:$0xff]
      %v1256 = vld [vmem:[%s726 + $0x39] sm:$0xff]
      %v1257 = vld [vmem:[%s726 + $0x49] sm:$0xff]
      %v1258 = vld [vmem:[%s726 + $0x51] sm:$0xff]
      %v1259 = vld [vmem:[%s726 + $0x61] sm:$0xff]
      %v1260 = vld [vmem:[%s726 + $0x69] sm:$0xff]
      %v1261 = vld [vmem:[%s726 + $0x79] sm:$0xff]
      %v1262 = vld [vmem:[%s726 + $0x81] sm:$0xff]
      %v1263 = vld [vmem:[%s726 + $0x91] sm:$0xff]
      %v1264 = vld [vmem:[%s726 + $0x99] sm:$0xff]
      %v1265 = vld [vmem:[%s726 + $0xa9] sm:$0xff]
      %v1266 = vld [vmem:[%s726 + $0xb1] sm:$0xff]
      %v1267 = vld [vmem:[%s726 + $0xc1] sm:$0xff]
      %v1268 = vld [vmem:[%s726 + $0xc9] sm:$0xff]
      %v1269 = vld [vmem:[%s726 + $0xd9] sm:$0xff]
      %v1270 = vld [vmem:[%s726 + $0xe1] sm:$0xff]
      %v1271 = vld [vmem:[%s726 + $0xf1] sm:$0xff]
      %v1272 = vld [vmem:[%s726 + $0xf9] sm:$0xff]
      %v1273 = vld [vmem:[%s726 + $0x109] sm:$0xff]
      %v1274 = vld [vmem:[%s726 + $0x111] sm:$0xff]
      %v1275 = vld [vmem:[%s726 + $0x121] sm:$0xff]
      %v1276 = vld [vmem:[%s726 + $0x129] sm:$0xff]
      %v1277 = vld [vmem:[%s726 + $0x139] sm:$0xff]
      %v1278 = vld [vmem:[%s726 + $0x141] sm:$0xff]
      %v1279 = vld [vmem:[%s726 + $0x151] sm:$0xff]
      %v1280 = vld [vmem:[%s726 + $0x159] sm:$0xff]
      %v1281 = vld [vmem:[%s726 + $0x169] sm:$0xff]
      %v1282 = vld [vmem:[%s726 + $0x171] sm:$0xff]
      %v1283 = vperm.slane %v861, 4
      %v1284 = vmul.f32 %v1283, %v1251
      %v1285 = vmul.f32 %v1283, %v1252
      %v1286 = vmul.f32 %v1283, %v1253
      %v1287 = vmul.f32 %v1283, %v1254
      %v1288 = vmul.f32 %v1283, %v1255
      %v1289 = vmul.f32 %v1283, %v1256
      %v1290 = vmul.f32 %v1283, %v1257
      %v1291 = vmul.f32 %v1283, %v1258
      %v1292 = vmul.f32 %v1283, %v1259
      %v1293 = vmul.f32 %v1283, %v1260
      %v1294 = vmul.f32 %v1283, %v1261
      %v1295 = vmul.f32 %v1283, %v1262
      %v1296 = vmul.f32 %v1283, %v1263
      %v1297 = vmul.f32 %v1283, %v1264
      %v1298 = vmul.f32 %v1283, %v1265
      %v1299 = vmul.f32 %v1283, %v1266
      %v1300 = vmul.f32 %v1283, %v1267
      %v1301 = vmul.f32 %v1283, %v1268
      %v1302 = vmul.f32 %v1283, %v1269
      %v1303 = vmul.f32 %v1283, %v1270
      %v1304 = vmul.f32 %v1283, %v1271
      %v1305 = vmul.f32 %v1283, %v1272
      %v1306 = vmul.f32 %v1283, %v1273
      %v1307 = vmul.f32 %v1283, %v1274
      %v1308 = vmul.f32 %v1283, %v1275
      %v1309 = vmul.f32 %v1283, %v1276
      %v1310 = vmul.f32 %v1283, %v1277
      %v1311 = vmul.f32 %v1283, %v1278
      %v1312 = vmul.f32 %v1283, %v1279
      %v1313 = vmul.f32 %v1283, %v1280
      %v1314 = vmul.f32 %v1283, %v1281
      %v1315 = vmul.f32 %v1283, %v1282
      %v1316 = vadd.f32 %v1219, %v1284
      %v1317 = vadd.f32 %v1220, %v1285
      %v1318 = vadd.f32 %v1221, %v1286
      %v1319 = vadd.f32 %v1222, %v1287
      %v1320 = vadd.f32 %v1223, %v1288
      %v1321 = vadd.f32 %v1224, %v1289
      %v1322 = vadd.f32 %v1225, %v1290
      %v1323 = vadd.f32 %v1226, %v1291
      %v1324 = vadd.f32 %v1227, %v1292
      %v1325 = vadd.f32 %v1228, %v1293
      %v1326 = vadd.f32 %v1229, %v1294
      %v1327 = vadd.f32 %v1230, %v1295
      %v1328 = vadd.f32 %v1231, %v1296
      %v1329 = vadd.f32 %v1232, %v1297
      %v1330 = vadd.f32 %v1233, %v1298
      %v1331 = vadd.f32 %v1234, %v1299
      %v1332 = vadd.f32 %v1235, %v1300
      %v1333 = vadd.f32 %v1236, %v1301
      %v1334 = vadd.f32 %v1237, %v1302
      %v1335 = vadd.f32 %v1238, %v1303
      %v1336 = vadd.f32 %v1239, %v1304
      %v1337 = vadd.f32 %v1240, %v1305
      %v1338 = vadd.f32 %v1241, %v1306
      %v1339 = vadd.f32 %v1242, %v1307
      %v1340 = vadd.f32 %v1243, %v1308
      %v1341 = vadd.f32 %v1244, %v1309
      %v1342 = vadd.f32 %v1245, %v1310
      %v1343 = vadd.f32 %v1246, %v1311
      %v1344 = vadd.f32 %v1247, %v1312
      %v1345 = vadd.f32 %v1248, %v1313
      %v1346 = vadd.f32 %v1249, %v1314
      %v1347 = vadd.f32 %v1250, %v1315
      %v1348 = vld [vmem:[%s726 + $0x2] sm:$0xff]
      %v1349 = vld [vmem:[%s726 + $0xa] sm:$0xff]
      %v1350 = vld [vmem:[%s726 + $0x1a] sm:$0xff]
      %v1351 = vld [vmem:[%s726 + $0x22] sm:$0xff]
      %v1352 = vld [vmem:[%s726 + $0x32] sm:$0xff]
      %v1353 = vld [vmem:[%s726 + $0x3a] sm:$0xff]
      %v1354 = vld [vmem:[%s726 + $0x4a] sm:$0xff]
      %v1355 = vld [vmem:[%s726 + $0x52] sm:$0xff]
      %v1356 = vld [vmem:[%s726 + $0x62] sm:$0xff]
      %v1357 = vld [vmem:[%s726 + $0x6a] sm:$0xff]
      %v1358 = vld [vmem:[%s726 + $0x7a] sm:$0xff]
      %v1359 = vld [vmem:[%s726 + $0x82] sm:$0xff]
      %v1360 = vld [vmem:[%s726 + $0x92] sm:$0xff]
      %v1361 = vld [vmem:[%s726 + $0x9a] sm:$0xff]
      %v1362 = vld [vmem:[%s726 + $0xaa] sm:$0xff]
      %v1363 = vld [vmem:[%s726 + $0xb2] sm:$0xff]
      %v1364 = vld [vmem:[%s726 + $0xc2] sm:$0xff]
      %v1365 = vld [vmem:[%s726 + $0xca] sm:$0xff]
      %v1366 = vld [vmem:[%s726 + $0xda] sm:$0xff]
      %v1367 = vld [vmem:[%s726 + $0xe2] sm:$0xff]
      %v1368 = vld [vmem:[%s726 + $0xf2] sm:$0xff]
      %v1369 = vld [vmem:[%s726 + $0xfa] sm:$0xff]
      %v1370 = vld [vmem:[%s726 + $0x10a] sm:$0xff]
      %v1371 = vld [vmem:[%s726 + $0x112] sm:$0xff]
      %v1372 = vld [vmem:[%s726 + $0x122] sm:$0xff]
      %v1373 = vld [vmem:[%s726 + $0x12a] sm:$0xff]
      %v1374 = vld [vmem:[%s726 + $0x13a] sm:$0xff]
      %v1375 = vld [vmem:[%s726 + $0x142] sm:$0xff]
      %v1376 = vld [vmem:[%s726 + $0x152] sm:$0xff]
      %v1377 = vld [vmem:[%s726 + $0x15a] sm:$0xff]
      %v1378 = vld [vmem:[%s726 + $0x16a] sm:$0xff]
      %v1379 = vld [vmem:[%s726 + $0x172] sm:$0xff]
      %v1380 = vperm.slane %v861, 5
      %v1381 = vmul.f32 %v1380, %v1348
      %v1382 = vmul.f32 %v1380, %v1349
      %v1383 = vmul.f32 %v1380, %v1350
      %v1384 = vmul.f32 %v1380, %v1351
      %v1385 = vmul.f32 %v1380, %v1352
      %v1386 = vmul.f32 %v1380, %v1353
      %v1387 = vmul.f32 %v1380, %v1354
      %v1388 = vmul.f32 %v1380, %v1355
      %v1389 = vmul.f32 %v1380, %v1356
      %v1390 = vmul.f32 %v1380, %v1357
      %v1391 = vmul.f32 %v1380, %v1358
      %v1392 = vmul.f32 %v1380, %v1359
      %v1393 = vmul.f32 %v1380, %v1360
      %v1394 = vmul.f32 %v1380, %v1361
      %v1395 = vmul.f32 %v1380, %v1362
      %v1396 = vmul.f32 %v1380, %v1363
      %v1397 = vmul.f32 %v1380, %v1364
      %v1398 = vmul.f32 %v1380, %v1365
      %v1399 = vmul.f32 %v1380, %v1366
      %v1400 = vmul.f32 %v1380, %v1367
      %v1401 = vmul.f32 %v1380, %v1368
      %v1402 = vmul.f32 %v1380, %v1369
      %v1403 = vmul.f32 %v1380, %v1370
      %v1404 = vmul.f32 %v1380, %v1371
      %v1405 = vmul.f32 %v1380, %v1372
      %v1406 = vmul.f32 %v1380, %v1373
      %v1407 = vmul.f32 %v1380, %v1374
      %v1408 = vmul.f32 %v1380, %v1375
      %v1409 = vmul.f32 %v1380, %v1376
      %v1410 = vmul.f32 %v1380, %v1377
      %v1411 = vmul.f32 %v1380, %v1378
      %v1412 = vmul.f32 %v1380, %v1379
      %v1413 = vadd.f32 %v1316, %v1381
      %v1414 = vadd.f32 %v1317, %v1382
      %v1415 = vadd.f32 %v1318, %v1383
      %v1416 = vadd.f32 %v1319, %v1384
      %v1417 = vadd.f32 %v1320, %v1385
      %v1418 = vadd.f32 %v1321, %v1386
      %v1419 = vadd.f32 %v1322, %v1387
      %v1420 = vadd.f32 %v1323, %v1388
      %v1421 = vadd.f32 %v1324, %v1389
      %v1422 = vadd.f32 %v1325, %v1390
      %v1423 = vadd.f32 %v1326, %v1391
      %v1424 = vadd.f32 %v1327, %v1392
      %v1425 = vadd.f32 %v1328, %v1393
      %v1426 = vadd.f32 %v1329, %v1394
      %v1427 = vadd.f32 %v1330, %v1395
      %v1428 = vadd.f32 %v1331, %v1396
      %v1429 = vadd.f32 %v1332, %v1397
      %v1430 = vadd.f32 %v1333, %v1398
      %v1431 = vadd.f32 %v1334, %v1399
      %v1432 = vadd.f32 %v1335, %v1400
      %v1433 = vadd.f32 %v1336, %v1401
      %v1434 = vadd.f32 %v1337, %v1402
      %v1435 = vadd.f32 %v1338, %v1403
      %v1436 = vadd.f32 %v1339, %v1404
      %v1437 = vadd.f32 %v1340, %v1405
      %v1438 = vadd.f32 %v1341, %v1406
      %v1439 = vadd.f32 %v1342, %v1407
      %v1440 = vadd.f32 %v1343, %v1408
      %v1441 = vadd.f32 %v1344, %v1409
      %v1442 = vadd.f32 %v1345, %v1410
      %v1443 = vadd.f32 %v1346, %v1411
      %v1444 = vadd.f32 %v1347, %v1412
      %s1445 = scalar_lea.vmem [#allocation2], 48
      %v1446 = vld [vmem:[%s1445] sm:$0xff]
      %v1447 = vld [vmem:[%s1445 + $0x8] sm:$0xff]
      %v1448 = vld [vmem:[%s1445 + $0x18] sm:$0xff]
      %v1449 = vld [vmem:[%s1445 + $0x20] sm:$0xff]
      %v1450 = vld [vmem:[%s1445 + $0x30] sm:$0xff]
      %v1451 = vld [vmem:[%s1445 + $0x38] sm:$0xff]
      %v1452 = vld [vmem:[%s1445 + $0x48] sm:$0xff]
      %v1453 = vld [vmem:[%s1445 + $0x50] sm:$0xff]
      %v1454 = vld [vmem:[%s1445 + $0x60] sm:$0xff]
      %v1455 = vld [vmem:[%s1445 + $0x68] sm:$0xff]
      %v1456 = vld [vmem:[%s1445 + $0x78] sm:$0xff]
      %v1457 = vld [vmem:[%s1445 + $0x80] sm:$0xff]
      %v1458 = vld [vmem:[%s1445 + $0x90] sm:$0xff]
      %v1459 = vld [vmem:[%s1445 + $0x98] sm:$0xff]
      %v1460 = vld [vmem:[%s1445 + $0xa8] sm:$0xff]
      %v1461 = vld [vmem:[%s1445 + $0xb0] sm:$0xff]
      %v1462 = vld [vmem:[%s1445 + $0xc0] sm:$0xff]
      %v1463 = vld [vmem:[%s1445 + $0xc8] sm:$0xff]
      %v1464 = vld [vmem:[%s1445 + $0xd8] sm:$0xff]
      %v1465 = vld [vmem:[%s1445 + $0xe0] sm:$0xff]
      %v1466 = vld [vmem:[%s1445 + $0xf0] sm:$0xff]
      %v1467 = vld [vmem:[%s1445 + $0xf8] sm:$0xff]
      %v1468 = vld [vmem:[%s1445 + $0x108] sm:$0xff]
      %v1469 = vld [vmem:[%s1445 + $0x110] sm:$0xff]
      %v1470 = vld [vmem:[%s1445 + $0x120] sm:$0xff]
      %v1471 = vld [vmem:[%s1445 + $0x128] sm:$0xff]
      %v1472 = vld [vmem:[%s1445 + $0x138] sm:$0xff]
      %v1473 = vld [vmem:[%s1445 + $0x140] sm:$0xff]
      %v1474 = vld [vmem:[%s1445 + $0x150] sm:$0xff]
      %v1475 = vld [vmem:[%s1445 + $0x158] sm:$0xff]
      %v1476 = vld [vmem:[%s1445 + $0x168] sm:$0xff]
      %v1477 = vld [vmem:[%s1445 + $0x170] sm:$0xff]
      %v1478 = vperm.slane %v861, 6
      %v1479 = vmul.f32 %v1478, %v1446
      %v1480 = vmul.f32 %v1478, %v1447
      %v1481 = vmul.f32 %v1478, %v1448
      %v1482 = vmul.f32 %v1478, %v1449
      %v1483 = vmul.f32 %v1478, %v1450
      %v1484 = vmul.f32 %v1478, %v1451
      %v1485 = vmul.f32 %v1478, %v1452
      %v1486 = vmul.f32 %v1478, %v1453
      %v1487 = vmul.f32 %v1478, %v1454
      %v1488 = vmul.f32 %v1478, %v1455
      %v1489 = vmul.f32 %v1478, %v1456
      %v1490 = vmul.f32 %v1478, %v1457
      %v1491 = vmul.f32 %v1478, %v1458
      %v1492 = vmul.f32 %v1478, %v1459
      %v1493 = vmul.f32 %v1478, %v1460
      %v1494 = vmul.f32 %v1478, %v1461
      %v1495 = vmul.f32 %v1478, %v1462
      %v1496 = vmul.f32 %v1478, %v1463
      %v1497 = vmul.f32 %v1478, %v1464
      %v1498 = vmul.f32 %v1478, %v1465
      %v1499 = vmul.f32 %v1478, %v1466
      %v1500 = vmul.f32 %v1478, %v1467
      %v1501 = vmul.f32 %v1478, %v1468
      %v1502 = vmul.f32 %v1478, %v1469
      %v1503 = vmul.f32 %v1478, %v1470
      %v1504 = vmul.f32 %v1478, %v1471
      %v1505 = vmul.f32 %v1478, %v1472
      %v1506 = vmul.f32 %v1478, %v1473
      %v1507 = vmul.f32 %v1478, %v1474
      %v1508 = vmul.f32 %v1478, %v1475
      %v1509 = vmul.f32 %v1478, %v1476
      %v1510 = vmul.f32 %v1478, %v1477
      %v1511 = vadd.f32 %v1413, %v1479
      %v1512 = vadd.f32 %v1414, %v1480
      %v1513 = vadd.f32 %v1415, %v1481
      %v1514 = vadd.f32 %v1416, %v1482
      %v1515 = vadd.f32 %v1417, %v1483
      %v1516 = vadd.f32 %v1418, %v1484
      %v1517 = vadd.f32 %v1419, %v1485
      %v1518 = vadd.f32 %v1420, %v1486
      %v1519 = vadd.f32 %v1421, %v1487
      %v1520 = vadd.f32 %v1422, %v1488
      %v1521 = vadd.f32 %v1423, %v1489
      %v1522 = vadd.f32 %v1424, %v1490
      %v1523 = vadd.f32 %v1425, %v1491
      %v1524 = vadd.f32 %v1426, %v1492
      %v1525 = vadd.f32 %v1427, %v1493
      %v1526 = vadd.f32 %v1428, %v1494
      %v1527 = vadd.f32 %v1429, %v1495
      %v1528 = vadd.f32 %v1430, %v1496
      %v1529 = vadd.f32 %v1431, %v1497
      %v1530 = vadd.f32 %v1432, %v1498
      %v1531 = vadd.f32 %v1433, %v1499
      %v1532 = vadd.f32 %v1434, %v1500
      %v1533 = vadd.f32 %v1435, %v1501
      %v1534 = vadd.f32 %v1436, %v1502
      %v1535 = vadd.f32 %v1437, %v1503
      %v1536 = vadd.f32 %v1438, %v1504
      %v1537 = vadd.f32 %v1439, %v1505
      %v1538 = vadd.f32 %v1440, %v1506
      %v1539 = vadd.f32 %v1441, %v1507
      %v1540 = vadd.f32 %v1442, %v1508
      %v1541 = vadd.f32 %v1443, %v1509
      %v1542 = vadd.f32 %v1444, %v1510
      %v1543 = vld [vmem:[%s1445 + $0x1] sm:$0xff]
      %v1544 = vld [vmem:[%s1445 + $0x9] sm:$0xff]
      %v1545 = vld [vmem:[%s1445 + $0x19] sm:$0xff]
      %v1546 = vld [vmem:[%s1445 + $0x21] sm:$0xff]
      %v1547 = vld [vmem:[%s1445 + $0x31] sm:$0xff]
      %v1548 = vld [vmem:[%s1445 + $0x39] sm:$0xff]
      %v1549 = vld [vmem:[%s1445 + $0x49] sm:$0xff]
      %v1550 = vld [vmem:[%s1445 + $0x51] sm:$0xff]
      %v1551 = vld [vmem:[%s1445 + $0x61] sm:$0xff]
      %v1552 = vld [vmem:[%s1445 + $0x69] sm:$0xff]
      %v1553 = vld [vmem:[%s1445 + $0x79] sm:$0xff]
      %v1554 = vld [vmem:[%s1445 + $0x81] sm:$0xff]
      %v1555 = vld [vmem:[%s1445 + $0x91] sm:$0xff]
      %v1556 = vld [vmem:[%s1445 + $0x99] sm:$0xff]
      %v1557 = vld [vmem:[%s1445 + $0xa9] sm:$0xff]
      %v1558 = vld [vmem:[%s1445 + $0xb1] sm:$0xff]
      %v1559 = vld [vmem:[%s1445 + $0xc1] sm:$0xff]
      %v1560 = vld [vmem:[%s1445 + $0xc9] sm:$0xff]
      %v1561 = vld [vmem:[%s1445 + $0xd9] sm:$0xff]
      %v1562 = vld [vmem:[%s1445 + $0xe1] sm:$0xff]
      %v1563 = vld [vmem:[%s1445 + $0xf1] sm:$0xff]
      %v1564 = vld [vmem:[%s1445 + $0xf9] sm:$0xff]
      %v1565 = vld [vmem:[%s1445 + $0x109] sm:$0xff]
      %v1566 = vld [vmem:[%s1445 + $0x111] sm:$0xff]
      %v1567 = vld [vmem:[%s1445 + $0x121] sm:$0xff]
      %v1568 = vld [vmem:[%s1445 + $0x129] sm:$0xff]
      %v1569 = vld [vmem:[%s1445 + $0x139] sm:$0xff]
      %v1570 = vld [vmem:[%s1445 + $0x141] sm:$0xff]
      %v1571 = vld [vmem:[%s1445 + $0x151] sm:$0xff]
      %v1572 = vld [vmem:[%s1445 + $0x159] sm:$0xff]
      %v1573 = vld [vmem:[%s1445 + $0x169] sm:$0xff]
      %v1574 = vld [vmem:[%s1445 + $0x171] sm:$0xff]
      %v1575 = vperm.slane %v861, 7
      %v1576 = vmul.f32 %v1575, %v1543
      %v1577 = vmul.f32 %v1575, %v1544
      %v1578 = vmul.f32 %v1575, %v1545
      %v1579 = vmul.f32 %v1575, %v1546
      %v1580 = vmul.f32 %v1575, %v1547
      %v1581 = vmul.f32 %v1575, %v1548
      %v1582 = vmul.f32 %v1575, %v1549
      %v1583 = vmul.f32 %v1575, %v1550
      %v1584 = vmul.f32 %v1575, %v1551
      %v1585 = vmul.f32 %v1575, %v1552
      %v1586 = vmul.f32 %v1575, %v1553
      %v1587 = vmul.f32 %v1575, %v1554
      %v1588 = vmul.f32 %v1575, %v1555
      %v1589 = vmul.f32 %v1575, %v1556
      %v1590 = vmul.f32 %v1575, %v1557
      %v1591 = vmul.f32 %v1575, %v1558
      %v1592 = vmul.f32 %v1575, %v1559
      %v1593 = vmul.f32 %v1575, %v1560
      %v1594 = vmul.f32 %v1575, %v1561
      %v1595 = vmul.f32 %v1575, %v1562
      %v1596 = vmul.f32 %v1575, %v1563
      %v1597 = vmul.f32 %v1575, %v1564
      %v1598 = vmul.f32 %v1575, %v1565
      %v1599 = vmul.f32 %v1575, %v1566
      %v1600 = vmul.f32 %v1575, %v1567
      %v1601 = vmul.f32 %v1575, %v1568
      %v1602 = vmul.f32 %v1575, %v1569
      %v1603 = vmul.f32 %v1575, %v1570
      %v1604 = vmul.f32 %v1575, %v1571
      %v1605 = vmul.f32 %v1575, %v1572
      %v1606 = vmul.f32 %v1575, %v1573
      %v1607 = vmul.f32 %v1575, %v1574
      %v1608 = vadd.f32 %v1511, %v1576
      %v1609 = vadd.f32 %v1512, %v1577
      %v1610 = vadd.f32 %v1513, %v1578
      %v1611 = vadd.f32 %v1514, %v1579
      %v1612 = vadd.f32 %v1515, %v1580
      %v1613 = vadd.f32 %v1516, %v1581
      %v1614 = vadd.f32 %v1517, %v1582
      %v1615 = vadd.f32 %v1518, %v1583
      %v1616 = vadd.f32 %v1519, %v1584
      %v1617 = vadd.f32 %v1520, %v1585
      %v1618 = vadd.f32 %v1521, %v1586
      %v1619 = vadd.f32 %v1522, %v1587
      %v1620 = vadd.f32 %v1523, %v1588
      %v1621 = vadd.f32 %v1524, %v1589
      %v1622 = vadd.f32 %v1525, %v1590
      %v1623 = vadd.f32 %v1526, %v1591
      %v1624 = vadd.f32 %v1527, %v1592
      %v1625 = vadd.f32 %v1528, %v1593
      %v1626 = vadd.f32 %v1529, %v1594
      %v1627 = vadd.f32 %v1530, %v1595
      %v1628 = vadd.f32 %v1531, %v1596
      %v1629 = vadd.f32 %v1532, %v1597
      %v1630 = vadd.f32 %v1533, %v1598
      %v1631 = vadd.f32 %v1534, %v1599
      %v1632 = vadd.f32 %v1535, %v1600
      %v1633 = vadd.f32 %v1536, %v1601
      %v1634 = vadd.f32 %v1537, %v1602
      %v1635 = vadd.f32 %v1538, %v1603
      %v1636 = vadd.f32 %v1539, %v1604
      %v1637 = vadd.f32 %v1540, %v1605
      %v1638 = vadd.f32 %v1541, %v1606
      %v1639 = vadd.f32 %v1542, %v1607
      %v1640 = vld [vmem:[%s1445 + $0x2] sm:$0xff]
      %v1641 = vld [vmem:[%s1445 + $0xa] sm:$0xff]
      %v1642 = vld [vmem:[%s1445 + $0x1a] sm:$0xff]
      %v1643 = vld [vmem:[%s1445 + $0x22] sm:$0xff]
      %v1644 = vld [vmem:[%s1445 + $0x32] sm:$0xff]
      %v1645 = vld [vmem:[%s1445 + $0x3a] sm:$0xff]
      %v1646 = vld [vmem:[%s1445 + $0x4a] sm:$0xff]
      %v1647 = vld [vmem:[%s1445 + $0x52] sm:$0xff]
      %v1648 = vld [vmem:[%s1445 + $0x62] sm:$0xff]
      %v1649 = vld [vmem:[%s1445 + $0x6a] sm:$0xff]
      %v1650 = vld [vmem:[%s1445 + $0x7a] sm:$0xff]
      %v1651 = vld [vmem:[%s1445 + $0x82] sm:$0xff]
      %v1652 = vld [vmem:[%s1445 + $0x92] sm:$0xff]
      %v1653 = vld [vmem:[%s1445 + $0x9a] sm:$0xff]
      %v1654 = vld [vmem:[%s1445 + $0xaa] sm:$0xff]
      %v1655 = vld [vmem:[%s1445 + $0xb2] sm:$0xff]
      %v1656 = vld [vmem:[%s1445 + $0xc2] sm:$0xff]
      %v1657 = vld [vmem:[%s1445 + $0xca] sm:$0xff]
      %v1658 = vld [vmem:[%s1445 + $0xda] sm:$0xff]
      %v1659 = vld [vmem:[%s1445 + $0xe2] sm:$0xff]
      %v1660 = vld [vmem:[%s1445 + $0xf2] sm:$0xff]
      %v1661 = vld [vmem:[%s1445 + $0xfa] sm:$0xff]
      %v1662 = vld [vmem:[%s1445 + $0x10a] sm:$0xff]
      %v1663 = vld [vmem:[%s1445 + $0x112] sm:$0xff]
      %v1664 = vld [vmem:[%s1445 + $0x122] sm:$0xff]
      %v1665 = vld [vmem:[%s1445 + $0x12a] sm:$0xff]
      %v1666 = vld [vmem:[%s1445 + $0x13a] sm:$0xff]
      %v1667 = vld [vmem:[%s1445 + $0x142] sm:$0xff]
      %v1668 = vld [vmem:[%s1445 + $0x152] sm:$0xff]
      %v1669 = vld [vmem:[%s1445 + $0x15a] sm:$0xff]
      %v1670 = vld [vmem:[%s1445 + $0x16a] sm:$0xff]
      %v1671 = vld [vmem:[%s1445 + $0x172] sm:$0xff]
      %v1672 = vperm.slane %v862, 0
      %v1673 = vmul.f32 %v1672, %v1640
      %v1674 = vmul.f32 %v1672, %v1641
      %v1675 = vmul.f32 %v1672, %v1642
      %v1676 = vmul.f32 %v1672, %v1643
      %v1677 = vmul.f32 %v1672, %v1644
      %v1678 = vmul.f32 %v1672, %v1645
      %v1679 = vmul.f32 %v1672, %v1646
      %v1680 = vmul.f32 %v1672, %v1647
      %v1681 = vmul.f32 %v1672, %v1648
      %v1682 = vmul.f32 %v1672, %v1649
      %v1683 = vmul.f32 %v1672, %v1650
      %v1684 = vmul.f32 %v1672, %v1651
      %v1685 = vmul.f32 %v1672, %v1652
      %v1686 = vmul.f32 %v1672, %v1653
      %v1687 = vmul.f32 %v1672, %v1654
      %v1688 = vmul.f32 %v1672, %v1655
      %v1689 = vmul.f32 %v1672, %v1656
      %v1690 = vmul.f32 %v1672, %v1657
      %v1691 = vmul.f32 %v1672, %v1658
      %v1692 = vmul.f32 %v1672, %v1659
      %v1693 = vmul.f32 %v1672, %v1660
      %v1694 = vmul.f32 %v1672, %v1661
      %v1695 = vmul.f32 %v1672, %v1662
      %v1696 = vmul.f32 %v1672, %v1663
      %v1697 = vmul.f32 %v1672, %v1664
      %v1698 = vmul.f32 %v1672, %v1665
      %v1699 = vmul.f32 %v1672, %v1666
      %v1700 = vmul.f32 %v1672, %v1667
      %v1701 = vmul.f32 %v1672, %v1668
      %v1702 = vmul.f32 %v1672, %v1669
      %v1703 = vmul.f32 %v1672, %v1670
      %v1704 = vmul.f32 %v1672, %v1671
      %v1705 = vadd.f32 %v1608, %v1673
      %v1706 = vadd.f32 %v1609, %v1674
      %v1707 = vadd.f32 %v1610, %v1675
      %v1708 = vadd.f32 %v1611, %v1676
      %v1709 = vadd.f32 %v1612, %v1677
      %v1710 = vadd.f32 %v1613, %v1678
      %v1711 = vadd.f32 %v1614, %v1679
      %v1712 = vadd.f32 %v1615, %v1680
      %v1713 = vadd.f32 %v1616, %v1681
      %v1714 = vadd.f32 %v1617, %v1682
      %v1715 = vadd.f32 %v1618, %v1683
      %v1716 = vadd.f32 %v1619, %v1684
      %v1717 = vadd.f32 %v1620, %v1685
      %v1718 = vadd.f32 %v1621, %v1686
      %v1719 = vadd.f32 %v1622, %v1687
      %v1720 = vadd.f32 %v1623, %v1688
      %v1721 = vadd.f32 %v1624, %v1689
      %v1722 = vadd.f32 %v1625, %v1690
      %v1723 = vadd.f32 %v1626, %v1691
      %v1724 = vadd.f32 %v1627, %v1692
      %v1725 = vadd.f32 %v1628, %v1693
      %v1726 = vadd.f32 %v1629, %v1694
      %v1727 = vadd.f32 %v1630, %v1695
      %v1728 = vadd.f32 %v1631, %v1696
      %v1729 = vadd.f32 %v1632, %v1697
      %v1730 = vadd.f32 %v1633, %v1698
      %v1731 = vadd.f32 %v1634, %v1699
      %v1732 = vadd.f32 %v1635, %v1700
      %v1733 = vadd.f32 %v1636, %v1701
      %v1734 = vadd.f32 %v1637, %v1702
      %v1735 = vadd.f32 %v1638, %v1703
      %v1736 = vadd.f32 %v1639, %v1704
      %v1737 = vxor.u32 %v199, 2147483648
      %v1738 = vxor.u32 %v200, 2147483648
      %v1739 = vxor.u32 %v201, 2147483648
      %v1740 = vxor.u32 %v202, 2147483648
      %v1741 = vxor.u32 %v203, 2147483648
      %v1742 = vxor.u32 %v204, 2147483648
      %v1743 = vxor.u32 %v205, 2147483648
      %v1744 = vxor.u32 %v206, 2147483648
      %v1745 = vxor.u32 %v207, 2147483648
      %v1746 = vxor.u32 %v208, 2147483648
      %v1747 = vxor.u32 %v209, 2147483648
      %v1748 = vxor.u32 %v210, 2147483648
      %v1749 = vxor.u32 %v211, 2147483648
      %v1750 = vxor.u32 %v212, 2147483648
      %v1751 = vxor.u32 %v213, 2147483648
      %v1752 = vxor.u32 %v214, 2147483648
      %v1753 = vxor.u32 %v215, 2147483648
      %v1754 = vxor.u32 %v216, 2147483648
      %v1755 = vxor.u32 %v217, 2147483648
      %v1756 = vxor.u32 %v218, 2147483648
      %v1757 = vxor.u32 %v219, 2147483648
      %v1758 = vxor.u32 %v220, 2147483648
      %v1759 = vxor.u32 %v221, 2147483648
      %v1760 = vxor.u32 %v222, 2147483648
      %v1761 = vxor.u32 %v223, 2147483648
      %v1762 = vxor.u32 %v224, 2147483648
      %v1763 = vxor.u32 %v225, 2147483648
      %v1764 = vxor.u32 %v226, 2147483648
      %v1765 = vxor.u32 %v227, 2147483648
      %v1766 = vxor.u32 %v228, 2147483648
      %v1767 = vxor.u32 %v229, 2147483648
      %v1768 = vxor.u32 %v230, 2147483648
      %v1769 = vmul.f32 %v1737, 1.442695
      %v1770 = vpow.pop %v1769
      %v1771 = vmul.f32 %v1738, 1.442695
      %v1772 = vpow.pop %v1771
      %v1773 = vmul.f32 %v1739, 1.442695
      %v1774 = vpow.pop %v1773
      %v1775 = vmul.f32 %v1740, 1.442695
      %v1776 = vpow.pop %v1775
      %v1777 = vmul.f32 %v1741, 1.442695
      %v1778 = vpow.pop %v1777
      %v1779 = vmul.f32 %v1742, 1.442695
      %v1780 = vpow.pop %v1779
      %v1781 = vmul.f32 %v1743, 1.442695
      %v1782 = vpow.pop %v1781
      %v1783 = vmul.f32 %v1744, 1.442695
      %v1784 = vpow.pop %v1783
      %v1785 = vmul.f32 %v1745, 1.442695
      %v1786 = vpow.pop %v1785
      %v1787 = vmul.f32 %v1746, 1.442695
      %v1788 = vpow.pop %v1787
      %v1789 = vmul.f32 %v1747, 1.442695
      %v1790 = vpow.pop %v1789
      %v1791 = vmul.f32 %v1748, 1.442695
      %v1792 = vpow.pop %v1791
      %v1793 = vmul.f32 %v1749, 1.442695
      %v1794 = vpow.pop %v1793
      %v1795 = vmul.f32 %v1750, 1.442695
      %v1796 = vpow.pop %v1795
      %v1797 = vmul.f32 %v1751, 1.442695
      %v1798 = vpow.pop %v1797
      %v1799 = vmul.f32 %v1752, 1.442695
      %v1800 = vpow.pop %v1799
      %v1801 = vmul.f32 %v1753, 1.442695
      %v1802 = vpow.pop %v1801
      %v1803 = vmul.f32 %v1754, 1.442695
      %v1804 = vpow.pop %v1803
      %v1805 = vmul.f32 %v1755, 1.442695
      %v1806 = vpow.pop %v1805
      %v1807 = vmul.f32 %v1756, 1.442695
      %v1808 = vpow.pop %v1807
      %v1809 = vmul.f32 %v1757, 1.442695
      %v1810 = vpow.pop %v1809
      %v1811 = vmul.f32 %v1758, 1.442695
      %v1812 = vpow.pop %v1811
      %v1813 = vmul.f32 %v1759, 1.442695
      %v1814 = vpow.pop %v1813
      %v1815 = vmul.f32 %v1760, 1.442695
      %v1816 = vpow.pop %v1815
      %v1817 = vmul.f32 %v1761, 1.442695
      %v1818 = vpow.pop %v1817
      %v1819 = vmul.f32 %v1762, 1.442695
      %v1820 = vpow.pop %v1819
      %v1821 = vmul.f32 %v1763, 1.442695
      %v1822 = vpow.pop %v1821
      %v1823 = vmul.f32 %v1764, 1.442695
      %v1824 = vpow.pop %v1823
      %v1825 = vmul.f32 %v1765, 1.442695
      %v1826 = vpow.pop %v1825
      %v1827 = vmul.f32 %v1766, 1.442695
      %v1828 = vpow.pop %v1827
      %v1829 = vmul.f32 %v1767, 1.442695
      %v1830 = vpow.pop %v1829
      %v1831 = vmul.f32 %v1768, 1.442695
      %v1832 = vpow.pop %v1831
      %v1833 = vadd.f32 %v1770, 1.0
      %v1834 = vadd.f32 %v1772, 1.0
      %v1835 = vadd.f32 %v1774, 1.0
      %v1836 = vadd.f32 %v1776, 1.0
      %v1837 = vadd.f32 %v1778, 1.0
      %v1838 = vadd.f32 %v1780, 1.0
      %v1839 = vadd.f32 %v1782, 1.0
      %v1840 = vadd.f32 %v1784, 1.0
      %v1841 = vadd.f32 %v1786, 1.0
      %v1842 = vadd.f32 %v1788, 1.0
      %v1843 = vadd.f32 %v1790, 1.0
      %v1844 = vadd.f32 %v1792, 1.0
      %v1845 = vadd.f32 %v1794, 1.0
      %v1846 = vadd.f32 %v1796, 1.0
      %v1847 = vadd.f32 %v1798, 1.0
      %v1848 = vadd.f32 %v1800, 1.0
      %v1849 = vadd.f32 %v1802, 1.0
      %v1850 = vadd.f32 %v1804, 1.0
      %v1851 = vadd.f32 %v1806, 1.0
      %v1852 = vadd.f32 %v1808, 1.0
      %v1853 = vadd.f32 %v1810, 1.0
      %v1854 = vadd.f32 %v1812, 1.0
      %v1855 = vadd.f32 %v1814, 1.0
      %v1856 = vadd.f32 %v1816, 1.0
      %v1857 = vadd.f32 %v1818, 1.0
      %v1858 = vadd.f32 %v1820, 1.0
      %v1859 = vadd.f32 %v1822, 1.0
      %v1860 = vadd.f32 %v1824, 1.0
      %v1861 = vadd.f32 %v1826, 1.0
      %v1862 = vadd.f32 %v1828, 1.0
      %v1863 = vadd.f32 %v1830, 1.0
      %v1864 = vadd.f32 %v1832, 1.0
      %v1865 = vrcp.pop %v1833
      %v1866 = vmul.f32 %v1833, %v1865
      %v1867 = vsub.f32 1.0, %v1866
      %v1868 = vmul.f32 %v1865, %v1867
      %v1869 = vadd.f32 %v1865, %v1868
      %vm1870 = vweird.f32 %v1833
      %vm1871 = vweird.f32 %v1865
      %vm1872 = vmor %vm1870, %vm1871
      %v1873 = vsel %vm1872, %v1865, %v1869
      %v1874 = vand.u32 2147483647, %v1833
      %vm1875 = vcmp.eq.f32.partialorder %v1874, 8.507059e+37
      %v1876 = vand.u32 %v1833, 2147483648
      %v1877 = vor.u32 1.1754944e-38, %v1876
      %v1878 = vsel %vm1875, %v1877, %v1873
      %v1879 = vmul.f32 1.0, %v1878
      %v1880 = vrcp.pop %v1834
      %v1881 = vmul.f32 %v1834, %v1880
      %v1882 = vsub.f32 1.0, %v1881
      %v1883 = vmul.f32 %v1880, %v1882
      %v1884 = vadd.f32 %v1880, %v1883
      %vm1885 = vweird.f32 %v1834
      %vm1886 = vweird.f32 %v1880
      %vm1887 = vmor %vm1885, %vm1886
      %v1888 = vsel %vm1887, %v1880, %v1884
      %v1889 = vand.u32 2147483647, %v1834
      %vm1890 = vcmp.eq.f32.partialorder %v1889, 8.507059e+37
      %v1891 = vand.u32 %v1834, 2147483648
      %v1892 = vor.u32 1.1754944e-38, %v1891
      %v1893 = vsel %vm1890, %v1892, %v1888
      %v1894 = vmul.f32 1.0, %v1893
      %v1895 = vrcp.pop %v1835
      %v1896 = vmul.f32 %v1835, %v1895
      %v1897 = vsub.f32 1.0, %v1896
      %v1898 = vmul.f32 %v1895, %v1897
      %v1899 = vadd.f32 %v1895, %v1898
      %vm1900 = vweird.f32 %v1835
      %vm1901 = vweird.f32 %v1895
      %vm1902 = vmor %vm1900, %vm1901
      %v1903 = vsel %vm1902, %v1895, %v1899
      %v1904 = vand.u32 2147483647, %v1835
      %vm1905 = vcmp.eq.f32.partialorder %v1904, 8.507059e+37
      %v1906 = vand.u32 %v1835, 2147483648
      %v1907 = vor.u32 1.1754944e-38, %v1906
      %v1908 = vsel %vm1905, %v1907, %v1903
      %v1909 = vmul.f32 1.0, %v1908
      %v1910 = vrcp.pop %v1836
      %v1911 = vmul.f32 %v1836, %v1910
      %v1912 = vsub.f32 1.0, %v1911
      %v1913 = vmul.f32 %v1910, %v1912
      %v1914 = vadd.f32 %v1910, %v1913
      %vm1915 = vweird.f32 %v1836
      %vm1916 = vweird.f32 %v1910
      %vm1917 = vmor %vm1915, %vm1916
      %v1918 = vsel %vm1917, %v1910, %v1914
      %v1919 = vand.u32 2147483647, %v1836
      %vm1920 = vcmp.eq.f32.partialorder %v1919, 8.507059e+37
      %v1921 = vand.u32 %v1836, 2147483648
      %v1922 = vor.u32 1.1754944e-38, %v1921
      %v1923 = vsel %vm1920, %v1922, %v1918
      %v1924 = vmul.f32 1.0, %v1923
      %v1925 = vrcp.pop %v1837
      %v1926 = vmul.f32 %v1837, %v1925
      %v1927 = vsub.f32 1.0, %v1926
      %v1928 = vmul.f32 %v1925, %v1927
      %v1929 = vadd.f32 %v1925, %v1928
      %vm1930 = vweird.f32 %v1837
      %vm1931 = vweird.f32 %v1925
      %vm1932 = vmor %vm1930, %vm1931
      %v1933 = vsel %vm1932, %v1925, %v1929
      %v1934 = vand.u32 2147483647, %v1837
      %vm1935 = vcmp.eq.f32.partialorder %v1934, 8.507059e+37
      %v1936 = vand.u32 %v1837, 2147483648
      %v1937 = vor.u32 1.1754944e-38, %v1936
      %v1938 = vsel %vm1935, %v1937, %v1933
      %v1939 = vmul.f32 1.0, %v1938
      %v1940 = vrcp.pop %v1838
      %v1941 = vmul.f32 %v1838, %v1940
      %v1942 = vsub.f32 1.0, %v1941
      %v1943 = vmul.f32 %v1940, %v1942
      %v1944 = vadd.f32 %v1940, %v1943
      %vm1945 = vweird.f32 %v1838
      %vm1946 = vweird.f32 %v1940
      %vm1947 = vmor %vm1945, %vm1946
      %v1948 = vsel %vm1947, %v1940, %v1944
      %v1949 = vand.u32 2147483647, %v1838
      %vm1950 = vcmp.eq.f32.partialorder %v1949, 8.507059e+37
      %v1951 = vand.u32 %v1838, 2147483648
      %v1952 = vor.u32 1.1754944e-38, %v1951
      %v1953 = vsel %vm1950, %v1952, %v1948
      %v1954 = vmul.f32 1.0, %v1953
      %v1955 = vrcp.pop %v1839
      %v1956 = vmul.f32 %v1839, %v1955
      %v1957 = vsub.f32 1.0, %v1956
      %v1958 = vmul.f32 %v1955, %v1957
      %v1959 = vadd.f32 %v1955, %v1958
      %vm1960 = vweird.f32 %v1839
      %vm1961 = vweird.f32 %v1955
      %vm1962 = vmor %vm1960, %vm1961
      %v1963 = vsel %vm1962, %v1955, %v1959
      %v1964 = vand.u32 2147483647, %v1839
      %vm1965 = vcmp.eq.f32.partialorder %v1964, 8.507059e+37
      %v1966 = vand.u32 %v1839, 2147483648
      %v1967 = vor.u32 1.1754944e-38, %v1966
      %v1968 = vsel %vm1965, %v1967, %v1963
      %v1969 = vmul.f32 1.0, %v1968
      %v1970 = vrcp.pop %v1840
      %v1971 = vmul.f32 %v1840, %v1970
      %v1972 = vsub.f32 1.0, %v1971
      %v1973 = vmul.f32 %v1970, %v1972
      %v1974 = vadd.f32 %v1970, %v1973
      %vm1975 = vweird.f32 %v1840
      %vm1976 = vweird.f32 %v1970
      %vm1977 = vmor %vm1975, %vm1976
      %v1978 = vsel %vm1977, %v1970, %v1974
      %v1979 = vand.u32 2147483647, %v1840
      %vm1980 = vcmp.eq.f32.partialorder %v1979, 8.507059e+37
      %v1981 = vand.u32 %v1840, 2147483648
      %v1982 = vor.u32 1.1754944e-38, %v1981
      %v1983 = vsel %vm1980, %v1982, %v1978
      %v1984 = vmul.f32 1.0, %v1983
      %v1985 = vrcp.pop %v1841
      %v1986 = vmul.f32 %v1841, %v1985
      %v1987 = vsub.f32 1.0, %v1986
      %v1988 = vmul.f32 %v1985, %v1987
      %v1989 = vadd.f32 %v1985, %v1988
      %vm1990 = vweird.f32 %v1841
      %vm1991 = vweird.f32 %v1985
      %vm1992 = vmor %vm1990, %vm1991
      %v1993 = vsel %vm1992, %v1985, %v1989
      %v1994 = vand.u32 2147483647, %v1841
      %vm1995 = vcmp.eq.f32.partialorder %v1994, 8.507059e+37
      %v1996 = vand.u32 %v1841, 2147483648
      %v1997 = vor.u32 1.1754944e-38, %v1996
      %v1998 = vsel %vm1995, %v1997, %v1993
      %v1999 = vmul.f32 1.0, %v1998
      %v2000 = vrcp.pop %v1842
      %v2001 = vmul.f32 %v1842, %v2000
      %v2002 = vsub.f32 1.0, %v2001
      %v2003 = vmul.f32 %v2000, %v2002
      %v2004 = vadd.f32 %v2000, %v2003
      %vm2005 = vweird.f32 %v1842
      %vm2006 = vweird.f32 %v2000
      %vm2007 = vmor %vm2005, %vm2006
      %v2008 = vsel %vm2007, %v2000, %v2004
      %v2009 = vand.u32 2147483647, %v1842
      %vm2010 = vcmp.eq.f32.partialorder %v2009, 8.507059e+37
      %v2011 = vand.u32 %v1842, 2147483648
      %v2012 = vor.u32 1.1754944e-38, %v2011
      %v2013 = vsel %vm2010, %v2012, %v2008
      %v2014 = vmul.f32 1.0, %v2013
      %v2015 = vrcp.pop %v1843
      %v2016 = vmul.f32 %v1843, %v2015
      %v2017 = vsub.f32 1.0, %v2016
      %v2018 = vmul.f32 %v2015, %v2017
      %v2019 = vadd.f32 %v2015, %v2018
      %vm2020 = vweird.f32 %v1843
      %vm2021 = vweird.f32 %v2015
      %vm2022 = vmor %vm2020, %vm2021
      %v2023 = vsel %vm2022, %v2015, %v2019
      %v2024 = vand.u32 2147483647, %v1843
      %vm2025 = vcmp.eq.f32.partialorder %v2024, 8.507059e+37
      %v2026 = vand.u32 %v1843, 2147483648
      %v2027 = vor.u32 1.1754944e-38, %v2026
      %v2028 = vsel %vm2025, %v2027, %v2023
      %v2029 = vmul.f32 1.0, %v2028
      %v2030 = vrcp.pop %v1844
      %v2031 = vmul.f32 %v1844, %v2030
      %v2032 = vsub.f32 1.0, %v2031
      %v2033 = vmul.f32 %v2030, %v2032
      %v2034 = vadd.f32 %v2030, %v2033
      %vm2035 = vweird.f32 %v1844
      %vm2036 = vweird.f32 %v2030
      %vm2037 = vmor %vm2035, %vm2036
      %v2038 = vsel %vm2037, %v2030, %v2034
      %v2039 = vand.u32 2147483647, %v1844
      %vm2040 = vcmp.eq.f32.partialorder %v2039, 8.507059e+37
      %v2041 = vand.u32 %v1844, 2147483648
      %v2042 = vor.u32 1.1754944e-38, %v2041
      %v2043 = vsel %vm2040, %v2042, %v2038
      %v2044 = vmul.f32 1.0, %v2043
      %v2045 = vrcp.pop %v1845
      %v2046 = vmul.f32 %v1845, %v2045
      %v2047 = vsub.f32 1.0, %v2046
      %v2048 = vmul.f32 %v2045, %v2047
      %v2049 = vadd.f32 %v2045, %v2048
      %vm2050 = vweird.f32 %v1845
      %vm2051 = vweird.f32 %v2045
      %vm2052 = vmor %vm2050, %vm2051
      %v2053 = vsel %vm2052, %v2045, %v2049
      %v2054 = vand.u32 2147483647, %v1845
      %vm2055 = vcmp.eq.f32.partialorder %v2054, 8.507059e+37
      %v2056 = vand.u32 %v1845, 2147483648
      %v2057 = vor.u32 1.1754944e-38, %v2056
      %v2058 = vsel %vm2055, %v2057, %v2053
      %v2059 = vmul.f32 1.0, %v2058
      %v2060 = vrcp.pop %v1846
      %v2061 = vmul.f32 %v1846, %v2060
      %v2062 = vsub.f32 1.0, %v2061
      %v2063 = vmul.f32 %v2060, %v2062
      %v2064 = vadd.f32 %v2060, %v2063
      %vm2065 = vweird.f32 %v1846
      %vm2066 = vweird.f32 %v2060
      %vm2067 = vmor %vm2065, %vm2066
      %v2068 = vsel %vm2067, %v2060, %v2064
      %v2069 = vand.u32 2147483647, %v1846
      %vm2070 = vcmp.eq.f32.partialorder %v2069, 8.507059e+37
      %v2071 = vand.u32 %v1846, 2147483648
      %v2072 = vor.u32 1.1754944e-38, %v2071
      %v2073 = vsel %vm2070, %v2072, %v2068
      %v2074 = vmul.f32 1.0, %v2073
      %v2075 = vrcp.pop %v1847
      %v2076 = vmul.f32 %v1847, %v2075
      %v2077 = vsub.f32 1.0, %v2076
      %v2078 = vmul.f32 %v2075, %v2077
      %v2079 = vadd.f32 %v2075, %v2078
      %vm2080 = vweird.f32 %v1847
      %vm2081 = vweird.f32 %v2075
      %vm2082 = vmor %vm2080, %vm2081
      %v2083 = vsel %vm2082, %v2075, %v2079
      %v2084 = vand.u32 2147483647, %v1847
      %vm2085 = vcmp.eq.f32.partialorder %v2084, 8.507059e+37
      %v2086 = vand.u32 %v1847, 2147483648
      %v2087 = vor.u32 1.1754944e-38, %v2086
      %v2088 = vsel %vm2085, %v2087, %v2083
      %v2089 = vmul.f32 1.0, %v2088
      %v2090 = vrcp.pop %v1848
      %v2091 = vmul.f32 %v1848, %v2090
      %v2092 = vsub.f32 1.0, %v2091
      %v2093 = vmul.f32 %v2090, %v2092
      %v2094 = vadd.f32 %v2090, %v2093
      %vm2095 = vweird.f32 %v1848
      %vm2096 = vweird.f32 %v2090
      %vm2097 = vmor %vm2095, %vm2096
      %v2098 = vsel %vm2097, %v2090, %v2094
      %v2099 = vand.u32 2147483647, %v1848
      %vm2100 = vcmp.eq.f32.partialorder %v2099, 8.507059e+37
      %v2101 = vand.u32 %v1848, 2147483648
      %v2102 = vor.u32 1.1754944e-38, %v2101
      %v2103 = vsel %vm2100, %v2102, %v2098
      %v2104 = vmul.f32 1.0, %v2103
      %v2105 = vrcp.pop %v1849
      %v2106 = vmul.f32 %v1849, %v2105
      %v2107 = vsub.f32 1.0, %v2106
      %v2108 = vmul.f32 %v2105, %v2107
      %v2109 = vadd.f32 %v2105, %v2108
      %vm2110 = vweird.f32 %v1849
      %vm2111 = vweird.f32 %v2105
      %vm2112 = vmor %vm2110, %vm2111
      %v2113 = vsel %vm2112, %v2105, %v2109
      %v2114 = vand.u32 2147483647, %v1849
      %vm2115 = vcmp.eq.f32.partialorder %v2114, 8.507059e+37
      %v2116 = vand.u32 %v1849, 2147483648
      %v2117 = vor.u32 1.1754944e-38, %v2116
      %v2118 = vsel %vm2115, %v2117, %v2113
      %v2119 = vmul.f32 1.0, %v2118
      %v2120 = vrcp.pop %v1850
      %v2121 = vmul.f32 %v1850, %v2120
      %v2122 = vsub.f32 1.0, %v2121
      %v2123 = vmul.f32 %v2120, %v2122
      %v2124 = vadd.f32 %v2120, %v2123
      %vm2125 = vweird.f32 %v1850
      %vm2126 = vweird.f32 %v2120
      %vm2127 = vmor %vm2125, %vm2126
      %v2128 = vsel %vm2127, %v2120, %v2124
      %v2129 = vand.u32 2147483647, %v1850
      %vm2130 = vcmp.eq.f32.partialorder %v2129, 8.507059e+37
      %v2131 = vand.u32 %v1850, 2147483648
      %v2132 = vor.u32 1.1754944e-38, %v2131
      %v2133 = vsel %vm2130, %v2132, %v2128
      %v2134 = vmul.f32 1.0, %v2133
      %v2135 = vrcp.pop %v1851
      %v2136 = vmul.f32 %v1851, %v2135
      %v2137 = vsub.f32 1.0, %v2136
      %v2138 = vmul.f32 %v2135, %v2137
      %v2139 = vadd.f32 %v2135, %v2138
      %vm2140 = vweird.f32 %v1851
      %vm2141 = vweird.f32 %v2135
      %vm2142 = vmor %vm2140, %vm2141
      %v2143 = vsel %vm2142, %v2135, %v2139
      %v2144 = vand.u32 2147483647, %v1851
      %vm2145 = vcmp.eq.f32.partialorder %v2144, 8.507059e+37
      %v2146 = vand.u32 %v1851, 2147483648
      %v2147 = vor.u32 1.1754944e-38, %v2146
      %v2148 = vsel %vm2145, %v2147, %v2143
      %v2149 = vmul.f32 1.0, %v2148
      %v2150 = vrcp.pop %v1852
      %v2151 = vmul.f32 %v1852, %v2150
      %v2152 = vsub.f32 1.0, %v2151
      %v2153 = vmul.f32 %v2150, %v2152
      %v2154 = vadd.f32 %v2150, %v2153
      %vm2155 = vweird.f32 %v1852
      %vm2156 = vweird.f32 %v2150
      %vm2157 = vmor %vm2155, %vm2156
      %v2158 = vsel %vm2157, %v2150, %v2154
      %v2159 = vand.u32 2147483647, %v1852
      %vm2160 = vcmp.eq.f32.partialorder %v2159, 8.507059e+37
      %v2161 = vand.u32 %v1852, 2147483648
      %v2162 = vor.u32 1.1754944e-38, %v2161
      %v2163 = vsel %vm2160, %v2162, %v2158
      %v2164 = vmul.f32 1.0, %v2163
      %v2165 = vrcp.pop %v1853
      %v2166 = vmul.f32 %v1853, %v2165
      %v2167 = vsub.f32 1.0, %v2166
      %v2168 = vmul.f32 %v2165, %v2167
      %v2169 = vadd.f32 %v2165, %v2168
      %vm2170 = vweird.f32 %v1853
      %vm2171 = vweird.f32 %v2165
      %vm2172 = vmor %vm2170, %vm2171
      %v2173 = vsel %vm2172, %v2165, %v2169
      %v2174 = vand.u32 2147483647, %v1853
      %vm2175 = vcmp.eq.f32.partialorder %v2174, 8.507059e+37
      %v2176 = vand.u32 %v1853, 2147483648
      %v2177 = vor.u32 1.1754944e-38, %v2176
      %v2178 = vsel %vm2175, %v2177, %v2173
      %v2179 = vmul.f32 1.0, %v2178
      %v2180 = vrcp.pop %v1854
      %v2181 = vmul.f32 %v1854, %v2180
      %v2182 = vsub.f32 1.0, %v2181
      %v2183 = vmul.f32 %v2180, %v2182
      %v2184 = vadd.f32 %v2180, %v2183
      %vm2185 = vweird.f32 %v1854
      %vm2186 = vweird.f32 %v2180
      %vm2187 = vmor %vm2185, %vm2186
      %v2188 = vsel %vm2187, %v2180, %v2184
      %v2189 = vand.u32 2147483647, %v1854
      %vm2190 = vcmp.eq.f32.partialorder %v2189, 8.507059e+37
      %v2191 = vand.u32 %v1854, 2147483648
      %v2192 = vor.u32 1.1754944e-38, %v2191
      %v2193 = vsel %vm2190, %v2192, %v2188
      %v2194 = vmul.f32 1.0, %v2193
      %v2195 = vrcp.pop %v1855
      %v2196 = vmul.f32 %v1855, %v2195
      %v2197 = vsub.f32 1.0, %v2196
      %v2198 = vmul.f32 %v2195, %v2197
      %v2199 = vadd.f32 %v2195, %v2198
      %vm2200 = vweird.f32 %v1855
      %vm2201 = vweird.f32 %v2195
      %vm2202 = vmor %vm2200, %vm2201
      %v2203 = vsel %vm2202, %v2195, %v2199
      %v2204 = vand.u32 2147483647, %v1855
      %vm2205 = vcmp.eq.f32.partialorder %v2204, 8.507059e+37
      %v2206 = vand.u32 %v1855, 2147483648
      %v2207 = vor.u32 1.1754944e-38, %v2206
      %v2208 = vsel %vm2205, %v2207, %v2203
      %v2209 = vmul.f32 1.0, %v2208
      %v2210 = vrcp.pop %v1856
      %v2211 = vmul.f32 %v1856, %v2210
      %v2212 = vsub.f32 1.0, %v2211
      %v2213 = vmul.f32 %v2210, %v2212
      %v2214 = vadd.f32 %v2210, %v2213
      %vm2215 = vweird.f32 %v1856
      %vm2216 = vweird.f32 %v2210
      %vm2217 = vmor %vm2215, %vm2216
      %v2218 = vsel %vm2217, %v2210, %v2214
      %v2219 = vand.u32 2147483647, %v1856
      %vm2220 = vcmp.eq.f32.partialorder %v2219, 8.507059e+37
      %v2221 = vand.u32 %v1856, 2147483648
      %v2222 = vor.u32 1.1754944e-38, %v2221
      %v2223 = vsel %vm2220, %v2222, %v2218
      %v2224 = vmul.f32 1.0, %v2223
      %v2225 = vrcp.pop %v1857
      %v2226 = vmul.f32 %v1857, %v2225
      %v2227 = vsub.f32 1.0, %v2226
      %v2228 = vmul.f32 %v2225, %v2227
      %v2229 = vadd.f32 %v2225, %v2228
      %vm2230 = vweird.f32 %v1857
      %vm2231 = vweird.f32 %v2225
      %vm2232 = vmor %vm2230, %vm2231
      %v2233 = vsel %vm2232, %v2225, %v2229
      %v2234 = vand.u32 2147483647, %v1857
      %vm2235 = vcmp.eq.f32.partialorder %v2234, 8.507059e+37
      %v2236 = vand.u32 %v1857, 2147483648
      %v2237 = vor.u32 1.1754944e-38, %v2236
      %v2238 = vsel %vm2235, %v2237, %v2233
      %v2239 = vmul.f32 1.0, %v2238
      %v2240 = vrcp.pop %v1858
      %v2241 = vmul.f32 %v1858, %v2240
      %v2242 = vsub.f32 1.0, %v2241
      %v2243 = vmul.f32 %v2240, %v2242
      %v2244 = vadd.f32 %v2240, %v2243
      %vm2245 = vweird.f32 %v1858
      %vm2246 = vweird.f32 %v2240
      %vm2247 = vmor %vm2245, %vm2246
      %v2248 = vsel %vm2247, %v2240, %v2244
      %v2249 = vand.u32 2147483647, %v1858
      %vm2250 = vcmp.eq.f32.partialorder %v2249, 8.507059e+37
      %v2251 = vand.u32 %v1858, 2147483648
      %v2252 = vor.u32 1.1754944e-38, %v2251
      %v2253 = vsel %vm2250, %v2252, %v2248
      %v2254 = vmul.f32 1.0, %v2253
      %v2255 = vrcp.pop %v1859
      %v2256 = vmul.f32 %v1859, %v2255
      %v2257 = vsub.f32 1.0, %v2256
      %v2258 = vmul.f32 %v2255, %v2257
      %v2259 = vadd.f32 %v2255, %v2258
      %vm2260 = vweird.f32 %v1859
      %vm2261 = vweird.f32 %v2255
      %vm2262 = vmor %vm2260, %vm2261
      %v2263 = vsel %vm2262, %v2255, %v2259
      %v2264 = vand.u32 2147483647, %v1859
      %vm2265 = vcmp.eq.f32.partialorder %v2264, 8.507059e+37
      %v2266 = vand.u32 %v1859, 2147483648
      %v2267 = vor.u32 1.1754944e-38, %v2266
      %v2268 = vsel %vm2265, %v2267, %v2263
      %v2269 = vmul.f32 1.0, %v2268
      %v2270 = vrcp.pop %v1860
      %v2271 = vmul.f32 %v1860, %v2270
      %v2272 = vsub.f32 1.0, %v2271
      %v2273 = vmul.f32 %v2270, %v2272
      %v2274 = vadd.f32 %v2270, %v2273
      %vm2275 = vweird.f32 %v1860
      %vm2276 = vweird.f32 %v2270
      %vm2277 = vmor %vm2275, %vm2276
      %v2278 = vsel %vm2277, %v2270, %v2274
      %v2279 = vand.u32 2147483647, %v1860
      %vm2280 = vcmp.eq.f32.partialorder %v2279, 8.507059e+37
      %v2281 = vand.u32 %v1860, 2147483648
      %v2282 = vor.u32 1.1754944e-38, %v2281
      %v2283 = vsel %vm2280, %v2282, %v2278
      %v2284 = vmul.f32 1.0, %v2283
      %v2285 = vrcp.pop %v1861
      %v2286 = vmul.f32 %v1861, %v2285
      %v2287 = vsub.f32 1.0, %v2286
      %v2288 = vmul.f32 %v2285, %v2287
      %v2289 = vadd.f32 %v2285, %v2288
      %vm2290 = vweird.f32 %v1861
      %vm2291 = vweird.f32 %v2285
      %vm2292 = vmor %vm2290, %vm2291
      %v2293 = vsel %vm2292, %v2285, %v2289
      %v2294 = vand.u32 2147483647, %v1861
      %vm2295 = vcmp.eq.f32.partialorder %v2294, 8.507059e+37
      %v2296 = vand.u32 %v1861, 2147483648
      %v2297 = vor.u32 1.1754944e-38, %v2296
      %v2298 = vsel %vm2295, %v2297, %v2293
      %v2299 = vmul.f32 1.0, %v2298
      %v2300 = vrcp.pop %v1862
      %v2301 = vmul.f32 %v1862, %v2300
      %v2302 = vsub.f32 1.0, %v2301
      %v2303 = vmul.f32 %v2300, %v2302
      %v2304 = vadd.f32 %v2300, %v2303
      %vm2305 = vweird.f32 %v1862
      %vm2306 = vweird.f32 %v2300
      %vm2307 = vmor %vm2305, %vm2306
      %v2308 = vsel %vm2307, %v2300, %v2304
      %v2309 = vand.u32 2147483647, %v1862
      %vm2310 = vcmp.eq.f32.partialorder %v2309, 8.507059e+37
      %v2311 = vand.u32 %v1862, 2147483648
      %v2312 = vor.u32 1.1754944e-38, %v2311
      %v2313 = vsel %vm2310, %v2312, %v2308
      %v2314 = vmul.f32 1.0, %v2313
      %v2315 = vrcp.pop %v1863
      %v2316 = vmul.f32 %v1863, %v2315
      %v2317 = vsub.f32 1.0, %v2316
      %v2318 = vmul.f32 %v2315, %v2317
      %v2319 = vadd.f32 %v2315, %v2318
      %vm2320 = vweird.f32 %v1863
      %vm2321 = vweird.f32 %v2315
      %vm2322 = vmor %vm2320, %vm2321
      %v2323 = vsel %vm2322, %v2315, %v2319
      %v2324 = vand.u32 2147483647, %v1863
      %vm2325 = vcmp.eq.f32.partialorder %v2324, 8.507059e+37
      %v2326 = vand.u32 %v1863, 2147483648
      %v2327 = vor.u32 1.1754944e-38, %v2326
      %v2328 = vsel %vm2325, %v2327, %v2323
      %v2329 = vmul.f32 1.0, %v2328
      %v2330 = vrcp.pop %v1864
      %v2331 = vmul.f32 %v1864, %v2330
      %v2332 = vsub.f32 1.0, %v2331
      %v2333 = vmul.f32 %v2330, %v2332
      %v2334 = vadd.f32 %v2330, %v2333
      %vm2335 = vweird.f32 %v1864
      %vm2336 = vweird.f32 %v2330
      %vm2337 = vmor %vm2335, %vm2336
      %v2338 = vsel %vm2337, %v2330, %v2334
      %v2339 = vand.u32 2147483647, %v1864
      %vm2340 = vcmp.eq.f32.partialorder %v2339, 8.507059e+37
      %v2341 = vand.u32 %v1864, 2147483648
      %v2342 = vor.u32 1.1754944e-38, %v2341
      %v2343 = vsel %vm2340, %v2342, %v2338
      %v2344 = vmul.f32 1.0, %v2343
      %v2345 = vrcp.pop %v1705
      %v2346 = vrcp.pop %v1706
      %v2347 = vrcp.pop %v1707
      %v2348 = vrcp.pop %v1708
      %v2349 = vrcp.pop %v1709
      %v2350 = vrcp.pop %v1710
      %v2351 = vrcp.pop %v1711
      %v2352 = vrcp.pop %v1712
      %v2353 = vrcp.pop %v1713
      %v2354 = vrcp.pop %v1714
      %v2355 = vrcp.pop %v1715
      %v2356 = vrcp.pop %v1716
      %v2357 = vrcp.pop %v1717
      %v2358 = vrcp.pop %v1718
      %v2359 = vrcp.pop %v1719
      %v2360 = vrcp.pop %v1720
      %v2361 = vrcp.pop %v1721
      %v2362 = vrcp.pop %v1722
      %v2363 = vrcp.pop %v1723
      %v2364 = vrcp.pop %v1724
      %v2365 = vrcp.pop %v1725
      %v2366 = vrcp.pop %v1726
      %v2367 = vrcp.pop %v1727
      %v2368 = vrcp.pop %v1728
      %v2369 = vrcp.pop %v1729
      %v2370 = vrcp.pop %v1730
      %v2371 = vrcp.pop %v1731
      %v2372 = vrcp.pop %v1732
      %v2373 = vrcp.pop %v1733
      %v2374 = vrcp.pop %v1734
      %v2375 = vrcp.pop %v1735
      %v2376 = vrcp.pop %v1736
      %2409 = vrot.lane.b32.xlu0 %v2345, 32
      %v2410 = vpop.permute.xlu0 %2409
      %2411 = vrot.lane.b32.xlu0 %v2346, 32
      %v2412 = vpop.permute.xlu0 %2411
      %2413 = vrot.lane.b32.xlu0 %v2347, 32
      %v2414 = vpop.permute.xlu0 %2413
      %2415 = vrot.lane.b32.xlu0 %v2348, 32
      %v2416 = vpop.permute.xlu0 %2415
      %2417 = vrot.lane.b32.xlu0 %v2349, 32
      %v2418 = vpop.permute.xlu0 %2417
      %2419 = vrot.lane.b32.xlu0 %v2350, 32
      %v2420 = vpop.permute.xlu0 %2419
      %2421 = vrot.lane.b32.xlu0 %v2351, 32
      %v2422 = vpop.permute.xlu0 %2421
      %2423 = vrot.lane.b32.xlu0 %v2352, 32
      %v2424 = vpop.permute.xlu0 %2423
      %2425 = vrot.lane.b32.xlu0 %v2353, 32
      %v2426 = vpop.permute.xlu0 %2425
      %2427 = vrot.lane.b32.xlu0 %v2354, 32
      %v2428 = vpop.permute.xlu0 %2427
      %2429 = vrot.lane.b32.xlu0 %v2355, 32
      %v2430 = vpop.permute.xlu0 %2429
      %2431 = vrot.lane.b32.xlu0 %v2356, 32
      %v2432 = vpop.permute.xlu0 %2431
      %2433 = vrot.lane.b32.xlu0 %v2357, 32
      %v2434 = vpop.permute.xlu0 %2433
      %2435 = vrot.lane.b32.xlu0 %v2358, 32
      %v2436 = vpop.permute.xlu0 %2435
      %2437 = vrot.lane.b32.xlu0 %v2359, 32
      %v2438 = vpop.permute.xlu0 %2437
      %2439 = vrot.lane.b32.xlu0 %v2360, 32
      %v2440 = vpop.permute.xlu0 %2439
      %2441 = vrot.lane.b32.xlu0 %v2361, 32
      %v2442 = vpop.permute.xlu0 %2441
      %2443 = vrot.lane.b32.xlu0 %v2362, 32
      %v2444 = vpop.permute.xlu0 %2443
      %2445 = vrot.lane.b32.xlu0 %v2363, 32
      %v2446 = vpop.permute.xlu0 %2445
      %2447 = vrot.lane.b32.xlu0 %v2364, 32
      %v2448 = vpop.permute.xlu0 %2447
      %2449 = vrot.lane.b32.xlu0 %v2365, 32
      %v2450 = vpop.permute.xlu0 %2449
      %2451 = vrot.lane.b32.xlu0 %v2366, 32
      %v2452 = vpop.permute.xlu0 %2451
      %2453 = vrot.lane.b32.xlu0 %v2367, 32
      %v2454 = vpop.permute.xlu0 %2453
      %2455 = vrot.lane.b32.xlu0 %v2368, 32
      %v2456 = vpop.permute.xlu0 %2455
      %2457 = vrot.lane.b32.xlu0 %v2369, 32
      %v2458 = vpop.permute.xlu0 %2457
      %2459 = vrot.lane.b32.xlu0 %v2370, 32
      %v2460 = vpop.permute.xlu0 %2459
      %2461 = vrot.lane.b32.xlu0 %v2371, 32
      %v2462 = vpop.permute.xlu0 %2461
      %2463 = vrot.lane.b32.xlu0 %v2372, 32
      %v2464 = vpop.permute.xlu0 %2463
      %2465 = vrot.lane.b32.xlu0 %v2373, 32
      %v2466 = vpop.permute.xlu0 %2465
      %2467 = vrot.lane.b32.xlu0 %v2374, 32
      %v2468 = vpop.permute.xlu0 %2467
      %2469 = vrot.lane.b32.xlu0 %v2375, 32
      %v2470 = vpop.permute.xlu0 %2469
      %2471 = vrot.lane.b32.xlu0 %v2376, 32
      %v2472 = vpop.permute.xlu0 %2471
      %v2505 = vmul.f32 %v1705, %v2410
      %v2506 = vmul.f32 %v1706, %v2412
      %v2507 = vmul.f32 %v1707, %v2414
      %v2508 = vmul.f32 %v1708, %v2416
      %v2509 = vmul.f32 %v1709, %v2418
      %v2510 = vmul.f32 %v1710, %v2420
      %v2511 = vmul.f32 %v1711, %v2422
      %v2512 = vmul.f32 %v1712, %v2424
      %v2513 = vmul.f32 %v1713, %v2426
      %v2514 = vmul.f32 %v1714, %v2428
      %v2515 = vmul.f32 %v1715, %v2430
      %v2516 = vmul.f32 %v1716, %v2432
      %v2517 = vmul.f32 %v1717, %v2434
      %v2518 = vmul.f32 %v1718, %v2436
      %v2519 = vmul.f32 %v1719, %v2438
      %v2520 = vmul.f32 %v1720, %v2440
      %v2521 = vmul.f32 %v1721, %v2442
      %v2522 = vmul.f32 %v1722, %v2444
      %v2523 = vmul.f32 %v1723, %v2446
      %v2524 = vmul.f32 %v1724, %v2448
      %v2525 = vmul.f32 %v1725, %v2450
      %v2526 = vmul.f32 %v1726, %v2452
      %v2527 = vmul.f32 %v1727, %v2454
      %v2528 = vmul.f32 %v1728, %v2456
      %v2529 = vmul.f32 %v1729, %v2458
      %v2530 = vmul.f32 %v1730, %v2460
      %v2531 = vmul.f32 %v1731, %v2462
      %v2532 = vmul.f32 %v1732, %v2464
      %v2533 = vmul.f32 %v1733, %v2466
      %v2534 = vmul.f32 %v1734, %v2468
      %v2535 = vmul.f32 %v1735, %v2470
      %v2536 = vmul.f32 %v1736, %v2472
      %2569 = vrot.lane.b32.xlu0 %v2505, 96
      %v2570 = vpop.permute.xlu0 %2569
      %2571 = vrot.lane.b32.xlu0 %v2506, 96
      %v2572 = vpop.permute.xlu0 %2571
      %2573 = vrot.lane.b32.xlu0 %v2507, 96
      %v2574 = vpop.permute.xlu0 %2573
      %2575 = vrot.lane.b32.xlu0 %v2508, 96
      %v2576 = vpop.permute.xlu0 %2575
      %2577 = vrot.lane.b32.xlu0 %v2509, 96
      %v2578 = vpop.permute.xlu0 %2577
      %2579 = vrot.lane.b32.xlu0 %v2510, 96
      %v2580 = vpop.permute.xlu0 %2579
      %2581 = vrot.lane.b32.xlu0 %v2511, 96
      %v2582 = vpop.permute.xlu0 %2581
      %2583 = vrot.lane.b32.xlu0 %v2512, 96
      %v2584 = vpop.permute.xlu0 %2583
      %2585 = vrot.lane.b32.xlu0 %v2513, 96
      %v2586 = vpop.permute.xlu0 %2585
      %2587 = vrot.lane.b32.xlu0 %v2514, 96
      %v2588 = vpop.permute.xlu0 %2587
      %2589 = vrot.lane.b32.xlu0 %v2515, 96
      %v2590 = vpop.permute.xlu0 %2589
      %2591 = vrot.lane.b32.xlu0 %v2516, 96
      %v2592 = vpop.permute.xlu0 %2591
      %2593 = vrot.lane.b32.xlu0 %v2517, 96
      %v2594 = vpop.permute.xlu0 %2593
      %2595 = vrot.lane.b32.xlu0 %v2518, 96
      %v2596 = vpop.permute.xlu0 %2595
      %2597 = vrot.lane.b32.xlu0 %v2519, 96
      %v2598 = vpop.permute.xlu0 %2597
      %2599 = vrot.lane.b32.xlu0 %v2520, 96
      %v2600 = vpop.permute.xlu0 %2599
      %2601 = vrot.lane.b32.xlu0 %v2521, 96
      %v2602 = vpop.permute.xlu0 %2601
      %2603 = vrot.lane.b32.xlu0 %v2522, 96
      %v2604 = vpop.permute.xlu0 %2603
      %2605 = vrot.lane.b32.xlu0 %v2523, 96
      %v2606 = vpop.permute.xlu0 %2605
      %2607 = vrot.lane.b32.xlu0 %v2524, 96
      %v2608 = vpop.permute.xlu0 %2607
      %2609 = vrot.lane.b32.xlu0 %v2525, 96
      %v2610 = vpop.permute.xlu0 %2609
      %2611 = vrot.lane.b32.xlu0 %v2526, 96
      %v2612 = vpop.permute.xlu0 %2611
      %2613 = vrot.lane.b32.xlu0 %v2527, 96
      %v2614 = vpop.permute.xlu0 %2613
      %2615 = vrot.lane.b32.xlu0 %v2528, 96
      %v2616 = vpop.permute.xlu0 %2615
      %2617 = vrot.lane.b32.xlu0 %v2529, 96
      %v2618 = vpop.permute.xlu0 %2617
      %2619 = vrot.lane.b32.xlu0 %v2530, 96
      %v2620 = vpop.permute.xlu0 %2619
      %2621 = vrot.lane.b32.xlu0 %v2531, 96
      %v2622 = vpop.permute.xlu0 %2621
      %2623 = vrot.lane.b32.xlu0 %v2532, 96
      %v2624 = vpop.permute.xlu0 %2623
      %2625 = vrot.lane.b32.xlu0 %v2533, 96
      %v2626 = vpop.permute.xlu0 %2625
      %2627 = vrot.lane.b32.xlu0 %v2534, 96
      %v2628 = vpop.permute.xlu0 %2627
      %2629 = vrot.lane.b32.xlu0 %v2535, 96
      %v2630 = vpop.permute.xlu0 %2629
      %2631 = vrot.lane.b32.xlu0 %v2536, 96
      %v2632 = vpop.permute.xlu0 %2631
      %v2665 = vmul.f32 %v1879, %v2570
      %v2666 = vmul.f32 %v1894, %v2572
      %v2667 = vmul.f32 %v1909, %v2574
      %v2668 = vmul.f32 %v1924, %v2576
      %v2669 = vmul.f32 %v1939, %v2578
      %v2670 = vmul.f32 %v1954, %v2580
      %v2671 = vmul.f32 %v1969, %v2582
      %v2672 = vmul.f32 %v1984, %v2584
      %v2673 = vmul.f32 %v1999, %v2586
      %v2674 = vmul.f32 %v2014, %v2588
      %v2675 = vmul.f32 %v2029, %v2590
      %v2676 = vmul.f32 %v2044, %v2592
      %v2677 = vmul.f32 %v2059, %v2594
      %v2678 = vmul.f32 %v2074, %v2596
      %v2679 = vmul.f32 %v2089, %v2598
      %v2680 = vmul.f32 %v2104, %v2600
      %v2681 = vmul.f32 %v2119, %v2602
      %v2682 = vmul.f32 %v2134, %v2604
      %v2683 = vmul.f32 %v2149, %v2606
      %v2684 = vmul.f32 %v2164, %v2608
      %v2685 = vmul.f32 %v2179, %v2610
      %v2686 = vmul.f32 %v2194, %v2612
      %v2687 = vmul.f32 %v2209, %v2614
      %v2688 = vmul.f32 %v2224, %v2616
      %v2689 = vmul.f32 %v2239, %v2618
      %v2690 = vmul.f32 %v2254, %v2620
      %v2691 = vmul.f32 %v2269, %v2622
      %v2692 = vmul.f32 %v2284, %v2624
      %v2693 = vmul.f32 %v2299, %v2626
      %v2694 = vmul.f32 %v2314, %v2628
      %v2695 = vmul.f32 %v2329, %v2630
      %v2696 = vmul.f32 %v2344, %v2632
      %v2697 = vpack.c.bf16 %v2666, %v2665
      %v2698 = vpack.c.bf16 %v2668, %v2667
      %v2699 = vpack.c.bf16 %v2670, %v2669
      %v2700 = vpack.c.bf16 %v2672, %v2671
      %v2701 = vpack.c.bf16 %v2674, %v2673
      %v2702 = vpack.c.bf16 %v2676, %v2675
      %v2703 = vpack.c.bf16 %v2678, %v2677
      %v2704 = vpack.c.bf16 %v2680, %v2679
      %v2705 = vpack.c.bf16 %v2682, %v2681
      %v2706 = vpack.c.bf16 %v2684, %v2683
      %v2707 = vpack.c.bf16 %v2686, %v2685
      %v2708 = vpack.c.bf16 %v2688, %v2687
      %v2709 = vpack.c.bf16 %v2690, %v2689
      %v2710 = vpack.c.bf16 %v2692, %v2691
      %v2711 = vpack.c.bf16 %v2694, %v2693
      %v2712 = vpack.c.bf16 %v2696, %v2695
      %v2713 = vld [vmem:[%s2] sm:$0xf]
      %v2714 = vld [vmem:[%s2 + $0x4] sm:$0xf]
      %v2715 = vld [vmem:[%s2 + $0x8] sm:$0xf]
      %v2716 = vld [vmem:[%s2 + $0xc] sm:$0xf]
      %v2717 = vld [vmem:[%s3] sm:$0x1]
      %v2719 = vperm.slane %v2717, 0
      %v2725 = vunpack.c.l.b16 %v2713
      %v2726 = vunpack.c.l.b16 %v2714
      %v2727 = vunpack.c.l.b16 %v2715
      %v2728 = vunpack.c.l.b16 %v2716
      %v2729 = vpack.c.b16 %v2726, %v2725
      %v2730 = vpack.c.b16 %v2728, %v2727
      %v2734 = vsel %vm685, %v2697, 0
      %v2737 = vsel %vm685, %v2698, 0
      %v2740 = vsel %vm685, %v2699, 0
      %v2743 = vsel %vm685, %v2700, 0
      %v2746 = vsel %vm685, %v2701, 0
      %v2749 = vsel %vm685, %v2702, 0
      %v2752 = vsel %vm685, %v2703, 0
      %v2755 = vsel %vm685, %v2704, 0
      %v2758 = vsel %vm685, %v2705, 0
      %v2761 = vsel %vm685, %v2706, 0
      %v2764 = vsel %vm685, %v2707, 0
      %v2767 = vsel %vm685, %v2708, 0
      %v2770 = vsel %vm685, %v2709, 0
      %v2773 = vsel %vm685, %v2710, 0
      %v2776 = vsel %vm685, %v2711, 0
      %v2779 = vsel %vm685, %v2712, 0
      %2781 = vmatpush.bf16.msra.mxu0 0
      %2782 = vmatpush.bf16.msra.mxu0 0
      %2783 = vmatpush.bf16.msra.mxu0 0
      %2784 = vmatpush.bf16.msra.mxu0 0
      %2785 = vmatpush.bf16.msra.mxu0 0
      %2786 = vmatpush.bf16.msra.mxu0 0
      %2787 = vmatpush.bf16.msra.mxu0 %v2730
      %2788 = vmatpush.bf16.msra.mxu0 %v2729
      %2789 = vmatmul.bf16.gmra.mxu0 %v2734
      %v2790 = vpop.f32.mrf.mxu0
      %v2791 = vadd.f32 %v2719, %v2790
      %v2792 = vpop.f32.mrf.mxu0
      %v2793 = vadd.f32 %v2719, %v2792
      %2794 = vmatmul.bf16.gmra.mxu0 %v2737
      %v2795 = vpop.f32.mrf.mxu0
      %v2796 = vadd.f32 %v2719, %v2795
      %v2797 = vpop.f32.mrf.mxu0
      %v2798 = vadd.f32 %v2719, %v2797
      %2799 = vmatmul.bf16.gmra.mxu0 %v2740
      %v2800 = vpop.f32.mrf.mxu0
      %v2801 = vadd.f32 %v2719, %v2800
      %v2802 = vpop.f32.mrf.mxu0
      %v2803 = vadd.f32 %v2719, %v2802
      %2804 = vmatmul.bf16.gmra.mxu0 %v2743
      %v2805 = vpop.f32.mrf.mxu0
      %v2806 = vadd.f32 %v2719, %v2805
      %v2807 = vpop.f32.mrf.mxu0
      %v2808 = vadd.f32 %v2719, %v2807
      %2809 = vmatmul.bf16.gmra.mxu0 %v2746
      %v2810 = vpop.f32.mrf.mxu0
      %v2811 = vadd.f32 %v2719, %v2810
      %v2812 = vpop.f32.mrf.mxu0
      %v2813 = vadd.f32 %v2719, %v2812
      %2814 = vmatmul.bf16.gmra.mxu0 %v2749
      %v2815 = vpop.f32.mrf.mxu0
      %v2816 = vadd.f32 %v2719, %v2815
      %v2817 = vpop.f32.mrf.mxu0
      %v2818 = vadd.f32 %v2719, %v2817
      %2819 = vmatmul.bf16.gmra.mxu0 %v2752
      %v2820 = vpop.f32.mrf.mxu0
      %v2821 = vadd.f32 %v2719, %v2820
      %v2822 = vpop.f32.mrf.mxu0
      %v2823 = vadd.f32 %v2719, %v2822
      %2824 = vmatmul.bf16.gmra.mxu0 %v2755
      %v2825 = vpop.f32.mrf.mxu0
      %v2826 = vadd.f32 %v2719, %v2825
      %v2827 = vpop.f32.mrf.mxu0
      %v2828 = vadd.f32 %v2719, %v2827
      %2829 = vmatmul.bf16.gmra.mxu0 %v2758
      %v2830 = vpop.f32.mrf.mxu0
      %v2831 = vadd.f32 %v2719, %v2830
      %v2832 = vpop.f32.mrf.mxu0
      %v2833 = vadd.f32 %v2719, %v2832
      %2834 = vmatmul.bf16.gmra.mxu0 %v2761
      %v2835 = vpop.f32.mrf.mxu0
      %v2836 = vadd.f32 %v2719, %v2835
      %v2837 = vpop.f32.mrf.mxu0
      %v2838 = vadd.f32 %v2719, %v2837
      %2839 = vmatmul.bf16.gmra.mxu0 %v2764
      %v2840 = vpop.f32.mrf.mxu0
      %v2841 = vadd.f32 %v2719, %v2840
      %v2842 = vpop.f32.mrf.mxu0
      %v2843 = vadd.f32 %v2719, %v2842
      %2844 = vmatmul.bf16.gmra.mxu0 %v2767
      %v2845 = vpop.f32.mrf.mxu0
      %v2846 = vadd.f32 %v2719, %v2845
      %v2847 = vpop.f32.mrf.mxu0
      %v2848 = vadd.f32 %v2719, %v2847
      %2849 = vmatmul.bf16.gmra.mxu0 %v2770
      %v2850 = vpop.f32.mrf.mxu0
      %v2851 = vadd.f32 %v2719, %v2850
      %v2852 = vpop.f32.mrf.mxu0
      %v2853 = vadd.f32 %v2719, %v2852
      %2854 = vmatmul.bf16.gmra.mxu0 %v2773
      %v2855 = vpop.f32.mrf.mxu0
      %v2856 = vadd.f32 %v2719, %v2855
      %v2857 = vpop.f32.mrf.mxu0
      %v2858 = vadd.f32 %v2719, %v2857
      %2859 = vmatmul.bf16.gmra.mxu0 %v2776
      %v2860 = vpop.f32.mrf.mxu0
      %v2861 = vadd.f32 %v2719, %v2860
      %v2862 = vpop.f32.mrf.mxu0
      %v2863 = vadd.f32 %v2719, %v2862
      %2864 = vmatmul.bf16.gmra.mxu0 %v2779
      %v2865 = vpop.f32.mrf.mxu0
      %v2866 = vadd.f32 %v2719, %v2865
      %v2867 = vpop.f32.mrf.mxu0
      %v2868 = vadd.f32 %v2719, %v2867
      %2869 = vdwg.mxu0
      %vm2870 = vcmask 31744
      %2871 = vst.msk [vmem:[%s197] sm:$0xff] %vm2870, %v2791
      %2872 = vst.msk [vmem:[%s197 + $0x8] sm:$0xff] %vm2870, %v2793
      %2873 = vst.msk [vmem:[%s197 + $0x10] sm:$0xff] %vm2870, %v2796
      %2874 = vst.msk [vmem:[%s197 + $0x18] sm:$0xff] %vm2870, %v2798
      %2875 = vst.msk [vmem:[%s197 + $0x20] sm:$0xff] %vm2870, %v2801
      %2876 = vst.msk [vmem:[%s197 + $0x28] sm:$0xff] %vm2870, %v2803
      %2877 = vst.msk [vmem:[%s197 + $0x30] sm:$0xff] %vm2870, %v2806
      %2878 = vst.msk [vmem:[%s197 + $0x38] sm:$0xff] %vm2870, %v2808
      %2879 = vst.msk [vmem:[%s197 + $0x40] sm:$0xff] %vm2870, %v2811
      %2880 = vst.msk [vmem:[%s197 + $0x48] sm:$0xff] %vm2870, %v2813
      %2881 = vst.msk [vmem:[%s197 + $0x50] sm:$0xff] %vm2870, %v2816
      %2882 = vst.msk [vmem:[%s197 + $0x58] sm:$0xff] %vm2870, %v2818
      %2883 = vst.msk [vmem:[%s197 + $0x60] sm:$0xff] %vm2870, %v2821
      %2884 = vst.msk [vmem:[%s197 + $0x68] sm:$0xff] %vm2870, %v2823
      %2885 = vst.msk [vmem:[%s197 + $0x70] sm:$0xff] %vm2870, %v2826
      %2886 = vst.msk [vmem:[%s197 + $0x78] sm:$0xff] %vm2870, %v2828
      %2887 = vst.msk [vmem:[%s197 + $0x80] sm:$0xff] %vm2870, %v2831
      %2888 = vst.msk [vmem:[%s197 + $0x88] sm:$0xff] %vm2870, %v2833
      %2889 = vst.msk [vmem:[%s197 + $0x90] sm:$0xff] %vm2870, %v2836
      %2890 = vst.msk [vmem:[%s197 + $0x98] sm:$0xff] %vm2870, %v2838
      %2891 = vst.msk [vmem:[%s197 + $0xa0] sm:$0xff] %vm2870, %v2841
      %2892 = vst.msk [vmem:[%s197 + $0xa8] sm:$0xff] %vm2870, %v2843
      %2893 = vst.msk [vmem:[%s197 + $0xb0] sm:$0xff] %vm2870, %v2846
      %2894 = vst.msk [vmem:[%s197 + $0xb8] sm:$0xff] %vm2870, %v2848
      %2895 = vst.msk [vmem:[%s197 + $0xc0] sm:$0xff] %vm2870, %v2851
      %2896 = vst.msk [vmem:[%s197 + $0xc8] sm:$0xff] %vm2870, %v2853
      %2897 = vst.msk [vmem:[%s197 + $0xd0] sm:$0xff] %vm2870, %v2856
      %2898 = vst.msk [vmem:[%s197 + $0xd8] sm:$0xff] %vm2870, %v2858
      %2899 = vst.msk [vmem:[%s197 + $0xe0] sm:$0xff] %vm2870, %v2861
      %2900 = vst.msk [vmem:[%s197 + $0xe8] sm:$0xff] %vm2870, %v2863
      %2901 = vst.msk [vmem:[%s197 + $0xf0] sm:$0xff] %vm2870, %v2866
      %2902 = vst.msk [vmem:[%s197 + $0xf8] sm:$0xff] %vm2870, %v2868
      %p2903 = scmp.lt.s32.totalorder %s15, 1
      %s2904 = scalar_select %p2903, %s15, 1
      %s2905 = smul.addr %s2904, 32
      %s2906 = smul.addr %s2905, 8
      %s2907 = scalar_lea.vmem %s4, %s2906
      // Predicated region
      $region37: #{aft_conv_forward.3} parent=35 // pred_check
        %p2908 = pneg %p122
      $region38: #{aft_conv_forward.3} parent=35 // pred_check_branch
        %2910 = sbr.rel (%p2908) target = $region40
      $region39: #{aft_conv_forward.3} parent=35 // pred_region
        _
      $region40: #{aft_conv_forward.3} parent=35 // pred_fallthru
        _
    $region36: #{aft_conv_forward.3} parent=5 // pred_fallthru
      _
    %p2911 = scmp.le.s32.totalorder 2, %s10
    // Predicated region
    $region41: #{aft_conv_forward.3} parent=5 // pred_check
      %p2912 = pneg %p2911
    $region42: #{aft_conv_forward.3} parent=5 // pred_check_branch
      %2914 = sbr.rel (%p2912) target = $region44
    $region43: #{aft_conv_forward.3} parent=5 // pred_region
      %s2915 = ssub.s32 %s10, 2
      // Predicated region
      $region45: #{aft_conv_forward.3} parent=43 // pred_check
        %p2916 = pneg %p128
      $region46: #{aft_conv_forward.3} parent=43 // pred_check_branch
        %2918 = sbr.rel (%p2916) target = $region48
      $region47: #{aft_conv_forward.3} parent=43 // pred_region
        %p2919 = scmp.lt.s32.totalorder %s16, 1
        %s2920 = scalar_select %p2919, %s16, 1
        %s2921 = smul.addr %s2920, 32
        %s2922 = smul.addr %s2921, 8
        %s2923 = scalar_lea.vmem %s4, %s2922
      $region48: #{aft_conv_forward.3} parent=43 // pred_fallthru
        _
    $region44: #{aft_conv_forward.3} parent=5 // pred_fallthru
      _
  $region6: #{aft_conv_forward.3} parent=0 // loop_footer
    %s14 = sadd.s32 1, %s10
  $region7: #{aft_conv_forward.3} parent=0 // loop_footer_branch
    %9 = sbr.rel target = $region3
  $region8: #{aft_conv_forward.3} parent=0 // loop_exit
    _

</llo_original>
